<compile_context>
chip_gen: v7x
topology: tpu7x:2x2x1
jax: 0.10.0
libtpu: 0.0.40
codegen_flags: <defaults>
</compile_context>

<pallas_src>
import jax
import jax.numpy as jnp
from jax.experimental import pallas as pl
from jax.experimental.pallas import tpu as pltpu

BN_EPS = 1e-5


# ----------------------------- kernel -----------------------------

def _amplitudenet_kernel(x_ref, w0_ref, w_ref, b_ref, bo_ref, out_ref):
    """One batch tile of the whole fused network.

    x_ref  : (tb, D_in)       f32   input tile
    w0_ref : (D_in, H)        bf16  folded input-layer weight
    w_ref  : (6, H, H)        bf16  folded weights [l1, rb1a, rb1b, l2, rb2a, rb2b]
    b_ref  : (8, H)           f32   rows 0..6 = folded biases (l0 first), row 7 = head weight row
    bo_ref : (1, 1)           f32   head bias
    out_ref: (tb//128, 128) [lane-dense] or (tb, 1) [fallback]   sigmoid output
    """

    def mm(h, w):
        # bf16 MXU matmul with f32 accumulation.
        return jnp.dot(h.astype(jnp.bfloat16), w, preferred_element_type=jnp.float32)

    x = x_ref[...]

    # ---- L0: Linear(16->256) + folded BN + ReLU (+ Dropout = id) ----
    h = jnp.maximum(mm(x, w0_ref[...]) + b_ref[0:1, :], 0.0)

    # ---- L1: Linear(256->256) + folded BN + ReLU ----
    h = jnp.maximum(mm(h, w_ref[0]) + b_ref[1:2, :], 0.0)
    # ---- ResidualBlock #1 ----
    r = jnp.maximum(mm(h, w_ref[1]) + b_ref[2:3, :], 0.0)
    r = jnp.maximum(mm(r, w_ref[2]) + b_ref[3:4, :], 0.0)
    h = h + r

    # ---- L2: Linear(256->256) + folded BN + ReLU ----
    h = jnp.maximum(mm(h, w_ref[3]) + b_ref[4:5, :], 0.0)
    # ---- ResidualBlock #2 ----
    r = jnp.maximum(mm(h, w_ref[4]) + b_ref[5:6, :], 0.0)
    r = jnp.maximum(mm(r, w_ref[5]) + b_ref[6:7, :], 0.0)
    h = h + r

    # ---- head: Linear(256->1) + Sigmoid ----
    # N=1 matmul replaced by a VPU multiply + lane reduction (MXU stays free).
    wo = b_ref[7:8, :]                                           # (1, H) f32
    z = jnp.sum(h * wo, axis=-1, keepdims=True) + bo_ref[...]    # (tb, 1) f32
    if out_ref.shape[-1] != 1:
        # Lane-dense epilogue: relayout the per-row scalars to (tb//128, 128) so the
        # sigmoid runs on full vregs and the store is an unmasked full-lane vst.
        z = z.reshape(out_ref.shape)
    out_ref[...] = 1.0 / (1.0 + jnp.exp(-z))


# ----------------------------- wrapper -----------------------------

def _round_up(n, m):
    return ((n + m - 1) // m) * m


def _build_and_run(x_pad, packed, *, tb, num_tiles, Bp, lane_dense, single_buffer):
    D_in = x_pad.shape[1]
    H = packed["b_slab"].shape[-1]

    const_kw = {}
    if single_buffer:
        # Grid-invariant operands: one VMEM buffer instead of a pointless double buffer.
        const_kw = dict(pipeline_mode=pl.Buffered(1))

    in_specs = [
        pl.BlockSpec((tb, D_in), lambda i: (i, 0)),                # x: streamed per batch tile
        pl.BlockSpec((D_in, H), lambda i: (0, 0), **const_kw),     # folded w0 (bf16)
        pl.BlockSpec((6, H, H), lambda i: (0, 0, 0), **const_kw),  # folded 256x256 slab (bf16)
        pl.BlockSpec((8, H), lambda i: (0, 0), **const_kw),        # biases + head weight row
        pl.BlockSpec((1, 1), lambda i: (0, 0), **const_kw),        # head bias
    ]
    if lane_dense:
        out_shape = jax.ShapeDtypeStruct((Bp // 128, 128), jnp.float32)
        out_specs = pl.BlockSpec((tb // 128, 128), lambda i: (i, 0))
    else:
        out_shape = jax.ShapeDtypeStruct((Bp, 1), jnp.float32)
        out_specs = pl.BlockSpec((tb, 1), lambda i: (i, 0))

    fn = pl.pallas_call(
        _amplitudenet_kernel,
        out_shape=out_shape,
        grid_spec=pltpu.PrefetchScalarGridSpec(
            num_scalar_prefetch=0,
            grid=(num_tiles,),
            in_specs=in_specs,
            out_specs=out_specs,
        ),
        compiler_params=pltpu.CompilerParams(
            dimension_semantics=("parallel",),
            vmem_limit_bytes=48 * 1024 * 1024,
        ),
    )
    out = fn(x_pad, packed["w0"], packed["w_slab"], packed["b_slab"], packed["bo"])
    out = jax.block_until_ready(out)     # surface compile/runtime errors inside the caller's try
    return out.reshape(Bp, 1)            # row-major: batch order is preserved in both layouts


def amplitudenet_forward(x, packed, *, tb=2048):
    """x: [B, D_in] float32. packed: dict from pack_params(). Returns [B, 1] float32."""
    B, _ = x.shape

    # Batch tile: multiple of 128 (lane-dense output), capped at 2048 (VMEM headroom on
    # v7x's 64 MiB), and capped so the "parallel" batch axis has >= 2 grid steps whenever
    # the batch allows (v7x shards the parallel axis across its 2 TensorCores).
    tb = max(128, (min(int(tb), 2048) // 128) * 128)
    if B <= 2 * tb:
        tb = max(128, _round_up(pl.cdiv(B, 2), 128))

    num_tiles = pl.cdiv(B, tb)
    Bp = num_tiles * tb
    x_pad = jnp.pad(x, ((0, Bp - B), (0, 0))) if Bp != B else x

    try:
        out = _build_and_run(x_pad, packed, tb=tb, num_tiles=num_tiles, Bp=Bp,
                             lane_dense=True, single_buffer=True)
    except Exception:
        # Conservative layout for jax builds that reject pl.Buffered(1) or the in-kernel
        # (tb,1)->(tb//128,128) relayout; identical math, just less optimal epilogue/VMEM.
        out = _build_and_run(x_pad, packed, tb=tb, num_tiles=num_tiles, Bp=Bp,
                             lane_dense=False, single_buffer=False)
    return out[:B]


# ------------------- parameter construction / folding (glue) -------------------

def make_raw_params(key, in_dim=16, hidden=256):
    """Deterministic synthetic parameters matching AmplitudeNet(16, [256, 256, 256])."""
    def linear(k, d_in, d_out):
        kw, kb = jax.random.split(k)
        # PyTorch Linear stores W as (out, in); we keep it pre-transposed to (in, out).
        w = jax.random.normal(kw, (d_in, d_out), jnp.float32) * (1.0 / jnp.sqrt(d_in))
        b = 0.05 * jax.random.normal(kb, (d_out,), jnp.float32)
        return {"w": w, "b": b}

    def lin_bn(k, d_in, d_out):
        kl, kg, kb, km, kv = jax.random.split(k, 5)
        p = linear(kl, d_in, d_out)
        p["gamma"] = 1.0 + 0.1 * jax.random.normal(kg, (d_out,), jnp.float32)
        p["beta"] = 0.05 * jax.random.normal(kb, (d_out,), jnp.float32)
        p["mean"] = 0.1 * jax.random.normal(km, (d_out,), jnp.float32)
        p["var"] = jnp.abs(jax.random.normal(kv, (d_out,), jnp.float32)) + 0.5
        return p

    ks = jax.random.split(key, 8)
    rp = {
        "l0": lin_bn(ks[0], in_dim, hidden),
        "l1": lin_bn(ks[1], hidden, hidden),
        "rb1a": lin_bn(ks[2], hidden, hidden),
        "rb1b": lin_bn(ks[3], hidden, hidden),
        "l2": lin_bn(ks[4], hidden, hidden),
        "rb2a": lin_bn(ks[5], hidden, hidden),
        "rb2b": lin_bn(ks[6], hidden, hidden),
        "head": linear(ks[7], hidden, 1),
    }
    return rp


def pack_params(rp):
    """Fold BN into the Linear weights/biases and pack into 4 arrays; weights -> bf16."""
    def fold(p):
        s = p["gamma"] / jnp.sqrt(p["var"] + BN_EPS)           # (d,)
        t = p["beta"] - p["mean"] * s                           # (d,)
        w = p["w"] * s[None, :]                                 # scale output columns
        c = p["b"] * s + t                                      # folded bias/shift
        return w, c

    w0, c0 = fold(rp["l0"])
    names = ["l1", "rb1a", "rb1b", "l2", "rb2a", "rb2b"]
    ws, cs = [], [c0]
    for n in names:
        w, c = fold(rp[n])
        ws.append(w)
        cs.append(c)

    w_slab = jnp.stack(ws, axis=0).astype(jnp.bfloat16)         # (6, H, H) bf16
    wo_row = rp["head"]["w"][:, 0]                              # (H,) transposed head weight
    b_slab = jnp.stack(cs + [wo_row], axis=0)                   # (8, H) f32
    bo = rp["head"]["b"].reshape(1, 1)                          # (1, 1) f32
    return {"w0": w0.astype(jnp.bfloat16), "w_slab": w_slab, "b_slab": b_slab, "bo": bo}


def reference_forward(x, rp):
    """Pure-JAX f32 reference of the eval-mode PyTorch forward (unfolded BN)."""
    def lin_bn_relu(h, p):
        z = h @ p["w"] + p["b"]
        z = (z - p["mean"]) / jnp.sqrt(p["var"] + BN_EPS) * p["gamma"] + p["beta"]
        return jnp.maximum(z, 0.0)

    h = lin_bn_relu(x, rp["l0"])
    h = lin_bn_relu(h, rp["l1"])
    r = lin_bn_relu(h, rp["rb1a"])
    r = lin_bn_relu(r, rp["rb1b"])
    h = h + r
    h = lin_bn_relu(h, rp["l2"])
    r = lin_bn_relu(h, rp["rb2a"])
    r = lin_bn_relu(r, rp["rb2b"])
    h = h + r
    z = h @ rp["head"]["w"] + rp["head"]["b"]
    return 1.0 / (1.0 + jnp.exp(-z))


if __name__ == "__main__":
    key = jax.random.PRNGKey(0)
    k_x, k_p = jax.random.split(key)

    B, IN_DIM, HIDDEN = 300, 16, 256          # module defaults; ragged B exercises padding
    x = jax.random.normal(k_x, (B, IN_DIM), jnp.float32)

    raw = make_raw_params(k_p, in_dim=IN_DIM, hidden=HIDDEN)
    packed = pack_params(raw)

    out_default = amplitudenet_forward(x, packed)            # 2 parallel tiles of 256 rows
    out_small = amplitudenet_forward(x, packed, tb=128)      # 3-step grid path
    out_default, out_small = jax.block_until_ready((out_default, out_small))

    ref = reference_forward(x, raw)
    assert out_default.shape == (B, 1), out_default.shape
    err_default = float(jnp.max(jnp.abs(out_default - ref)))
    err_small = float(jnp.max(jnp.abs(out_small - ref)))
    # bf16 matmuls with f32 accumulation -> tolerance relaxed vs the all-f32 version.
    assert jnp.allclose(out_default, ref, atol=2e-2, rtol=2e-2), err_default
    assert jnp.allclose(out_small, ref, atol=2e-2, rtol=2e-2), err_small
    print("KERNEL_OK")
</pallas_src>

<mosaic_0001>
module attributes {stable_mosaic.version = 11 : i64} {
  func.func @_amplitudenet_kernel(%arg0: i32, %arg1: memref<256x16xf32, #tpu.memory_space<vmem>>, %arg2: memref<16x256xbf16, #tpu.memory_space<vmem>>, %arg3: memref<6x256x256xbf16, #tpu.memory_space<vmem>>, %arg4: memref<8x256xf32, #tpu.memory_space<vmem>>, %arg5: memref<1x1xf32, #tpu.memory_space<vmem>>, %arg6: memref<256x1xf32, #tpu.memory_space<vmem>>) attributes {dimension_semantics = [#tpu.dimension_semantics<parallel>], iteration_bounds = array<i64: 2>, scalar_prefetch = 0 : i64, scratch_operands = 0 : i64, tpu.core_type = #tpu.core_type<tc>, window_params = [{transform_indices = @transform_0, window_bounds = array<i64: 256, 16>}, {pipeline_mode = #tpu.pipeline_mode<synchronous>, transform_indices = @transform_1, window_bounds = array<i64: 16, 256>}, {pipeline_mode = #tpu.pipeline_mode<synchronous>, transform_indices = @transform_2, window_bounds = array<i64: 6, 256, 256>}, {pipeline_mode = #tpu.pipeline_mode<synchronous>, transform_indices = @transform_3, window_bounds = array<i64: 8, 256>}, {pipeline_mode = #tpu.pipeline_mode<synchronous>, transform_indices = @transform_4, window_bounds = array<i64: 1, 1>}, {transform_indices = @transform_5, window_bounds = array<i64: 256, 1>}]} {
    %c0 = arith.constant 0 : index
    %c0_0 = arith.constant 0 : index
    %0 = vector.load %arg1[%c0, %c0_0] : memref<256x16xf32, #tpu.memory_space<vmem>>, vector<256x16xf32>
    %c0_1 = arith.constant 0 : index
    %c0_2 = arith.constant 0 : index
    %1 = vector.load %arg2[%c0_1, %c0_2] : memref<16x256xbf16, #tpu.memory_space<vmem>>, vector<16x256xbf16>
    %2 = arith.truncf %0 : vector<256x16xf32> to vector<256x16xbf16>
    %cst = arith.constant dense<0.000000e+00> : vector<256x256xf32>
    %3 = tpu.matmul %2, %1, %cst {dimension_numbers = #tpu.dot_dimension_numbers<[1], [0], [0], [1], [0, 0, 1, 1], [], []>} : vector<256x16xbf16>, vector<16x256xbf16>, vector<256x256xf32> -> vector<256x256xf32>
    %c0_3 = arith.constant 0 : index
    %c0_4 = arith.constant 0 : index
    %4 = vector.load %arg4[%c0_3, %c0_4] : memref<8x256xf32, #tpu.memory_space<vmem>>, vector<1x256xf32>
    %5 = vector.broadcast %4 : vector<1x256xf32> to vector<256x256xf32>
    %6 = arith.addf %3, %5 : vector<256x256xf32>
    %cst_5 = arith.constant 0.000000e+00 : f32
    %7 = vector.broadcast %cst_5 : f32 to vector<256x256xf32>
    %8 = arith.maximumf %6, %7 : vector<256x256xf32>
    %c0_6 = arith.constant 0 : index
    %c0_7 = arith.constant 0 : index
    %c0_8 = arith.constant 0 : index
    %9 = vector.load %arg3[%c0_6, %c0_7, %c0_8] : memref<6x256x256xbf16, #tpu.memory_space<vmem>>, vector<1x256x256xbf16>
    %10 = vector.shape_cast %9 : vector<1x256x256xbf16> to vector<256x256xbf16>
    %11 = arith.truncf %8 : vector<256x256xf32> to vector<256x256xbf16>
    %cst_9 = arith.constant dense<0.000000e+00> : vector<256x256xf32>
    %12 = tpu.matmul %11, %10, %cst_9 {dimension_numbers = #tpu.dot_dimension_numbers<[1], [0], [0], [1], [0, 0, 1, 1], [], []>} : vector<256x256xbf16>, vector<256x256xbf16>, vector<256x256xf32> -> vector<256x256xf32>
    %c1 = arith.constant 1 : index
    %c0_10 = arith.constant 0 : index
    %13 = vector.load %arg4[%c1, %c0_10] : memref<8x256xf32, #tpu.memory_space<vmem>>, vector<1x256xf32>
    %14 = vector.broadcast %13 : vector<1x256xf32> to vector<256x256xf32>
    %15 = arith.addf %12, %14 : vector<256x256xf32>
    %cst_11 = arith.constant 0.000000e+00 : f32
    %16 = vector.broadcast %cst_11 : f32 to vector<256x256xf32>
    %17 = arith.maximumf %15, %16 : vector<256x256xf32>
    %c1_12 = arith.constant 1 : index
    %c0_13 = arith.constant 0 : index
    %c0_14 = arith.constant 0 : index
    %18 = vector.load %arg3[%c1_12, %c0_13, %c0_14] : memref<6x256x256xbf16, #tpu.memory_space<vmem>>, vector<1x256x256xbf16>
    %19 = vector.shape_cast %18 : vector<1x256x256xbf16> to vector<256x256xbf16>
    %20 = arith.truncf %17 : vector<256x256xf32> to vector<256x256xbf16>
    %cst_15 = arith.constant dense<0.000000e+00> : vector<256x256xf32>
    %21 = tpu.matmul %20, %19, %cst_15 {dimension_numbers = #tpu.dot_dimension_numbers<[1], [0], [0], [1], [0, 0, 1, 1], [], []>} : vector<256x256xbf16>, vector<256x256xbf16>, vector<256x256xf32> -> vector<256x256xf32>
    %c2 = arith.constant 2 : index
    %c0_16 = arith.constant 0 : index
    %22 = vector.load %arg4[%c2, %c0_16] : memref<8x256xf32, #tpu.memory_space<vmem>>, vector<1x256xf32>
    %23 = vector.broadcast %22 : vector<1x256xf32> to vector<256x256xf32>
    %24 = arith.addf %21, %23 : vector<256x256xf32>
    %cst_17 = arith.constant 0.000000e+00 : f32
    %25 = vector.broadcast %cst_17 : f32 to vector<256x256xf32>
    %26 = arith.maximumf %24, %25 : vector<256x256xf32>
    %c2_18 = arith.constant 2 : index
    %c0_19 = arith.constant 0 : index
    %c0_20 = arith.constant 0 : index
    %27 = vector.load %arg3[%c2_18, %c0_19, %c0_20] : memref<6x256x256xbf16, #tpu.memory_space<vmem>>, vector<1x256x256xbf16>
    %28 = vector.shape_cast %27 : vector<1x256x256xbf16> to vector<256x256xbf16>
    %29 = arith.truncf %26 : vector<256x256xf32> to vector<256x256xbf16>
    %cst_21 = arith.constant dense<0.000000e+00> : vector<256x256xf32>
    %30 = tpu.matmul %29, %28, %cst_21 {dimension_numbers = #tpu.dot_dimension_numbers<[1], [0], [0], [1], [0, 0, 1, 1], [], []>} : vector<256x256xbf16>, vector<256x256xbf16>, vector<256x256xf32> -> vector<256x256xf32>
    %c3 = arith.constant 3 : index
    %c0_22 = arith.constant 0 : index
    %31 = vector.load %arg4[%c3, %c0_22] : memref<8x256xf32, #tpu.memory_space<vmem>>, vector<1x256xf32>
    %32 = vector.broadcast %31 : vector<1x256xf32> to vector<256x256xf32>
    %33 = arith.addf %30, %32 : vector<256x256xf32>
    %cst_23 = arith.constant 0.000000e+00 : f32
    %34 = vector.broadcast %cst_23 : f32 to vector<256x256xf32>
    %35 = arith.maximumf %33, %34 : vector<256x256xf32>
    %36 = arith.addf %17, %35 : vector<256x256xf32>
    %c3_24 = arith.constant 3 : index
    %c0_25 = arith.constant 0 : index
    %c0_26 = arith.constant 0 : index
    %37 = vector.load %arg3[%c3_24, %c0_25, %c0_26] : memref<6x256x256xbf16, #tpu.memory_space<vmem>>, vector<1x256x256xbf16>
    %38 = vector.shape_cast %37 : vector<1x256x256xbf16> to vector<256x256xbf16>
    %39 = arith.truncf %36 : vector<256x256xf32> to vector<256x256xbf16>
    %cst_27 = arith.constant dense<0.000000e+00> : vector<256x256xf32>
    %40 = tpu.matmul %39, %38, %cst_27 {dimension_numbers = #tpu.dot_dimension_numbers<[1], [0], [0], [1], [0, 0, 1, 1], [], []>} : vector<256x256xbf16>, vector<256x256xbf16>, vector<256x256xf32> -> vector<256x256xf32>
    %c4 = arith.constant 4 : index
    %c0_28 = arith.constant 0 : index
    %41 = vector.load %arg4[%c4, %c0_28] : memref<8x256xf32, #tpu.memory_space<vmem>>, vector<1x256xf32>
    %42 = vector.broadcast %41 : vector<1x256xf32> to vector<256x256xf32>
    %43 = arith.addf %40, %42 : vector<256x256xf32>
    %cst_29 = arith.constant 0.000000e+00 : f32
    %44 = vector.broadcast %cst_29 : f32 to vector<256x256xf32>
    %45 = arith.maximumf %43, %44 : vector<256x256xf32>
    %c4_30 = arith.constant 4 : index
    %c0_31 = arith.constant 0 : index
    %c0_32 = arith.constant 0 : index
    %46 = vector.load %arg3[%c4_30, %c0_31, %c0_32] : memref<6x256x256xbf16, #tpu.memory_space<vmem>>, vector<1x256x256xbf16>
    %47 = vector.shape_cast %46 : vector<1x256x256xbf16> to vector<256x256xbf16>
    %48 = arith.truncf %45 : vector<256x256xf32> to vector<256x256xbf16>
    %cst_33 = arith.constant dense<0.000000e+00> : vector<256x256xf32>
    %49 = tpu.matmul %48, %47, %cst_33 {dimension_numbers = #tpu.dot_dimension_numbers<[1], [0], [0], [1], [0, 0, 1, 1], [], []>} : vector<256x256xbf16>, vector<256x256xbf16>, vector<256x256xf32> -> vector<256x256xf32>
    %c5 = arith.constant 5 : index
    %c0_34 = arith.constant 0 : index
    %50 = vector.load %arg4[%c5, %c0_34] : memref<8x256xf32, #tpu.memory_space<vmem>>, vector<1x256xf32>
    %51 = vector.broadcast %50 : vector<1x256xf32> to vector<256x256xf32>
    %52 = arith.addf %49, %51 : vector<256x256xf32>
    %cst_35 = arith.constant 0.000000e+00 : f32
    %53 = vector.broadcast %cst_35 : f32 to vector<256x256xf32>
    %54 = arith.maximumf %52, %53 : vector<256x256xf32>
    %c5_36 = arith.constant 5 : index
    %c0_37 = arith.constant 0 : index
    %c0_38 = arith.constant 0 : index
    %55 = vector.load %arg3[%c5_36, %c0_37, %c0_38] : memref<6x256x256xbf16, #tpu.memory_space<vmem>>, vector<1x256x256xbf16>
    %56 = vector.shape_cast %55 : vector<1x256x256xbf16> to vector<256x256xbf16>
    %57 = arith.truncf %54 : vector<256x256xf32> to vector<256x256xbf16>
    %cst_39 = arith.constant dense<0.000000e+00> : vector<256x256xf32>
    %58 = tpu.matmul %57, %56, %cst_39 {dimension_numbers = #tpu.dot_dimension_numbers<[1], [0], [0], [1], [0, 0, 1, 1], [], []>} : vector<256x256xbf16>, vector<256x256xbf16>, vector<256x256xf32> -> vector<256x256xf32>
    %c6 = arith.constant 6 : index
    %c0_40 = arith.constant 0 : index
    %59 = vector.load %arg4[%c6, %c0_40] : memref<8x256xf32, #tpu.memory_space<vmem>>, vector<1x256xf32>
    %60 = vector.broadcast %59 : vector<1x256xf32> to vector<256x256xf32>
    %61 = arith.addf %58, %60 : vector<256x256xf32>
    %cst_41 = arith.constant 0.000000e+00 : f32
    %62 = vector.broadcast %cst_41 : f32 to vector<256x256xf32>
    %63 = arith.maximumf %61, %62 : vector<256x256xf32>
    %64 = arith.addf %45, %63 : vector<256x256xf32>
    %c7 = arith.constant 7 : index
    %c0_42 = arith.constant 0 : index
    %65 = vector.load %arg4[%c7, %c0_42] : memref<8x256xf32, #tpu.memory_space<vmem>>, vector<1x256xf32>
    %66 = vector.broadcast %65 : vector<1x256xf32> to vector<256x256xf32>
    %67 = arith.mulf %64, %66 : vector<256x256xf32>
    %cst_43 = arith.constant dense<0.000000e+00> : vector<256xf32>
    %68 = vector.multi_reduction <add>, %67, %cst_43 [1] : vector<256x256xf32> to vector<256xf32>
    %69 = vector.shape_cast %68 : vector<256xf32> to vector<256x1xf32>
    %c0_44 = arith.constant 0 : index
    %c0_45 = arith.constant 0 : index
    %70 = vector.load %arg5[%c0_44, %c0_45] : memref<1x1xf32, #tpu.memory_space<vmem>>, vector<1x1xf32>
    %71 = vector.broadcast %70 : vector<1x1xf32> to vector<256x1xf32>
    %72 = arith.addf %69, %71 : vector<256x1xf32>
    %cst_46 = arith.constant 0.000000e+00 : f32
    %73 = vector.broadcast %cst_46 : f32 to vector<256x1xf32>
    %74 = arith.subf %73, %72 : vector<256x1xf32>
    %75 = math.exp %74 : vector<256x1xf32>
    %cst_47 = arith.constant 1.000000e+00 : f32
    %76 = vector.broadcast %cst_47 : f32 to vector<256x1xf32>
    %77 = arith.addf %76, %75 : vector<256x1xf32>
    %cst_48 = arith.constant 1.000000e+00 : f32
    %78 = vector.broadcast %cst_48 : f32 to vector<256x1xf32>
    %79 = arith.divf %78, %77 : vector<256x1xf32>
    %c0_49 = arith.constant 0 : index
    %c0_50 = arith.constant 0 : index
    %80 = vector.load %arg6[%c0_49, %c0_50] : memref<256x1xf32, #tpu.memory_space<vmem>>, vector<256x1xf32>
    tpu.vector_store %arg6[%c0_49, %c0_50], %79 {strides = array<i32>} : memref<256x1xf32, #tpu.memory_space<vmem>>, vector<256x1xf32>,
    return
  }
  func.func @transform_0(%arg0: i32) -> (i32, i32) {
    %c0_i32 = arith.constant 0 : i32
    %c0_i32_0 = arith.constant 0 : i32
    return %arg0, %c0_i32 : i32, i32
  }
  func.func @transform_1(%arg0: i32) -> (i32, i32) {
    %c0_i32 = arith.constant 0 : i32
    %c0_i32_0 = arith.constant 0 : i32
    %c0_i32_1 = arith.constant 0 : i32
    return %c0_i32, %c0_i32_0 : i32, i32
  }
  func.func @transform_2(%arg0: i32) -> (i32, i32, i32) {
    %c0_i32 = arith.constant 0 : i32
    %c0_i32_0 = arith.constant 0 : i32
    %c0_i32_1 = arith.constant 0 : i32
    %c0_i32_2 = arith.constant 0 : i32
    return %c0_i32, %c0_i32_0, %c0_i32_1 : i32, i32, i32
  }
  func.func @transform_3(%arg0: i32) -> (i32, i32) {
    %c0_i32 = arith.constant 0 : i32
    %c0_i32_0 = arith.constant 0 : i32
    %c0_i32_1 = arith.constant 0 : i32
    return %c0_i32, %c0_i32_0 : i32, i32
  }
  func.func @transform_4(%arg0: i32) -> (i32, i32) {
    %c0_i32 = arith.constant 0 : i32
    %c0_i32_0 = arith.constant 0 : i32
    %c0_i32_1 = arith.constant 0 : i32
    return %c0_i32, %c0_i32_0 : i32, i32
  }
  func.func @transform_5(%arg0: i32) -> (i32, i32) {
    %c0_i32 = arith.constant 0 : i32
    %c0_i32_0 = arith.constant 0 : i32
    return %arg0, %c0_i32 : i32, i32
  }
}

</mosaic_0001>

<llo_original>
// kernel: tpu_custom_call.1
$region0: #{tpu_custom_call.1}
  #allocation0 [shape = 'u32[]', space=smem, size = 0x4, offset = 0x4, fixed_abs, tag = 'smem constant byte address 0x4 - core index']
  #allocation1 [shape = 'u32[144,128]{1,0:T(1,128)}', space=vmem, size = 0x12000, scoped, tag = 'internal scratch']
  #allocation2 [shape = 'f32[1,1]{1,0:T(1,128)S(1)}', space=vmem, size = 0x200, scoped, tag = 'scoped memory for tpu_custom_call.1']
  %s0 = inlined_call_operand.vmem [shape: f32[512,16], index: 0, kind: input, shape index: {}]
  %s1 = inlined_call_operand.vmem [shape: bf16[16,256], index: 1, kind: input, shape index: {}]
  %s2 = inlined_call_operand.hbm [shape: bf16[6,256,256], index: 2, kind: input, shape index: {}]
  %s3 = inlined_call_operand.vmem [shape: f32[8,256], index: 3, kind: input, shape index: {}]
  %s4 = inlined_call_operand.<no memory space> [shape: f32[1,1], index: 4, kind: input, shape index: {}]
  %s5 = inlined_call_operand.vmem [shape: f32[512,1], index: 5, kind: output, shape index: {}]
  %s6 = sld [smem:[#allocation0]]
  $region57: #{tpu_custom_call.1} parent=0
    _
  %s8 = ssub.s32 1, %s6
  %s9 = scalar_select 0, %s8, %s6
  %v10 = vstv %s4
  %11 = vst [vmem:[#allocation2] sm:$0x1] %v10
  $region1: #{tpu_custom_call.1} parent=0
    #allocation3 [shape = 'u8[786432]{0}', space=vmem, size = 0xc0000, scoped, tag = 'input window, operand 2, single buffered']
    #allocation4 [shape = 's32[2]{0}', space=sflag, size = 0x8, scoped, tag = 'scoped memory for tpu_custom_call.1']
    %12 = vsyncpa [#allocation4], 0
    loop: start=0, step=1, limit=4
    $region2: #{tpu_custom_call.1} parent=1 // loop_pre_header
      _
    $region3: #{tpu_custom_call.1} parent=1 // loop_header
      %s14 = sphi 0, %s18
      %p15 = scmp.ge.s32.totalorder %s14, 4
      %s24 = sphi 0, %s26
      %s27 = sphi 0, %s24
      %s28 = sphi 0, %s27
      %s44 = sphi 0, %s28
      %s48 = sphi 0, %s48
      %s50 = sphi 0, %s48
      %s51 = sphi 0, %s50
      %s65 = sphi 0, %s51
      %s69 = sphi 0, %s69
      %s71 = sphi 0, %s69
      %s72 = sphi 0, %s71
      %s86 = sphi 0, %s72
      %s90 = sphi 0, %s90
      %s92 = sphi 0, %s90
      %s93 = sphi 0, %s92
      %s107 = sphi 0, %s93
      %s111 = sphi 0, %s111
      %s113 = sphi 0, %s111
      %s114 = sphi 0, %s113
      %s128 = sphi 0, %s114
      %s134 = sphi 0, %s136
      %s137 = sphi 0, %s134
      %s138 = sphi 0, %s137
      %s154 = sphi 0, %s138
    $region4: #{tpu_custom_call.1} parent=1 // loop_header_branch
      %17 = sbr.rel (%p15) target = $region8
    $region5: #{tpu_custom_call.1} parent=1 // loop_body
      %s19 = ssub.s32 %s14, 1
      %s20 = ssub.s32 %s14, 2
      %s21 = sadd.s32 %s14, 1
      %s22 = ssub.s32 %s14, %s21
      %p23 = scmp.eq.s32.totalorder %s22, 0
      %s25 = sadd.s32 %s24, 1
      %s26 = scalar_select %p23, %s24, %s25
      %p29 = pneg %p23
      %p30 = scmp.eq.s32.totalorder %s14, 1
      %p31 = por %p29, %p30
      %p32 = scmp.ne.s32.totalorder %s24, %s27
      %p33 = scmp.eq.s32.totalorder %s14, 0
      %p34 = por %p32, %p33
      %p35 = scmp.ne.s32.totalorder %s24, %s27
      %p36 = scmp.eq.s32.totalorder %s19, 1
      %p37 = por %p35, %p36
      %p38 = scmp.ne.s32.totalorder %s27, %s28
      %p39 = scmp.eq.s32.totalorder %s19, 0
      %p40 = por %p38, %p39
      %p41 = scmp.ne.s32.totalorder %s27, %s28
      %p42 = scmp.eq.s32.totalorder %s20, 1
      %p43 = por %p41, %p42
      %p45 = scmp.ne.s32.totalorder %s28, %s44
      %p46 = scmp.eq.s32.totalorder %s20, 0
      %p47 = por %p45, %p46
      %s49 = sadd.s32 %s48, 1
      %p52 = scmp.eq.s32.totalorder %s14, 1
      %p53 = scmp.ne.s32.totalorder %s48, %s50
      %p54 = scmp.eq.s32.totalorder %s14, 0
      %p55 = por %p53, %p54
      %p56 = scmp.ne.s32.totalorder %s48, %s50
      %p57 = scmp.eq.s32.totalorder %s19, 1
      %p58 = por %p56, %p57
      %p59 = scmp.ne.s32.totalorder %s50, %s51
      %p60 = scmp.eq.s32.totalorder %s19, 0
      %p61 = por %p59, %p60
      %p62 = scmp.ne.s32.totalorder %s50, %s51
      %p63 = scmp.eq.s32.totalorder %s20, 1
      %p64 = por %p62, %p63
      %p66 = scmp.ne.s32.totalorder %s51, %s65
      %p67 = scmp.eq.s32.totalorder %s20, 0
      %p68 = por %p66, %p67
      %s70 = sadd.s32 %s69, 1
      %p73 = scmp.eq.s32.totalorder %s14, 1
      %p74 = scmp.ne.s32.totalorder %s69, %s71
      %p75 = scmp.eq.s32.totalorder %s14, 0
      %p76 = por %p74, %p75
      %p77 = scmp.ne.s32.totalorder %s69, %s71
      %p78 = scmp.eq.s32.totalorder %s19, 1
      %p79 = por %p77, %p78
      %p80 = scmp.ne.s32.totalorder %s71, %s72
      %p81 = scmp.eq.s32.totalorder %s19, 0
      %p82 = por %p80, %p81
      %p83 = scmp.ne.s32.totalorder %s71, %s72
      %p84 = scmp.eq.s32.totalorder %s20, 1
      %p85 = por %p83, %p84
      %p87 = scmp.ne.s32.totalorder %s72, %s86
      %p88 = scmp.eq.s32.totalorder %s20, 0
      %p89 = por %p87, %p88
      %s91 = sadd.s32 %s90, 1
      %p94 = scmp.eq.s32.totalorder %s14, 1
      %p95 = scmp.ne.s32.totalorder %s90, %s92
      %p96 = scmp.eq.s32.totalorder %s14, 0
      %p97 = por %p95, %p96
      %p98 = scmp.ne.s32.totalorder %s90, %s92
      %p99 = scmp.eq.s32.totalorder %s19, 1
      %p100 = por %p98, %p99
      %p101 = scmp.ne.s32.totalorder %s92, %s93
      %p102 = scmp.eq.s32.totalorder %s19, 0
      %p103 = por %p101, %p102
      %p104 = scmp.ne.s32.totalorder %s92, %s93
      %p105 = scmp.eq.s32.totalorder %s20, 1
      %p106 = por %p104, %p105
      %p108 = scmp.ne.s32.totalorder %s93, %s107
      %p109 = scmp.eq.s32.totalorder %s20, 0
      %p110 = por %p108, %p109
      %s112 = sadd.s32 %s111, 1
      %p115 = scmp.eq.s32.totalorder %s14, 1
      %p116 = scmp.ne.s32.totalorder %s111, %s113
      %p117 = scmp.eq.s32.totalorder %s14, 0
      %p118 = por %p116, %p117
      %p119 = scmp.ne.s32.totalorder %s111, %s113
      %p120 = scmp.eq.s32.totalorder %s19, 1
      %p121 = por %p119, %p120
      %p122 = scmp.ne.s32.totalorder %s113, %s114
      %p123 = scmp.eq.s32.totalorder %s19, 0
      %p124 = por %p122, %p123
      %p125 = scmp.ne.s32.totalorder %s113, %s114
      %p126 = scmp.eq.s32.totalorder %s20, 1
      %p127 = por %p125, %p126
      %p129 = scmp.ne.s32.totalorder %s114, %s128
      %p130 = scmp.eq.s32.totalorder %s20, 0
      %p131 = por %p129, %p130
      %s132 = ssub.s32 %s14, %s21
      %p133 = scmp.eq.s32.totalorder %s132, 0
      %s135 = sadd.s32 %s134, 1
      %s136 = scalar_select %p133, %s134, %s135
      %p139 = pneg %p133
      %p140 = scmp.eq.s32.totalorder %s14, 1
      %p141 = por %p139, %p140
      %p142 = scmp.ne.s32.totalorder %s134, %s137
      %p143 = scmp.eq.s32.totalorder %s14, 0
      %p144 = por %p142, %p143
      %p145 = scmp.ne.s32.totalorder %s134, %s137
      %p146 = scmp.eq.s32.totalorder %s19, 1
      %p147 = por %p145, %p146
      %p148 = scmp.ne.s32.totalorder %s137, %s138
      %p149 = scmp.eq.s32.totalorder %s19, 0
      %p150 = por %p148, %p149
      %p151 = scmp.ne.s32.totalorder %s137, %s138
      %p152 = scmp.eq.s32.totalorder %s20, 1
      %p153 = por %p151, %p152
      %p155 = scmp.ne.s32.totalorder %s138, %s154
      %p156 = scmp.eq.s32.totalorder %s20, 0
      %p157 = por %p155, %p156
      %p158 = scmp.le.s32.totalorder 1, %s14
      %p159 = scmp.lt.s32.totalorder %s14, 3
      %p160 = pnand %p158, %p159
      %p161 = pneg %p160
      // Predicated region
      $region9: #{tpu_custom_call.1} parent=5 // pred_check
        _
      $region10: #{tpu_custom_call.1} parent=5 // pred_check_branch
        %163 = sbr.rel (%p160) target = $region12
      $region11: #{tpu_custom_call.1} parent=5 // pred_region
        %s164 = ssub.s32 %s14, 1
        // Predicated region
        $region13: #{tpu_custom_call.1} parent=11 // pred_check
          %p165 = pneg %p61
        $region14: #{tpu_custom_call.1} parent=11 // pred_check_branch
          %167 = sbr.rel (%p165) target = $region16
        $region15: #{tpu_custom_call.1} parent=11 // pred_region
          _
        $region16: #{tpu_custom_call.1} parent=11 // pred_fallthru
          _
        // Predicated region
        $region17: #{tpu_custom_call.1} parent=11 // pred_check
          %p168 = pneg %p82
        $region18: #{tpu_custom_call.1} parent=11 // pred_check_branch
          %170 = sbr.rel (%p168) target = $region20
        $region19: #{tpu_custom_call.1} parent=11 // pred_region
          %s172 = ssub.s32 24576, 24576
          %173 = vsyncadd [#allocation4], %s172
          %s174 = sshll.u32 [#allocation3], 4
          %s175 = int_to_ptr.vmem [resolvable:$true] %s174
          %180 = dma.hbm_to_vmem [thread:$0]  %s2, 24576, %s175, [#allocation4], 128, 128, 8
        $region20: #{tpu_custom_call.1} parent=11 // pred_fallthru
          _
        // Predicated region
        $region21: #{tpu_custom_call.1} parent=11 // pred_check
          %p181 = pneg %p103
        $region22: #{tpu_custom_call.1} parent=11 // pred_check_branch
          %183 = sbr.rel (%p181) target = $region24
        $region23: #{tpu_custom_call.1} parent=11 // pred_region
          _
        $region24: #{tpu_custom_call.1} parent=11 // pred_fallthru
          _
        // Predicated region
        $region25: #{tpu_custom_call.1} parent=11 // pred_check
          %p184 = pneg %p124
        $region26: #{tpu_custom_call.1} parent=11 // pred_check_branch
          %186 = sbr.rel (%p184) target = $region28
        $region27: #{tpu_custom_call.1} parent=11 // pred_region
          _
        $region28: #{tpu_custom_call.1} parent=11 // pred_fallthru
          _
      $region12: #{tpu_custom_call.1} parent=5 // pred_fallthru
        _
      %p187 = scmp.lt.s32.totalorder %s14, 2
      // Predicated region
      $region29: #{tpu_custom_call.1} parent=5 // pred_check
        %p188 = pneg %p187
      $region30: #{tpu_custom_call.1} parent=5 // pred_check_branch
        %190 = sbr.rel (%p188) target = $region32
      $region31: #{tpu_custom_call.1} parent=5 // pred_region
        // Predicated region
        $region33: #{tpu_custom_call.1} parent=31 // pred_check
          %p191 = pneg %p34
        $region34: #{tpu_custom_call.1} parent=31 // pred_check_branch
          %193 = sbr.rel (%p191) target = $region36
        $region35: #{tpu_custom_call.1} parent=31 // pred_region
          %s194 = smul.u32 32, %s14
          %p195 = scmp.lt.s32.totalorder %s194, 63
          %s196 = scalar_select %p195, %s194, 63
          %s197 = smul.addr %s196, 8
          %s198 = scalar_lea.vmem %s0, %s197
          %s199 = smul.u32 32, %s14
        $region36: #{tpu_custom_call.1} parent=31 // pred_fallthru
          _
      $region32: #{tpu_custom_call.1} parent=5 // pred_fallthru
        _
      %p200 = scmp.le.s32.totalorder 1, %s14
      %p201 = scmp.lt.s32.totalorder %s14, 3
      %p202 = pnand %p200, %p201
      %p203 = pneg %p202
      // Predicated region
      $region37: #{tpu_custom_call.1} parent=5 // pred_check
        _
      $region38: #{tpu_custom_call.1} parent=5 // pred_check_branch
        %205 = sbr.rel (%p202) target = $region40
      $region39: #{tpu_custom_call.1} parent=5 // pred_region
        %s206 = ssub.s32 %s14, 1
        // Predicated region
        $region41: #{tpu_custom_call.1} parent=39 // pred_check
          %p207 = pneg %p82
        $region42: #{tpu_custom_call.1} parent=39 // pred_check_branch
          %209 = sbr.rel (%p207) target = $region44
        $region43: #{tpu_custom_call.1} parent=39 // pred_region
          %210 = dma.done [#allocation4], 24576
        $region44: #{tpu_custom_call.1} parent=39 // pred_fallthru
          _
        %s211 = smul.u32 32, %s19
        %p212 = scmp.lt.s32.totalorder %s211, 63
        %s213 = scalar_select %p212, %s211, 63
        %s214 = smul.addr %s213, 8
        %s215 = scalar_lea.vmem %s0, %s214
        %p216 = pneg %p40
        %p217 = pneg %p37
        %p218 = pneg %p61
        %p219 = pneg %p58
        %p220 = pneg %p82
        %p221 = pneg %p79
        %p222 = pneg %p103
        %p223 = pneg %p100
        %p224 = pneg %p124
        %p225 = pneg %p121
        %p226 = pneg %p150
        %p227 = pneg %p147
        %s228 = smul.u32 32, %s19
        %p229 = scmp.lt.s32.totalorder %s228, 63
        %s230 = scalar_select %p229, %s228, 63
        %s231 = smul.addr %s230, 8
        %s232 = scalar_lea.vmem %s5, %s231
        %s233 = smul.u32 32, %s19
        %p234 = scmp.lt.s32.totalorder %s233, 63
        %s235 = scalar_select %p234, %s233, 63
        %s236 = smul.addr %s235, 8
        %s237 = scalar_lea.vmem %s0, %s236
        %s238 = smul.u32 32, %s19
        %s239 = smul.u32 32, %s19
        %p240 = scmp.lt.s32.totalorder %s239, 63
        %s241 = scalar_select %p240, %s239, 63
        %s242 = smul.addr %s241, 8
        %s243 = scalar_lea.vmem %s5, %s242
        %s244 = smul.u32 32, %s19
        %v246 = vld [vmem:[%s237] sm:$0xff]
        %v247 = vld [vmem:[%s237 + $0x8] sm:$0xff]
        %v248 = vld [vmem:[%s237 + $0x10] sm:$0xff]
        %v249 = vld [vmem:[%s237 + $0x18] sm:$0xff]
        %v250 = vld [vmem:[%s237 + $0x20] sm:$0xff]
        %v251 = vld [vmem:[%s237 + $0x28] sm:$0xff]
        %v252 = vld [vmem:[%s237 + $0x30] sm:$0xff]
        %v253 = vld [vmem:[%s237 + $0x38] sm:$0xff]
        %v254 = vld [vmem:[%s237 + $0x40] sm:$0xff]
        %v255 = vld [vmem:[%s237 + $0x48] sm:$0xff]
        %v256 = vld [vmem:[%s237 + $0x50] sm:$0xff]
        %v257 = vld [vmem:[%s237 + $0x58] sm:$0xff]
        %v258 = vld [vmem:[%s237 + $0x60] sm:$0xff]
        %v259 = vld [vmem:[%s237 + $0x68] sm:$0xff]
        %v260 = vld [vmem:[%s237 + $0x70] sm:$0xff]
        %v261 = vld [vmem:[%s237 + $0x78] sm:$0xff]
        %v262 = vld [vmem:[%s237 + $0x80] sm:$0xff]
        %v263 = vld [vmem:[%s237 + $0x88] sm:$0xff]
        %v264 = vld [vmem:[%s237 + $0x90] sm:$0xff]
        %v265 = vld [vmem:[%s237 + $0x98] sm:$0xff]
        %v266 = vld [vmem:[%s237 + $0xa0] sm:$0xff]
        %v267 = vld [vmem:[%s237 + $0xa8] sm:$0xff]
        %v268 = vld [vmem:[%s237 + $0xb0] sm:$0xff]
        %v269 = vld [vmem:[%s237 + $0xb8] sm:$0xff]
        %v270 = vld [vmem:[%s237 + $0xc0] sm:$0xff]
        %v271 = vld [vmem:[%s237 + $0xc8] sm:$0xff]
        %v272 = vld [vmem:[%s237 + $0xd0] sm:$0xff]
        %v273 = vld [vmem:[%s237 + $0xd8] sm:$0xff]
        %v274 = vld [vmem:[%s237 + $0xe0] sm:$0xff]
        %v275 = vld [vmem:[%s237 + $0xe8] sm:$0xff]
        %v276 = vld [vmem:[%s237 + $0xf0] sm:$0xff]
        %v277 = vld [vmem:[%s237 + $0xf8] sm:$0xff]
        %v278 = vld [vmem:[%s1] sm:$0xff]
        %v279 = vld [vmem:[%s1 + $0x8] sm:$0xff]
        %v280 = vpack.c.bf16 %v247, %v246
        %v281 = vpack.c.bf16 %v249, %v248
        %v282 = vpack.c.bf16 %v251, %v250
        %v283 = vpack.c.bf16 %v253, %v252
        %v284 = vpack.c.bf16 %v255, %v254
        %v285 = vpack.c.bf16 %v257, %v256
        %v286 = vpack.c.bf16 %v259, %v258
        %v287 = vpack.c.bf16 %v261, %v260
        %v288 = vpack.c.bf16 %v263, %v262
        %v289 = vpack.c.bf16 %v265, %v264
        %v290 = vpack.c.bf16 %v267, %v266
        %v291 = vpack.c.bf16 %v269, %v268
        %v292 = vpack.c.bf16 %v271, %v270
        %v293 = vpack.c.bf16 %v273, %v272
        %v294 = vpack.c.bf16 %v275, %v274
        %v295 = vpack.c.bf16 %v277, %v276
        %v296 = vld [vmem:[%s3] ss:$8 sm:$0x3]
        %v298 = vlaneseq
        %v299 = vshrl.u32 %v298, 7
        %v300 = vsub.s32 0, %v299
        %v301 = vrot.slane %v296, %v300
        %v302 = vlaneseq
        %v303 = vshrl.u32 %v302, 7
        %v304 = vsub.s32 1, %v303
        %v305 = vrot.slane %v296, %v304
        %v310 = vunpack.c.l.b16 %v278
        %v311 = vunpack.c.h.b16 %v278
        %v312 = vunpack.c.l.b16 %v279
        %v313 = vunpack.c.h.b16 %v279
        %v314 = vpack.c.b16 %v312, %v310
        %v315 = vpack.c.b16 %v313, %v311
        %vm318 = vcmask 130048
        %v320 = vsel %vm318, %v280, 0
        %v323 = vsel %vm318, %v281, 0
        %v326 = vsel %vm318, %v282, 0
        %v329 = vsel %vm318, %v283, 0
        %v332 = vsel %vm318, %v284, 0
        %v335 = vsel %vm318, %v285, 0
        %v338 = vsel %vm318, %v286, 0
        %v341 = vsel %vm318, %v287, 0
        %v344 = vsel %vm318, %v288, 0
        %v347 = vsel %vm318, %v289, 0
        %v350 = vsel %vm318, %v290, 0
        %v353 = vsel %vm318, %v291, 0
        %v356 = vsel %vm318, %v292, 0
        %v359 = vsel %vm318, %v293, 0
        %v362 = vsel %vm318, %v294, 0
        %v365 = vsel %vm318, %v295, 0
        %367 = vmatprep.subr.bf16.mxu0 %v315
        %368 = vmatpush1.bf16.msra.mxu0 %v314
        %369 = vmatprep.subr.bf16.mxu0 0
        %370 = vmatpush1.bf16.msra.mxu0 0
        %371 = vmatprep.subr.bf16.mxu0 0
        %372 = vmatpush1.bf16.msra.mxu0 0
        %373 = vmatprep.subr.bf16.mxu0 0
        %374 = vmatpush1.bf16.msra.mxu0 0
        %375 = vmatprep.subr.bf16.mxu0 0
        %376 = vmatpush1.bf16.msra.mxu0 0
        %377 = vmatprep.subr.bf16.mxu0 0
        %378 = vmatpush1.bf16.msra.mxu0 0
        %379 = vmatprep.subr.bf16.mxu0 0
        %380 = vmatpush1.bf16.msra.mxu0 0
        %381 = vmatprep.subr.bf16.mxu0 0
        %382 = vmatpush1.bf16.msra.mxu0 0
        %383 = vmatprep.subr.bf16.mxu0 0
        %384 = vmatpush1.bf16.msra.mxu0 0
        %385 = vmatprep.subr.bf16.mxu0 0
        %386 = vmatpush1.bf16.msra.mxu0 0
        %387 = vmatprep.subr.bf16.mxu0 0
        %388 = vmatpush1.bf16.msra.mxu0 0
        %389 = vmatprep.subr.bf16.mxu0 0
        %390 = vmatpush1.bf16.msra.mxu0 0
        %391 = vmatprep.subr.bf16.mxu0 0
        %392 = vmatpush1.bf16.msra.mxu0 0
        %393 = vmatprep.subr.bf16.mxu0 0
        %394 = vmatpush1.bf16.msra.mxu0 0
        %395 = vmatprep.subr.bf16.mxu0 0
        %396 = vmatpush1.bf16.msra.mxu0 0
        %397 = vmatprep.subr.bf16.mxu0 0
        %398 = vmatpush1.bf16.msra.mxu0 0
        %399 = vmatprep.mubr.bf16.mxu0 0
        %400 = vmatmul.mubr.bf16.gmra.mrb[0].mxu0 %v320
        %v401 = vpop.f32.mrb[0].mxu0
        %v402 = vadd.f32 %v301, %v401
        %v403 = vpop.f32.mrb[0].mxu0
        %v404 = vadd.f32 %v305, %v403
        %v405 = vpop.f32.mrb[0].mxu0
        %v406 = vadd.f32 %v301, %v405
        %v407 = vpop.f32.mrb[0].mxu0
        %v408 = vadd.f32 %v305, %v407
        %409 = vmatprep.mubr.bf16.mxu0 0
        %410 = vmatmul.mubr.bf16.gmra.mrb[0].mxu0 %v323
        %v411 = vpop.f32.mrb[0].mxu0
        %v412 = vadd.f32 %v301, %v411
        %v413 = vpop.f32.mrb[0].mxu0
        %v414 = vadd.f32 %v305, %v413
        %v415 = vpop.f32.mrb[0].mxu0
        %v416 = vadd.f32 %v301, %v415
        %v417 = vpop.f32.mrb[0].mxu0
        %v418 = vadd.f32 %v305, %v417
        %419 = vmatprep.mubr.bf16.mxu0 0
        %420 = vmatmul.mubr.bf16.gmra.mrb[0].mxu0 %v326
        %v421 = vpop.f32.mrb[0].mxu0
        %v422 = vadd.f32 %v301, %v421
        %v423 = vpop.f32.mrb[0].mxu0
        %v424 = vadd.f32 %v305, %v423
        %v425 = vpop.f32.mrb[0].mxu0
        %v426 = vadd.f32 %v301, %v425
        %v427 = vpop.f32.mrb[0].mxu0
        %v428 = vadd.f32 %v305, %v427
        %429 = vmatprep.mubr.bf16.mxu0 0
        %430 = vmatmul.mubr.bf16.gmra.mrb[0].mxu0 %v329
        %v431 = vpop.f32.mrb[0].mxu0
        %v432 = vadd.f32 %v301, %v431
        %v433 = vpop.f32.mrb[0].mxu0
        %v434 = vadd.f32 %v305, %v433
        %v435 = vpop.f32.mrb[0].mxu0
        %v436 = vadd.f32 %v301, %v435
        %v437 = vpop.f32.mrb[0].mxu0
        %v438 = vadd.f32 %v305, %v437
        %439 = vmatprep.mubr.bf16.mxu0 0
        %440 = vmatmul.mubr.bf16.gmra.mrb[0].mxu0 %v332
        %v441 = vpop.f32.mrb[0].mxu0
        %v442 = vadd.f32 %v301, %v441
        %v443 = vpop.f32.mrb[0].mxu0
        %v444 = vadd.f32 %v305, %v443
        %v445 = vpop.f32.mrb[0].mxu0
        %v446 = vadd.f32 %v301, %v445
        %v447 = vpop.f32.mrb[0].mxu0
        %v448 = vadd.f32 %v305, %v447
        %449 = vmatprep.mubr.bf16.mxu0 0
        %450 = vmatmul.mubr.bf16.gmra.mrb[0].mxu0 %v335
        %v451 = vpop.f32.mrb[0].mxu0
        %v452 = vadd.f32 %v301, %v451
        %v453 = vpop.f32.mrb[0].mxu0
        %v454 = vadd.f32 %v305, %v453
        %v455 = vpop.f32.mrb[0].mxu0
        %v456 = vadd.f32 %v301, %v455
        %v457 = vpop.f32.mrb[0].mxu0
        %v458 = vadd.f32 %v305, %v457
        %459 = vmatprep.mubr.bf16.mxu0 0
        %460 = vmatmul.mubr.bf16.gmra.mrb[0].mxu0 %v338
        %v461 = vpop.f32.mrb[0].mxu0
        %v462 = vadd.f32 %v301, %v461
        %v463 = vpop.f32.mrb[0].mxu0
        %v464 = vadd.f32 %v305, %v463
        %v465 = vpop.f32.mrb[0].mxu0
        %v466 = vadd.f32 %v301, %v465
        %v467 = vpop.f32.mrb[0].mxu0
        %v468 = vadd.f32 %v305, %v467
        %469 = vmatprep.mubr.bf16.mxu0 0
        %470 = vmatmul.mubr.bf16.gmra.mrb[0].mxu0 %v341
        %v471 = vpop.f32.mrb[0].mxu0
        %v472 = vadd.f32 %v301, %v471
        %v473 = vpop.f32.mrb[0].mxu0
        %v474 = vadd.f32 %v305, %v473
        %v475 = vpop.f32.mrb[0].mxu0
        %v476 = vadd.f32 %v301, %v475
        %v477 = vpop.f32.mrb[0].mxu0
        %v478 = vadd.f32 %v305, %v477
        %479 = vmatprep.mubr.bf16.mxu0 0
        %480 = vmatmul.mubr.bf16.gmra.mrb[0].mxu0 %v344
        %v481 = vpop.f32.mrb[0].mxu0
        %v482 = vadd.f32 %v301, %v481
        %v483 = vpop.f32.mrb[0].mxu0
        %v484 = vadd.f32 %v305, %v483
        %v485 = vpop.f32.mrb[0].mxu0
        %v486 = vadd.f32 %v301, %v485
        %v487 = vpop.f32.mrb[0].mxu0
        %v488 = vadd.f32 %v305, %v487
        %489 = vmatprep.mubr.bf16.mxu0 0
        %490 = vmatmul.mubr.bf16.gmra.mrb[0].mxu0 %v347
        %v491 = vpop.f32.mrb[0].mxu0
        %v492 = vadd.f32 %v301, %v491
        %v493 = vpop.f32.mrb[0].mxu0
        %v494 = vadd.f32 %v305, %v493
        %v495 = vpop.f32.mrb[0].mxu0
        %v496 = vadd.f32 %v301, %v495
        %v497 = vpop.f32.mrb[0].mxu0
        %v498 = vadd.f32 %v305, %v497
        %499 = vmatprep.mubr.bf16.mxu0 0
        %500 = vmatmul.mubr.bf16.gmra.mrb[0].mxu0 %v350
        %v501 = vpop.f32.mrb[0].mxu0
        %v502 = vadd.f32 %v301, %v501
        %v503 = vpop.f32.mrb[0].mxu0
        %v504 = vadd.f32 %v305, %v503
        %v505 = vpop.f32.mrb[0].mxu0
        %v506 = vadd.f32 %v301, %v505
        %v507 = vpop.f32.mrb[0].mxu0
        %v508 = vadd.f32 %v305, %v507
        %509 = vmatprep.mubr.bf16.mxu0 0
        %510 = vmatmul.mubr.bf16.gmra.mrb[0].mxu0 %v353
        %v511 = vpop.f32.mrb[0].mxu0
        %v512 = vadd.f32 %v301, %v511
        %v513 = vpop.f32.mrb[0].mxu0
        %v514 = vadd.f32 %v305, %v513
        %v515 = vpop.f32.mrb[0].mxu0
        %v516 = vadd.f32 %v301, %v515
        %v517 = vpop.f32.mrb[0].mxu0
        %v518 = vadd.f32 %v305, %v517
        %519 = vmatprep.mubr.bf16.mxu0 0
        %520 = vmatmul.mubr.bf16.gmra.mrb[0].mxu0 %v356
        %v521 = vpop.f32.mrb[0].mxu0
        %v522 = vadd.f32 %v301, %v521
        %v523 = vpop.f32.mrb[0].mxu0
        %v524 = vadd.f32 %v305, %v523
        %v525 = vpop.f32.mrb[0].mxu0
        %v526 = vadd.f32 %v301, %v525
        %v527 = vpop.f32.mrb[0].mxu0
        %v528 = vadd.f32 %v305, %v527
        %529 = vmatprep.mubr.bf16.mxu0 0
        %530 = vmatmul.mubr.bf16.gmra.mrb[0].mxu0 %v359
        %v531 = vpop.f32.mrb[0].mxu0
        %v532 = vadd.f32 %v301, %v531
        %v533 = vpop.f32.mrb[0].mxu0
        %v534 = vadd.f32 %v305, %v533
        %v535 = vpop.f32.mrb[0].mxu0
        %v536 = vadd.f32 %v301, %v535
        %v537 = vpop.f32.mrb[0].mxu0
        %v538 = vadd.f32 %v305, %v537
        %539 = vmatprep.mubr.bf16.mxu0 0
        %540 = vmatmul.mubr.bf16.gmra.mrb[0].mxu0 %v362
        %v541 = vpop.f32.mrb[0].mxu0
        %v542 = vadd.f32 %v301, %v541
        %v543 = vpop.f32.mrb[0].mxu0
        %v544 = vadd.f32 %v305, %v543
        %v545 = vpop.f32.mrb[0].mxu0
        %v546 = vadd.f32 %v301, %v545
        %v547 = vpop.f32.mrb[0].mxu0
        %v548 = vadd.f32 %v305, %v547
        %549 = vmatprep.mubr.bf16.mxu0 0
        %550 = vmatmul.mubr.bf16.gmra.mrb[0].mxu0 %v365
        %v551 = vpop.f32.mrb[0].mxu0
        %v552 = vadd.f32 %v301, %v551
        %v553 = vpop.f32.mrb[0].mxu0
        %v554 = vadd.f32 %v305, %v553
        %v555 = vpop.f32.mrb[0].mxu0
        %v556 = vadd.f32 %v301, %v555
        %v557 = vpop.f32.mrb[0].mxu0
        %v558 = vadd.f32 %v305, %v557
        %559 = vdwg.mxu0
        %v560 = vmax.f32 %v402, 0.0
        %v561 = vmax.f32 %v404, 0.0
        %v562 = vmax.f32 %v406, 0.0
        %v563 = vmax.f32 %v408, 0.0
        %v564 = vmax.f32 %v412, 0.0
        %v565 = vmax.f32 %v414, 0.0
        %v566 = vmax.f32 %v416, 0.0
        %v567 = vmax.f32 %v418, 0.0
        %v568 = vmax.f32 %v422, 0.0
        %v569 = vmax.f32 %v424, 0.0
        %v570 = vmax.f32 %v426, 0.0
        %v571 = vmax.f32 %v428, 0.0
        %v572 = vmax.f32 %v432, 0.0
        %v573 = vmax.f32 %v434, 0.0
        %v574 = vmax.f32 %v436, 0.0
        %v575 = vmax.f32 %v438, 0.0
        %v576 = vmax.f32 %v442, 0.0
        %v577 = vmax.f32 %v444, 0.0
        %v578 = vmax.f32 %v446, 0.0
        %v579 = vmax.f32 %v448, 0.0
        %v580 = vmax.f32 %v452, 0.0
        %v581 = vmax.f32 %v454, 0.0
        %v582 = vmax.f32 %v456, 0.0
        %v583 = vmax.f32 %v458, 0.0
        %v584 = vmax.f32 %v462, 0.0
        %v585 = vmax.f32 %v464, 0.0
        %v586 = vmax.f32 %v466, 0.0
        %v587 = vmax.f32 %v468, 0.0
        %v588 = vmax.f32 %v472, 0.0
        %v589 = vmax.f32 %v474, 0.0
        %v590 = vmax.f32 %v476, 0.0
        %v591 = vmax.f32 %v478, 0.0
        %v592 = vmax.f32 %v482, 0.0
        %v593 = vmax.f32 %v484, 0.0
        %v594 = vmax.f32 %v486, 0.0
        %v595 = vmax.f32 %v488, 0.0
        %v596 = vmax.f32 %v492, 0.0
        %v597 = vmax.f32 %v494, 0.0
        %v598 = vmax.f32 %v496, 0.0
        %v599 = vmax.f32 %v498, 0.0
        %v600 = vmax.f32 %v502, 0.0
        %v601 = vmax.f32 %v504, 0.0
        %v602 = vmax.f32 %v506, 0.0
        %v603 = vmax.f32 %v508, 0.0
        %v604 = vmax.f32 %v512, 0.0
        %v605 = vmax.f32 %v514, 0.0
        %v606 = vmax.f32 %v516, 0.0
        %v607 = vmax.f32 %v518, 0.0
        %v608 = vmax.f32 %v522, 0.0
        %v609 = vmax.f32 %v524, 0.0
        %v610 = vmax.f32 %v526, 0.0
        %v611 = vmax.f32 %v528, 0.0
        %v612 = vmax.f32 %v532, 0.0
        %v613 = vmax.f32 %v534, 0.0
        %v614 = vmax.f32 %v536, 0.0
        %v615 = vmax.f32 %v538, 0.0
        %v616 = vmax.f32 %v542, 0.0
        %v617 = vmax.f32 %v544, 0.0
        %v618 = vmax.f32 %v546, 0.0
        %v619 = vmax.f32 %v548, 0.0
        %v620 = vmax.f32 %v552, 0.0
        %v621 = vmax.f32 %v554, 0.0
        %v622 = vmax.f32 %v556, 0.0
        %v623 = vmax.f32 %v558, 0.0
        %v624 = vld [vmem:[#allocation3] sm:$0xff]
        %v625 = vld [vmem:[#allocation3 + $0x8] sm:$0xff]
        %v626 = vld [vmem:[#allocation3 + $0x10] sm:$0xff]
        %v627 = vld [vmem:[#allocation3 + $0x18] sm:$0xff]
        %v628 = vld [vmem:[#allocation3 + $0x20] sm:$0xff]
        %v629 = vld [vmem:[#allocation3 + $0x28] sm:$0xff]
        %v630 = vld [vmem:[#allocation3 + $0x30] sm:$0xff]
        %v631 = vld [vmem:[#allocation3 + $0x38] sm:$0xff]
        %v632 = vld [vmem:[#allocation3 + $0x40] sm:$0xff]
        %v633 = vld [vmem:[#allocation3 + $0x48] sm:$0xff]
        %v634 = vld [vmem:[#allocation3 + $0x50] sm:$0xff]
        %v635 = vld [vmem:[#allocation3 + $0x58] sm:$0xff]
        %v636 = vld [vmem:[#allocation3 + $0x60] sm:$0xff]
        %v637 = vld [vmem:[#allocation3 + $0x68] sm:$0xff]
        %v638 = vld [vmem:[#allocation3 + $0x70] sm:$0xff]
        %v639 = vld [vmem:[#allocation3 + $0x78] sm:$0xff]
        %v640 = vld [vmem:[#allocation3 + $0x80] sm:$0xff]
        %v641 = vld [vmem:[#allocation3 + $0x88] sm:$0xff]
        %v642 = vld [vmem:[#allocation3 + $0x90] sm:$0xff]
        %v643 = vld [vmem:[#allocation3 + $0x98] sm:$0xff]
        %v644 = vld [vmem:[#allocation3 + $0xa0] sm:$0xff]
        %v645 = vld [vmem:[#allocation3 + $0xa8] sm:$0xff]
        %v646 = vld [vmem:[#allocation3 + $0xb0] sm:$0xff]
        %v647 = vld [vmem:[#allocation3 + $0xb8] sm:$0xff]
        %v648 = vld [vmem:[#allocation3 + $0xc0] sm:$0xff]
        %v649 = vld [vmem:[#allocation3 + $0xc8] sm:$0xff]
        %v650 = vld [vmem:[#allocation3 + $0xd0] sm:$0xff]
        %v651 = vld [vmem:[#allocation3 + $0xd8] sm:$0xff]
        %v652 = vld [vmem:[#allocation3 + $0xe0] sm:$0xff]
        %v653 = vld [vmem:[#allocation3 + $0xe8] sm:$0xff]
        %v654 = vld [vmem:[#allocation3 + $0xf0] sm:$0xff]
        %v655 = vld [vmem:[#allocation3 + $0xf8] sm:$0xff]
        %v656 = vpack.c.bf16 %v562, %v560
        %v657 = vpack.c.bf16 %v563, %v561
        %v658 = vpack.c.bf16 %v566, %v564
        %v659 = vpack.c.bf16 %v567, %v565
        %v660 = vpack.c.bf16 %v570, %v568
        %v661 = vpack.c.bf16 %v571, %v569
        %v662 = vpack.c.bf16 %v574, %v572
        %v663 = vpack.c.bf16 %v575, %v573
        %v664 = vpack.c.bf16 %v578, %v576
        %v665 = vpack.c.bf16 %v579, %v577
        %v666 = vpack.c.bf16 %v582, %v580
        %v667 = vpack.c.bf16 %v583, %v581
        %v668 = vpack.c.bf16 %v586, %v584
        %v669 = vpack.c.bf16 %v587, %v585
        %v670 = vpack.c.bf16 %v590, %v588
        %v671 = vpack.c.bf16 %v591, %v589
        %v672 = vpack.c.bf16 %v594, %v592
        %v673 = vpack.c.bf16 %v595, %v593
        %v674 = vpack.c.bf16 %v598, %v596
        %v675 = vpack.c.bf16 %v599, %v597
        %v676 = vpack.c.bf16 %v602, %v600
        %v677 = vpack.c.bf16 %v603, %v601
        %v678 = vpack.c.bf16 %v606, %v604
        %v679 = vpack.c.bf16 %v607, %v605
        %v680 = vpack.c.bf16 %v610, %v608
        %v681 = vpack.c.bf16 %v611, %v609
        %v682 = vpack.c.bf16 %v614, %v612
        %v683 = vpack.c.bf16 %v615, %v613
        %v684 = vpack.c.bf16 %v618, %v616
        %v685 = vpack.c.bf16 %v619, %v617
        %v686 = vpack.c.bf16 %v622, %v620
        %v687 = vpack.c.bf16 %v623, %v621
        %s688 = scalar_lea.vmem %s3, 1
        %v689 = vld [vmem:[%s688] ss:$8 sm:$0x3]
        %v691 = vlaneseq
        %v692 = vshrl.u32 %v691, 7
        %v693 = vsub.s32 0, %v692
        %v694 = vrot.slane %v689, %v693
        %v695 = vlaneseq
        %v696 = vshrl.u32 %v695, 7
        %v697 = vsub.s32 1, %v696
        %v698 = vrot.slane %v689, %v697
        %v733 = vunpack.c.l.b16 %v624
        %v734 = vunpack.c.h.b16 %v624
        %v735 = vunpack.c.l.b16 %v625
        %v736 = vunpack.c.h.b16 %v625
        %v737 = vunpack.c.l.b16 %v626
        %v738 = vunpack.c.h.b16 %v626
        %v739 = vunpack.c.l.b16 %v627
        %v740 = vunpack.c.h.b16 %v627
        %v741 = vunpack.c.l.b16 %v628
        %v742 = vunpack.c.h.b16 %v628
        %v743 = vunpack.c.l.b16 %v629
        %v744 = vunpack.c.h.b16 %v629
        %v745 = vunpack.c.l.b16 %v630
        %v746 = vunpack.c.h.b16 %v630
        %v747 = vunpack.c.l.b16 %v631
        %v748 = vunpack.c.h.b16 %v631
        %v749 = vunpack.c.l.b16 %v632
        %v750 = vunpack.c.h.b16 %v632
        %v751 = vunpack.c.l.b16 %v633
        %v752 = vunpack.c.h.b16 %v633
        %v753 = vunpack.c.l.b16 %v634
        %v754 = vunpack.c.h.b16 %v634
        %v755 = vunpack.c.l.b16 %v635
        %v756 = vunpack.c.h.b16 %v635
        %v757 = vunpack.c.l.b16 %v636
        %v758 = vunpack.c.h.b16 %v636
        %v759 = vunpack.c.l.b16 %v637
        %v760 = vunpack.c.h.b16 %v637
        %v761 = vunpack.c.l.b16 %v638
        %v762 = vunpack.c.h.b16 %v638
        %v763 = vunpack.c.l.b16 %v639
        %v764 = vunpack.c.h.b16 %v639
        %v765 = vunpack.c.l.b16 %v640
        %v766 = vunpack.c.h.b16 %v640
        %v767 = vunpack.c.l.b16 %v641
        %v768 = vunpack.c.h.b16 %v641
        %v769 = vunpack.c.l.b16 %v642
        %v770 = vunpack.c.h.b16 %v642
        %v771 = vunpack.c.l.b16 %v643
        %v772 = vunpack.c.h.b16 %v643
        %v773 = vunpack.c.l.b16 %v644
        %v774 = vunpack.c.h.b16 %v644
        %v775 = vunpack.c.l.b16 %v645
        %v776 = vunpack.c.h.b16 %v645
        %v777 = vunpack.c.l.b16 %v646
        %v778 = vunpack.c.h.b16 %v646
        %v779 = vunpack.c.l.b16 %v647
        %v780 = vunpack.c.h.b16 %v647
        %v781 = vunpack.c.l.b16 %v648
        %v782 = vunpack.c.h.b16 %v648
        %v783 = vunpack.c.l.b16 %v649
        %v784 = vunpack.c.h.b16 %v649
        %v785 = vunpack.c.l.b16 %v650
        %v786 = vunpack.c.h.b16 %v650
        %v787 = vunpack.c.l.b16 %v651
        %v788 = vunpack.c.h.b16 %v651
        %v789 = vunpack.c.l.b16 %v652
        %v790 = vunpack.c.h.b16 %v652
        %v791 = vunpack.c.l.b16 %v653
        %v792 = vunpack.c.h.b16 %v653
        %v793 = vunpack.c.l.b16 %v654
        %v794 = vunpack.c.h.b16 %v654
        %v795 = vunpack.c.l.b16 %v655
        %v796 = vunpack.c.h.b16 %v655
        %v797 = vpack.c.b16 %v735, %v733
        %v798 = vpack.c.b16 %v736, %v734
        %v799 = vpack.c.b16 %v739, %v737
        %v800 = vpack.c.b16 %v740, %v738
        %v801 = vpack.c.b16 %v743, %v741
        %v802 = vpack.c.b16 %v744, %v742
        %v803 = vpack.c.b16 %v747, %v745
        %v804 = vpack.c.b16 %v748, %v746
        %v805 = vpack.c.b16 %v751, %v749
        %v806 = vpack.c.b16 %v752, %v750
        %v807 = vpack.c.b16 %v755, %v753
        %v808 = vpack.c.b16 %v756, %v754
        %v809 = vpack.c.b16 %v759, %v757
        %v810 = vpack.c.b16 %v760, %v758
        %v811 = vpack.c.b16 %v763, %v761
        %v812 = vpack.c.b16 %v764, %v762
        %v813 = vpack.c.b16 %v767, %v765
        %v814 = vpack.c.b16 %v768, %v766
        %v815 = vpack.c.b16 %v771, %v769
        %v816 = vpack.c.b16 %v772, %v770
        %v817 = vpack.c.b16 %v775, %v773
        %v818 = vpack.c.b16 %v776, %v774
        %v819 = vpack.c.b16 %v779, %v777
        %v820 = vpack.c.b16 %v780, %v778
        %v821 = vpack.c.b16 %v783, %v781
        %v822 = vpack.c.b16 %v784, %v782
        %v823 = vpack.c.b16 %v787, %v785
        %v824 = vpack.c.b16 %v788, %v786
        %v825 = vpack.c.b16 %v791, %v789
        %v826 = vpack.c.b16 %v792, %v790
        %v827 = vpack.c.b16 %v795, %v793
        %v828 = vpack.c.b16 %v796, %v794
        %861 = vmatprep.subr.bf16.mxu0 %v798
        %862 = vmatpush1.bf16.msra.mxu0 %v797
        %863 = vmatprep.subr.bf16.mxu0 %v800
        %864 = vmatpush1.bf16.msra.mxu0 %v799
        %865 = vmatprep.subr.bf16.mxu0 %v802
        %866 = vmatpush1.bf16.msra.mxu0 %v801
        %867 = vmatprep.subr.bf16.mxu0 %v804
        %868 = vmatpush1.bf16.msra.mxu0 %v803
        %869 = vmatprep.subr.bf16.mxu0 %v806
        %870 = vmatpush1.bf16.msra.mxu0 %v805
        %871 = vmatprep.subr.bf16.mxu0 %v808
        %872 = vmatpush1.bf16.msra.mxu0 %v807
        %873 = vmatprep.subr.bf16.mxu0 %v810
        %874 = vmatpush1.bf16.msra.mxu0 %v809
        %875 = vmatprep.subr.bf16.mxu0 %v812
        %876 = vmatpush1.bf16.msra.mxu0 %v811
        %877 = vmatprep.subr.bf16.mxu0 %v814
        %878 = vmatpush1.bf16.msra.mxu0 %v813
        %879 = vmatprep.subr.bf16.mxu0 %v816
        %880 = vmatpush1.bf16.msra.mxu0 %v815
        %881 = vmatprep.subr.bf16.mxu0 %v818
        %882 = vmatpush1.bf16.msra.mxu0 %v817
        %883 = vmatprep.subr.bf16.mxu0 %v820
        %884 = vmatpush1.bf16.msra.mxu0 %v819
        %885 = vmatprep.subr.bf16.mxu0 %v822
        %886 = vmatpush1.bf16.msra.mxu0 %v821
        %887 = vmatprep.subr.bf16.mxu0 %v824
        %888 = vmatpush1.bf16.msra.mxu0 %v823
        %889 = vmatprep.subr.bf16.mxu0 %v826
        %890 = vmatpush1.bf16.msra.mxu0 %v825
        %891 = vmatprep.subr.bf16.mxu0 %v828
        %892 = vmatpush1.bf16.msra.mxu0 %v827
        %893 = vmatprep.mubr.bf16.mxu0 %v657
        %894 = vmatmul.mubr.bf16.gmra.mrb[0].mxu0 %v656
        %v895 = vpop.f32.mrb[0].mxu0
        %v896 = vadd.f32 %v694, %v895
        %v897 = vpop.f32.mrb[0].mxu0
        %v898 = vadd.f32 %v698, %v897
        %v899 = vpop.f32.mrb[0].mxu0
        %v900 = vadd.f32 %v694, %v899
        %v901 = vpop.f32.mrb[0].mxu0
        %v902 = vadd.f32 %v698, %v901
        %903 = vmatprep.mubr.bf16.mxu0 %v659
        %904 = vmatmul.mubr.bf16.gmra.mrb[0].mxu0 %v658
        %v905 = vpop.f32.mrb[0].mxu0
        %v906 = vadd.f32 %v694, %v905
        %v907 = vpop.f32.mrb[0].mxu0
        %v908 = vadd.f32 %v698, %v907
        %v909 = vpop.f32.mrb[0].mxu0
        %v910 = vadd.f32 %v694, %v909
        %v911 = vpop.f32.mrb[0].mxu0
        %v912 = vadd.f32 %v698, %v911
        %913 = vmatprep.mubr.bf16.mxu0 %v661
        %914 = vmatmul.mubr.bf16.gmra.mrb[0].mxu0 %v660
        %v915 = vpop.f32.mrb[0].mxu0
        %v916 = vadd.f32 %v694, %v915
        %v917 = vpop.f32.mrb[0].mxu0
        %v918 = vadd.f32 %v698, %v917
        %v919 = vpop.f32.mrb[0].mxu0
        %v920 = vadd.f32 %v694, %v919
        %v921 = vpop.f32.mrb[0].mxu0
        %v922 = vadd.f32 %v698, %v921
        %923 = vmatprep.mubr.bf16.mxu0 %v663
        %924 = vmatmul.mubr.bf16.gmra.mrb[0].mxu0 %v662
        %v925 = vpop.f32.mrb[0].mxu0
        %v926 = vadd.f32 %v694, %v925
        %v927 = vpop.f32.mrb[0].mxu0
        %v928 = vadd.f32 %v698, %v927
        %v929 = vpop.f32.mrb[0].mxu0
        %v930 = vadd.f32 %v694, %v929
        %v931 = vpop.f32.mrb[0].mxu0
        %v932 = vadd.f32 %v698, %v931
        %933 = vmatprep.mubr.bf16.mxu0 %v665
        %934 = vmatmul.mubr.bf16.gmra.mrb[0].mxu0 %v664
        %v935 = vpop.f32.mrb[0].mxu0
        %v936 = vadd.f32 %v694, %v935
        %v937 = vpop.f32.mrb[0].mxu0
        %v938 = vadd.f32 %v698, %v937
        %v939 = vpop.f32.mrb[0].mxu0
        %v940 = vadd.f32 %v694, %v939
        %v941 = vpop.f32.mrb[0].mxu0
        %v942 = vadd.f32 %v698, %v941
        %943 = vmatprep.mubr.bf16.mxu0 %v667
        %944 = vmatmul.mubr.bf16.gmra.mrb[0].mxu0 %v666
        %v945 = vpop.f32.mrb[0].mxu0
        %v946 = vadd.f32 %v694, %v945
        %v947 = vpop.f32.mrb[0].mxu0
        %v948 = vadd.f32 %v698, %v947
        %v949 = vpop.f32.mrb[0].mxu0
        %v950 = vadd.f32 %v694, %v949
        %v951 = vpop.f32.mrb[0].mxu0
        %v952 = vadd.f32 %v698, %v951
        %953 = vmatprep.mubr.bf16.mxu0 %v669
        %954 = vmatmul.mubr.bf16.gmra.mrb[0].mxu0 %v668
        %v955 = vpop.f32.mrb[0].mxu0
        %v956 = vadd.f32 %v694, %v955
        %v957 = vpop.f32.mrb[0].mxu0
        %v958 = vadd.f32 %v698, %v957
        %v959 = vpop.f32.mrb[0].mxu0
        %v960 = vadd.f32 %v694, %v959
        %v961 = vpop.f32.mrb[0].mxu0
        %v962 = vadd.f32 %v698, %v961
        %963 = vmatprep.mubr.bf16.mxu0 %v671
        %964 = vmatmul.mubr.bf16.gmra.mrb[0].mxu0 %v670
        %v965 = vpop.f32.mrb[0].mxu0
        %v966 = vadd.f32 %v694, %v965
        %v967 = vpop.f32.mrb[0].mxu0
        %v968 = vadd.f32 %v698, %v967
        %v969 = vpop.f32.mrb[0].mxu0
        %v970 = vadd.f32 %v694, %v969
        %v971 = vpop.f32.mrb[0].mxu0
        %v972 = vadd.f32 %v698, %v971
        %973 = vmatprep.mubr.bf16.mxu0 %v673
        %974 = vmatmul.mubr.bf16.gmra.mrb[0].mxu0 %v672
        %v975 = vpop.f32.mrb[0].mxu0
        %v976 = vadd.f32 %v694, %v975
        %v977 = vpop.f32.mrb[0].mxu0
        %v978 = vadd.f32 %v698, %v977
        %v979 = vpop.f32.mrb[0].mxu0
        %v980 = vadd.f32 %v694, %v979
        %v981 = vpop.f32.mrb[0].mxu0
        %v982 = vadd.f32 %v698, %v981
        %983 = vmatprep.mubr.bf16.mxu0 %v675
        %984 = vmatmul.mubr.bf16.gmra.mrb[0].mxu0 %v674
        %v985 = vpop.f32.mrb[0].mxu0
        %v986 = vadd.f32 %v694, %v985
        %v987 = vpop.f32.mrb[0].mxu0
        %v988 = vadd.f32 %v698, %v987
        %v989 = vpop.f32.mrb[0].mxu0
        %v990 = vadd.f32 %v694, %v989
        %v991 = vpop.f32.mrb[0].mxu0
        %v992 = vadd.f32 %v698, %v991
        %993 = vmatprep.mubr.bf16.mxu0 %v677
        %994 = vmatmul.mubr.bf16.gmra.mrb[0].mxu0 %v676
        %v995 = vpop.f32.mrb[0].mxu0
        %v996 = vadd.f32 %v694, %v995
        %v997 = vpop.f32.mrb[0].mxu0
        %v998 = vadd.f32 %v698, %v997
        %v999 = vpop.f32.mrb[0].mxu0
        %v1000 = vadd.f32 %v694, %v999
        %v1001 = vpop.f32.mrb[0].mxu0
        %v1002 = vadd.f32 %v698, %v1001
        %1003 = vmatprep.mubr.bf16.mxu0 %v679
        %1004 = vmatmul.mubr.bf16.gmra.mrb[0].mxu0 %v678
        %v1005 = vpop.f32.mrb[0].mxu0
        %v1006 = vadd.f32 %v694, %v1005
        %v1007 = vpop.f32.mrb[0].mxu0
        %v1008 = vadd.f32 %v698, %v1007
        %v1009 = vpop.f32.mrb[0].mxu0
        %v1010 = vadd.f32 %v694, %v1009
        %v1011 = vpop.f32.mrb[0].mxu0
        %v1012 = vadd.f32 %v698, %v1011
        %1013 = vmatprep.mubr.bf16.mxu0 %v681
        %1014 = vmatmul.mubr.bf16.gmra.mrb[0].mxu0 %v680
        %v1015 = vpop.f32.mrb[0].mxu0
        %v1016 = vadd.f32 %v694, %v1015
        %v1017 = vpop.f32.mrb[0].mxu0
        %v1018 = vadd.f32 %v698, %v1017
        %v1019 = vpop.f32.mrb[0].mxu0
        %v1020 = vadd.f32 %v694, %v1019
        %v1021 = vpop.f32.mrb[0].mxu0
        %v1022 = vadd.f32 %v698, %v1021
        %1023 = vmatprep.mubr.bf16.mxu0 %v683
        %1024 = vmatmul.mubr.bf16.gmra.mrb[0].mxu0 %v682
        %v1025 = vpop.f32.mrb[0].mxu0
        %v1026 = vadd.f32 %v694, %v1025
        %v1027 = vpop.f32.mrb[0].mxu0
        %v1028 = vadd.f32 %v698, %v1027
        %v1029 = vpop.f32.mrb[0].mxu0
        %v1030 = vadd.f32 %v694, %v1029
        %v1031 = vpop.f32.mrb[0].mxu0
        %v1032 = vadd.f32 %v698, %v1031
        %1033 = vmatprep.mubr.bf16.mxu0 %v685
        %1034 = vmatmul.mubr.bf16.gmra.mrb[0].mxu0 %v684
        %v1035 = vpop.f32.mrb[0].mxu0
        %v1036 = vadd.f32 %v694, %v1035
        %v1037 = vpop.f32.mrb[0].mxu0
        %v1038 = vadd.f32 %v698, %v1037
        %v1039 = vpop.f32.mrb[0].mxu0
        %v1040 = vadd.f32 %v694, %v1039
        %v1041 = vpop.f32.mrb[0].mxu0
        %v1042 = vadd.f32 %v698, %v1041
        %1043 = vmatprep.mubr.bf16.mxu0 %v687
        %1044 = vmatmul.mubr.bf16.gmra.mrb[0].mxu0 %v686
        %v1045 = vpop.f32.mrb[0].mxu0
        %v1046 = vadd.f32 %v694, %v1045
        %v1047 = vpop.f32.mrb[0].mxu0
        %v1048 = vadd.f32 %v698, %v1047
        %v1049 = vpop.f32.mrb[0].mxu0
        %v1050 = vadd.f32 %v694, %v1049
        %v1051 = vpop.f32.mrb[0].mxu0
        %v1052 = vadd.f32 %v698, %v1051
        %1053 = vdwg.mxu0
        %v1054 = vmax.f32 %v896, 0.0
        %v1055 = vmax.f32 %v898, 0.0
        %v1056 = vmax.f32 %v900, 0.0
        %v1057 = vmax.f32 %v902, 0.0
        %v1058 = vmax.f32 %v906, 0.0
        %v1059 = vmax.f32 %v908, 0.0
        %v1060 = vmax.f32 %v910, 0.0
        %v1061 = vmax.f32 %v912, 0.0
        %v1062 = vmax.f32 %v916, 0.0
        %v1063 = vmax.f32 %v918, 0.0
        %v1064 = vmax.f32 %v920, 0.0
        %v1065 = vmax.f32 %v922, 0.0
        %v1066 = vmax.f32 %v926, 0.0
        %v1067 = vmax.f32 %v928, 0.0
        %v1068 = vmax.f32 %v930, 0.0
        %v1069 = vmax.f32 %v932, 0.0
        %v1070 = vmax.f32 %v936, 0.0
        %v1071 = vmax.f32 %v938, 0.0
        %v1072 = vmax.f32 %v940, 0.0
        %v1073 = vmax.f32 %v942, 0.0
        %v1074 = vmax.f32 %v946, 0.0
        %v1075 = vmax.f32 %v948, 0.0
        %v1076 = vmax.f32 %v950, 0.0
        %v1077 = vmax.f32 %v952, 0.0
        %v1078 = vmax.f32 %v956, 0.0
        %v1079 = vmax.f32 %v958, 0.0
        %v1080 = vmax.f32 %v960, 0.0
        %v1081 = vmax.f32 %v962, 0.0
        %v1082 = vmax.f32 %v966, 0.0
        %v1083 = vmax.f32 %v968, 0.0
        %v1084 = vmax.f32 %v970, 0.0
        %v1085 = vmax.f32 %v972, 0.0
        %v1086 = vmax.f32 %v976, 0.0
        %v1087 = vmax.f32 %v978, 0.0
        %v1088 = vmax.f32 %v980, 0.0
        %v1089 = vmax.f32 %v982, 0.0
        %v1090 = vmax.f32 %v986, 0.0
        %v1091 = vmax.f32 %v988, 0.0
        %v1092 = vmax.f32 %v990, 0.0
        %v1093 = vmax.f32 %v992, 0.0
        %v1094 = vmax.f32 %v996, 0.0
        %v1095 = vmax.f32 %v998, 0.0
        %v1096 = vmax.f32 %v1000, 0.0
        %v1097 = vmax.f32 %v1002, 0.0
        %v1098 = vmax.f32 %v1006, 0.0
        %v1099 = vmax.f32 %v1008, 0.0
        %v1100 = vmax.f32 %v1010, 0.0
        %v1101 = vmax.f32 %v1012, 0.0
        %v1102 = vmax.f32 %v1016, 0.0
        %v1103 = vmax.f32 %v1018, 0.0
        %v1104 = vmax.f32 %v1020, 0.0
        %v1105 = vmax.f32 %v1022, 0.0
        %v1106 = vmax.f32 %v1026, 0.0
        %v1107 = vmax.f32 %v1028, 0.0
        %v1108 = vmax.f32 %v1030, 0.0
        %v1109 = vmax.f32 %v1032, 0.0
        %v1110 = vmax.f32 %v1036, 0.0
        %v1111 = vmax.f32 %v1038, 0.0
        %v1112 = vmax.f32 %v1040, 0.0
        %v1113 = vmax.f32 %v1042, 0.0
        %v1114 = vmax.f32 %v1046, 0.0
        %v1115 = vmax.f32 %v1048, 0.0
        %v1116 = vmax.f32 %v1050, 0.0
        %v1117 = vmax.f32 %v1052, 0.0
        %s1118 = scalar_lea.vmem [#allocation3], 256
        %v1119 = vld [vmem:[%s1118] sm:$0xff]
        %v1120 = vld [vmem:[%s1118 + $0x8] sm:$0xff]
        %v1121 = vld [vmem:[%s1118 + $0x10] sm:$0xff]
        %v1122 = vld [vmem:[%s1118 + $0x18] sm:$0xff]
        %v1123 = vld [vmem:[%s1118 + $0x20] sm:$0xff]
        %v1124 = vld [vmem:[%s1118 + $0x28] sm:$0xff]
        %v1125 = vld [vmem:[%s1118 + $0x30] sm:$0xff]
        %v1126 = vld [vmem:[%s1118 + $0x38] sm:$0xff]
        %v1127 = vld [vmem:[%s1118 + $0x40] sm:$0xff]
        %v1128 = vld [vmem:[%s1118 + $0x48] sm:$0xff]
        %v1129 = vld [vmem:[%s1118 + $0x50] sm:$0xff]
        %v1130 = vld [vmem:[%s1118 + $0x58] sm:$0xff]
        %v1131 = vld [vmem:[%s1118 + $0x60] sm:$0xff]
        %v1132 = vld [vmem:[%s1118 + $0x68] sm:$0xff]
        %v1133 = vld [vmem:[%s1118 + $0x70] sm:$0xff]
        %v1134 = vld [vmem:[%s1118 + $0x78] sm:$0xff]
        %v1135 = vld [vmem:[%s1118 + $0x80] sm:$0xff]
        %v1136 = vld [vmem:[%s1118 + $0x88] sm:$0xff]
        %v1137 = vld [vmem:[%s1118 + $0x90] sm:$0xff]
        %v1138 = vld [vmem:[%s1118 + $0x98] sm:$0xff]
        %v1139 = vld [vmem:[%s1118 + $0xa0] sm:$0xff]
        %v1140 = vld [vmem:[%s1118 + $0xa8] sm:$0xff]
        %v1141 = vld [vmem:[%s1118 + $0xb0] sm:$0xff]
        %v1142 = vld [vmem:[%s1118 + $0xb8] sm:$0xff]
        %v1143 = vld [vmem:[%s1118 + $0xc0] sm:$0xff]
        %v1144 = vld [vmem:[%s1118 + $0xc8] sm:$0xff]
        %v1145 = vld [vmem:[%s1118 + $0xd0] sm:$0xff]
        %v1146 = vld [vmem:[%s1118 + $0xd8] sm:$0xff]
        %v1147 = vld [vmem:[%s1118 + $0xe0] sm:$0xff]
        %v1148 = vld [vmem:[%s1118 + $0xe8] sm:$0xff]
        %v1149 = vld [vmem:[%s1118 + $0xf0] sm:$0xff]
        %v1150 = vld [vmem:[%s1118 + $0xf8] sm:$0xff]
        %v1151 = vpack.c.bf16 %v1056, %v1054
        %v1152 = vpack.c.bf16 %v1057, %v1055
        %v1153 = vpack.c.bf16 %v1060, %v1058
        %v1154 = vpack.c.bf16 %v1061, %v1059
        %v1155 = vpack.c.bf16 %v1064, %v1062
        %v1156 = vpack.c.bf16 %v1065, %v1063
        %v1157 = vpack.c.bf16 %v1068, %v1066
        %v1158 = vpack.c.bf16 %v1069, %v1067
        %v1159 = vpack.c.bf16 %v1072, %v1070
        %v1160 = vpack.c.bf16 %v1073, %v1071
        %v1161 = vpack.c.bf16 %v1076, %v1074
        %v1162 = vpack.c.bf16 %v1077, %v1075
        %v1163 = vpack.c.bf16 %v1080, %v1078
        %v1164 = vpack.c.bf16 %v1081, %v1079
        %v1165 = vpack.c.bf16 %v1084, %v1082
        %v1166 = vpack.c.bf16 %v1085, %v1083
        %v1167 = vpack.c.bf16 %v1088, %v1086
        %v1168 = vpack.c.bf16 %v1089, %v1087
        %v1169 = vpack.c.bf16 %v1092, %v1090
        %v1170 = vpack.c.bf16 %v1093, %v1091
        %v1171 = vpack.c.bf16 %v1096, %v1094
        %v1172 = vpack.c.bf16 %v1097, %v1095
        %v1173 = vpack.c.bf16 %v1100, %v1098
        %v1174 = vpack.c.bf16 %v1101, %v1099
        %v1175 = vpack.c.bf16 %v1104, %v1102
        %v1176 = vpack.c.bf16 %v1105, %v1103
        %v1177 = vpack.c.bf16 %v1108, %v1106
        %v1178 = vpack.c.bf16 %v1109, %v1107
        %v1179 = vpack.c.bf16 %v1112, %v1110
        %v1180 = vpack.c.bf16 %v1113, %v1111
        %v1181 = vpack.c.bf16 %v1116, %v1114
        %v1182 = vpack.c.bf16 %v1117, %v1115
        %s1183 = scalar_lea.vmem %s3, 2
        %v1184 = vld [vmem:[%s1183] ss:$8 sm:$0x3]
        %v1186 = vlaneseq
        %v1187 = vshrl.u32 %v1186, 7
        %v1188 = vsub.s32 0, %v1187
        %v1189 = vrot.slane %v1184, %v1188
        %v1190 = vlaneseq
        %v1191 = vshrl.u32 %v1190, 7
        %v1192 = vsub.s32 1, %v1191
        %v1193 = vrot.slane %v1184, %v1192
        %v1228 = vunpack.c.l.b16 %v1119
        %v1229 = vunpack.c.h.b16 %v1119
        %v1230 = vunpack.c.l.b16 %v1120
        %v1231 = vunpack.c.h.b16 %v1120
        %v1232 = vunpack.c.l.b16 %v1121
        %v1233 = vunpack.c.h.b16 %v1121
        %v1234 = vunpack.c.l.b16 %v1122
        %v1235 = vunpack.c.h.b16 %v1122
        %v1236 = vunpack.c.l.b16 %v1123
        %v1237 = vunpack.c.h.b16 %v1123
        %v1238 = vunpack.c.l.b16 %v1124
        %v1239 = vunpack.c.h.b16 %v1124
        %v1240 = vunpack.c.l.b16 %v1125
        %v1241 = vunpack.c.h.b16 %v1125
        %v1242 = vunpack.c.l.b16 %v1126
        %v1243 = vunpack.c.h.b16 %v1126
        %v1244 = vunpack.c.l.b16 %v1127
        %v1245 = vunpack.c.h.b16 %v1127
        %v1246 = vunpack.c.l.b16 %v1128
        %v1247 = vunpack.c.h.b16 %v1128
        %v1248 = vunpack.c.l.b16 %v1129
        %v1249 = vunpack.c.h.b16 %v1129
        %v1250 = vunpack.c.l.b16 %v1130
        %v1251 = vunpack.c.h.b16 %v1130
        %v1252 = vunpack.c.l.b16 %v1131
        %v1253 = vunpack.c.h.b16 %v1131
        %v1254 = vunpack.c.l.b16 %v1132
        %v1255 = vunpack.c.h.b16 %v1132
        %v1256 = vunpack.c.l.b16 %v1133
        %v1257 = vunpack.c.h.b16 %v1133
        %v1258 = vunpack.c.l.b16 %v1134
        %v1259 = vunpack.c.h.b16 %v1134
        %v1260 = vunpack.c.l.b16 %v1135
        %v1261 = vunpack.c.h.b16 %v1135
        %v1262 = vunpack.c.l.b16 %v1136
        %v1263 = vunpack.c.h.b16 %v1136
        %v1264 = vunpack.c.l.b16 %v1137
        %v1265 = vunpack.c.h.b16 %v1137
        %v1266 = vunpack.c.l.b16 %v1138
        %v1267 = vunpack.c.h.b16 %v1138
        %v1268 = vunpack.c.l.b16 %v1139
        %v1269 = vunpack.c.h.b16 %v1139
        %v1270 = vunpack.c.l.b16 %v1140
        %v1271 = vunpack.c.h.b16 %v1140
        %v1272 = vunpack.c.l.b16 %v1141
        %v1273 = vunpack.c.h.b16 %v1141
        %v1274 = vunpack.c.l.b16 %v1142
        %v1275 = vunpack.c.h.b16 %v1142
        %v1276 = vunpack.c.l.b16 %v1143
        %v1277 = vunpack.c.h.b16 %v1143
        %v1278 = vunpack.c.l.b16 %v1144
        %v1279 = vunpack.c.h.b16 %v1144
        %v1280 = vunpack.c.l.b16 %v1145
        %v1281 = vunpack.c.h.b16 %v1145
        %v1282 = vunpack.c.l.b16 %v1146
        %v1283 = vunpack.c.h.b16 %v1146
        %v1284 = vunpack.c.l.b16 %v1147
        %v1285 = vunpack.c.h.b16 %v1147
        %v1286 = vunpack.c.l.b16 %v1148
        %v1287 = vunpack.c.h.b16 %v1148
        %v1288 = vunpack.c.l.b16 %v1149
        %v1289 = vunpack.c.h.b16 %v1149
        %v1290 = vunpack.c.l.b16 %v1150
        %v1291 = vunpack.c.h.b16 %v1150
        %v1292 = vpack.c.b16 %v1230, %v1228
        %v1293 = vpack.c.b16 %v1231, %v1229
        %v1294 = vpack.c.b16 %v1234, %v1232
        %v1295 = vpack.c.b16 %v1235, %v1233
        %v1296 = vpack.c.b16 %v1238, %v1236
        %v1297 = vpack.c.b16 %v1239, %v1237
        %v1298 = vpack.c.b16 %v1242, %v1240
        %v1299 = vpack.c.b16 %v1243, %v1241
        %v1300 = vpack.c.b16 %v1246, %v1244
        %v1301 = vpack.c.b16 %v1247, %v1245
        %v1302 = vpack.c.b16 %v1250, %v1248
        %v1303 = vpack.c.b16 %v1251, %v1249
        %v1304 = vpack.c.b16 %v1254, %v1252
        %v1305 = vpack.c.b16 %v1255, %v1253
        %v1306 = vpack.c.b16 %v1258, %v1256
        %v1307 = vpack.c.b16 %v1259, %v1257
        %v1308 = vpack.c.b16 %v1262, %v1260
        %v1309 = vpack.c.b16 %v1263, %v1261
        %v1310 = vpack.c.b16 %v1266, %v1264
        %v1311 = vpack.c.b16 %v1267, %v1265
        %v1312 = vpack.c.b16 %v1270, %v1268
        %v1313 = vpack.c.b16 %v1271, %v1269
        %v1314 = vpack.c.b16 %v1274, %v1272
        %v1315 = vpack.c.b16 %v1275, %v1273
        %v1316 = vpack.c.b16 %v1278, %v1276
        %v1317 = vpack.c.b16 %v1279, %v1277
        %v1318 = vpack.c.b16 %v1282, %v1280
        %v1319 = vpack.c.b16 %v1283, %v1281
        %v1320 = vpack.c.b16 %v1286, %v1284
        %v1321 = vpack.c.b16 %v1287, %v1285
        %v1322 = vpack.c.b16 %v1290, %v1288
        %v1323 = vpack.c.b16 %v1291, %v1289
        %1356 = vmatprep.subr.bf16.mxu0 %v1293
        %1357 = vmatpush1.bf16.msra.mxu0 %v1292
        %1358 = vmatprep.subr.bf16.mxu0 %v1295
        %1359 = vmatpush1.bf16.msra.mxu0 %v1294
        %1360 = vmatprep.subr.bf16.mxu0 %v1297
        %1361 = vmatpush1.bf16.msra.mxu0 %v1296
        %1362 = vmatprep.subr.bf16.mxu0 %v1299
        %1363 = vmatpush1.bf16.msra.mxu0 %v1298
        %1364 = vmatprep.subr.bf16.mxu0 %v1301
        %1365 = vmatpush1.bf16.msra.mxu0 %v1300
        %1366 = vmatprep.subr.bf16.mxu0 %v1303
        %1367 = vmatpush1.bf16.msra.mxu0 %v1302
        %1368 = vmatprep.subr.bf16.mxu0 %v1305
        %1369 = vmatpush1.bf16.msra.mxu0 %v1304
        %1370 = vmatprep.subr.bf16.mxu0 %v1307
        %1371 = vmatpush1.bf16.msra.mxu0 %v1306
        %1372 = vmatprep.subr.bf16.mxu0 %v1309
        %1373 = vmatpush1.bf16.msra.mxu0 %v1308
        %1374 = vmatprep.subr.bf16.mxu0 %v1311
        %1375 = vmatpush1.bf16.msra.mxu0 %v1310
        %1376 = vmatprep.subr.bf16.mxu0 %v1313
        %1377 = vmatpush1.bf16.msra.mxu0 %v1312
        %1378 = vmatprep.subr.bf16.mxu0 %v1315
        %1379 = vmatpush1.bf16.msra.mxu0 %v1314
        %1380 = vmatprep.subr.bf16.mxu0 %v1317
        %1381 = vmatpush1.bf16.msra.mxu0 %v1316
        %1382 = vmatprep.subr.bf16.mxu0 %v1319
        %1383 = vmatpush1.bf16.msra.mxu0 %v1318
        %1384 = vmatprep.subr.bf16.mxu0 %v1321
        %1385 = vmatpush1.bf16.msra.mxu0 %v1320
        %1386 = vmatprep.subr.bf16.mxu0 %v1323
        %1387 = vmatpush1.bf16.msra.mxu0 %v1322
        %1388 = vmatprep.mubr.bf16.mxu0 %v1152
        %1389 = vmatmul.mubr.bf16.gmra.mrb[0].mxu0 %v1151
        %v1390 = vpop.f32.mrb[0].mxu0
        %v1391 = vadd.f32 %v1189, %v1390
        %v1392 = vpop.f32.mrb[0].mxu0
        %v1393 = vadd.f32 %v1193, %v1392
        %v1394 = vpop.f32.mrb[0].mxu0
        %v1395 = vadd.f32 %v1189, %v1394
        %v1396 = vpop.f32.mrb[0].mxu0
        %v1397 = vadd.f32 %v1193, %v1396
        %1398 = vmatprep.mubr.bf16.mxu0 %v1154
        %1399 = vmatmul.mubr.bf16.gmra.mrb[0].mxu0 %v1153
        %v1400 = vpop.f32.mrb[0].mxu0
        %v1401 = vadd.f32 %v1189, %v1400
        %v1402 = vpop.f32.mrb[0].mxu0
        %v1403 = vadd.f32 %v1193, %v1402
        %v1404 = vpop.f32.mrb[0].mxu0
        %v1405 = vadd.f32 %v1189, %v1404
        %v1406 = vpop.f32.mrb[0].mxu0
        %v1407 = vadd.f32 %v1193, %v1406
        %1408 = vmatprep.mubr.bf16.mxu0 %v1156
        %1409 = vmatmul.mubr.bf16.gmra.mrb[0].mxu0 %v1155
        %v1410 = vpop.f32.mrb[0].mxu0
        %v1411 = vadd.f32 %v1189, %v1410
        %v1412 = vpop.f32.mrb[0].mxu0
        %v1413 = vadd.f32 %v1193, %v1412
        %v1414 = vpop.f32.mrb[0].mxu0
        %v1415 = vadd.f32 %v1189, %v1414
        %v1416 = vpop.f32.mrb[0].mxu0
        %v1417 = vadd.f32 %v1193, %v1416
        %1418 = vmatprep.mubr.bf16.mxu0 %v1158
        %1419 = vmatmul.mubr.bf16.gmra.mrb[0].mxu0 %v1157
        %v1420 = vpop.f32.mrb[0].mxu0
        %v1421 = vadd.f32 %v1189, %v1420
        %v1422 = vpop.f32.mrb[0].mxu0
        %v1423 = vadd.f32 %v1193, %v1422
        %v1424 = vpop.f32.mrb[0].mxu0
        %v1425 = vadd.f32 %v1189, %v1424
        %v1426 = vpop.f32.mrb[0].mxu0
        %v1427 = vadd.f32 %v1193, %v1426
        %1428 = vmatprep.mubr.bf16.mxu0 %v1160
        %1429 = vmatmul.mubr.bf16.gmra.mrb[0].mxu0 %v1159
        %v1430 = vpop.f32.mrb[0].mxu0
        %v1431 = vadd.f32 %v1189, %v1430
        %v1432 = vpop.f32.mrb[0].mxu0
        %v1433 = vadd.f32 %v1193, %v1432
        %v1434 = vpop.f32.mrb[0].mxu0
        %v1435 = vadd.f32 %v1189, %v1434
        %v1436 = vpop.f32.mrb[0].mxu0
        %v1437 = vadd.f32 %v1193, %v1436
        %1438 = vmatprep.mubr.bf16.mxu0 %v1162
        %1439 = vmatmul.mubr.bf16.gmra.mrb[0].mxu0 %v1161
        %v1440 = vpop.f32.mrb[0].mxu0
        %v1441 = vadd.f32 %v1189, %v1440
        %v1442 = vpop.f32.mrb[0].mxu0
        %v1443 = vadd.f32 %v1193, %v1442
        %v1444 = vpop.f32.mrb[0].mxu0
        %v1445 = vadd.f32 %v1189, %v1444
        %v1446 = vpop.f32.mrb[0].mxu0
        %v1447 = vadd.f32 %v1193, %v1446
        %1448 = vmatprep.mubr.bf16.mxu0 %v1164
        %1449 = vmatmul.mubr.bf16.gmra.mrb[0].mxu0 %v1163
        %v1450 = vpop.f32.mrb[0].mxu0
        %v1451 = vadd.f32 %v1189, %v1450
        %v1452 = vpop.f32.mrb[0].mxu0
        %v1453 = vadd.f32 %v1193, %v1452
        %v1454 = vpop.f32.mrb[0].mxu0
        %v1455 = vadd.f32 %v1189, %v1454
        %v1456 = vpop.f32.mrb[0].mxu0
        %v1457 = vadd.f32 %v1193, %v1456
        %1458 = vmatprep.mubr.bf16.mxu0 %v1166
        %1459 = vmatmul.mubr.bf16.gmra.mrb[0].mxu0 %v1165
        %v1460 = vpop.f32.mrb[0].mxu0
        %v1461 = vadd.f32 %v1189, %v1460
        %v1462 = vpop.f32.mrb[0].mxu0
        %v1463 = vadd.f32 %v1193, %v1462
        %v1464 = vpop.f32.mrb[0].mxu0
        %v1465 = vadd.f32 %v1189, %v1464
        %v1466 = vpop.f32.mrb[0].mxu0
        %v1467 = vadd.f32 %v1193, %v1466
        %1468 = vmatprep.mubr.bf16.mxu0 %v1168
        %1469 = vmatmul.mubr.bf16.gmra.mrb[0].mxu0 %v1167
        %v1470 = vpop.f32.mrb[0].mxu0
        %v1471 = vadd.f32 %v1189, %v1470
        %v1472 = vpop.f32.mrb[0].mxu0
        %v1473 = vadd.f32 %v1193, %v1472
        %v1474 = vpop.f32.mrb[0].mxu0
        %v1475 = vadd.f32 %v1189, %v1474
        %v1476 = vpop.f32.mrb[0].mxu0
        %v1477 = vadd.f32 %v1193, %v1476
        %1478 = vmatprep.mubr.bf16.mxu0 %v1170
        %1479 = vmatmul.mubr.bf16.gmra.mrb[0].mxu0 %v1169
        %v1480 = vpop.f32.mrb[0].mxu0
        %v1481 = vadd.f32 %v1189, %v1480
        %v1482 = vpop.f32.mrb[0].mxu0
        %v1483 = vadd.f32 %v1193, %v1482
        %v1484 = vpop.f32.mrb[0].mxu0
        %v1485 = vadd.f32 %v1189, %v1484
        %v1486 = vpop.f32.mrb[0].mxu0
        %v1487 = vadd.f32 %v1193, %v1486
        %1488 = vmatprep.mubr.bf16.mxu0 %v1172
        %1489 = vmatmul.mubr.bf16.gmra.mrb[0].mxu0 %v1171
        %v1490 = vpop.f32.mrb[0].mxu0
        %v1491 = vadd.f32 %v1189, %v1490
        %v1492 = vpop.f32.mrb[0].mxu0
        %v1493 = vadd.f32 %v1193, %v1492
        %v1494 = vpop.f32.mrb[0].mxu0
        %v1495 = vadd.f32 %v1189, %v1494
        %v1496 = vpop.f32.mrb[0].mxu0
        %v1497 = vadd.f32 %v1193, %v1496
        %1498 = vmatprep.mubr.bf16.mxu0 %v1174
        %1499 = vmatmul.mubr.bf16.gmra.mrb[0].mxu0 %v1173
        %v1500 = vpop.f32.mrb[0].mxu0
        %v1501 = vadd.f32 %v1189, %v1500
        %v1502 = vpop.f32.mrb[0].mxu0
        %v1503 = vadd.f32 %v1193, %v1502
        %v1504 = vpop.f32.mrb[0].mxu0
        %v1505 = vadd.f32 %v1189, %v1504
        %v1506 = vpop.f32.mrb[0].mxu0
        %v1507 = vadd.f32 %v1193, %v1506
        %1508 = vmatprep.mubr.bf16.mxu0 %v1176
        %1509 = vmatmul.mubr.bf16.gmra.mrb[0].mxu0 %v1175
        %v1510 = vpop.f32.mrb[0].mxu0
        %v1511 = vadd.f32 %v1189, %v1510
        %v1512 = vpop.f32.mrb[0].mxu0
        %v1513 = vadd.f32 %v1193, %v1512
        %v1514 = vpop.f32.mrb[0].mxu0
        %v1515 = vadd.f32 %v1189, %v1514
        %v1516 = vpop.f32.mrb[0].mxu0
        %v1517 = vadd.f32 %v1193, %v1516
        %1518 = vmatprep.mubr.bf16.mxu0 %v1178
        %1519 = vmatmul.mubr.bf16.gmra.mrb[0].mxu0 %v1177
        %v1520 = vpop.f32.mrb[0].mxu0
        %v1521 = vadd.f32 %v1189, %v1520
        %v1522 = vpop.f32.mrb[0].mxu0
        %v1523 = vadd.f32 %v1193, %v1522
        %v1524 = vpop.f32.mrb[0].mxu0
        %v1525 = vadd.f32 %v1189, %v1524
        %v1526 = vpop.f32.mrb[0].mxu0
        %v1527 = vadd.f32 %v1193, %v1526
        %1528 = vmatprep.mubr.bf16.mxu0 %v1180
        %1529 = vmatmul.mubr.bf16.gmra.mrb[0].mxu0 %v1179
        %v1530 = vpop.f32.mrb[0].mxu0
        %v1531 = vadd.f32 %v1189, %v1530
        %v1532 = vpop.f32.mrb[0].mxu0
        %v1533 = vadd.f32 %v1193, %v1532
        %v1534 = vpop.f32.mrb[0].mxu0
        %v1535 = vadd.f32 %v1189, %v1534
        %v1536 = vpop.f32.mrb[0].mxu0
        %v1537 = vadd.f32 %v1193, %v1536
        %1538 = vmatprep.mubr.bf16.mxu0 %v1182
        %1539 = vmatmul.mubr.bf16.gmra.mrb[0].mxu0 %v1181
        %v1540 = vpop.f32.mrb[0].mxu0
        %v1541 = vadd.f32 %v1189, %v1540
        %v1542 = vpop.f32.mrb[0].mxu0
        %v1543 = vadd.f32 %v1193, %v1542
        %v1544 = vpop.f32.mrb[0].mxu0
        %v1545 = vadd.f32 %v1189, %v1544
        %v1546 = vpop.f32.mrb[0].mxu0
        %v1547 = vadd.f32 %v1193, %v1546
        %1548 = vdwg.mxu0
        %v1549 = vmax.f32 %v1391, 0.0
        %v1550 = vmax.f32 %v1393, 0.0
        %v1551 = vmax.f32 %v1395, 0.0
        %v1552 = vmax.f32 %v1397, 0.0
        %v1553 = vmax.f32 %v1401, 0.0
        %v1554 = vmax.f32 %v1403, 0.0
        %v1555 = vmax.f32 %v1405, 0.0
        %v1556 = vmax.f32 %v1407, 0.0
        %v1557 = vmax.f32 %v1411, 0.0
        %v1558 = vmax.f32 %v1413, 0.0
        %v1559 = vmax.f32 %v1415, 0.0
        %v1560 = vmax.f32 %v1417, 0.0
        %v1561 = vmax.f32 %v1421, 0.0
        %v1562 = vmax.f32 %v1423, 0.0
        %v1563 = vmax.f32 %v1425, 0.0
        %v1564 = vmax.f32 %v1427, 0.0
        %v1565 = vmax.f32 %v1431, 0.0
        %v1566 = vmax.f32 %v1433, 0.0
        %v1567 = vmax.f32 %v1435, 0.0
        %v1568 = vmax.f32 %v1437, 0.0
        %v1569 = vmax.f32 %v1441, 0.0
        %v1570 = vmax.f32 %v1443, 0.0
        %v1571 = vmax.f32 %v1445, 0.0
        %v1572 = vmax.f32 %v1447, 0.0
        %v1573 = vmax.f32 %v1451, 0.0
        %v1574 = vmax.f32 %v1453, 0.0
        %v1575 = vmax.f32 %v1455, 0.0
        %v1576 = vmax.f32 %v1457, 0.0
        %v1577 = vmax.f32 %v1461, 0.0
        %v1578 = vmax.f32 %v1463, 0.0
        %v1579 = vmax.f32 %v1465, 0.0
        %v1580 = vmax.f32 %v1467, 0.0
        %v1581 = vmax.f32 %v1471, 0.0
        %v1582 = vmax.f32 %v1473, 0.0
        %v1583 = vmax.f32 %v1475, 0.0
        %v1584 = vmax.f32 %v1477, 0.0
        %v1585 = vmax.f32 %v1481, 0.0
        %v1586 = vmax.f32 %v1483, 0.0
        %v1587 = vmax.f32 %v1485, 0.0
        %v1588 = vmax.f32 %v1487, 0.0
        %v1589 = vmax.f32 %v1491, 0.0
        %v1590 = vmax.f32 %v1493, 0.0
        %v1591 = vmax.f32 %v1495, 0.0
        %v1592 = vmax.f32 %v1497, 0.0
        %v1593 = vmax.f32 %v1501, 0.0
        %v1594 = vmax.f32 %v1503, 0.0
        %v1595 = vmax.f32 %v1505, 0.0
        %v1596 = vmax.f32 %v1507, 0.0
        %v1597 = vmax.f32 %v1511, 0.0
        %v1598 = vmax.f32 %v1513, 0.0
        %v1599 = vmax.f32 %v1515, 0.0
        %v1600 = vmax.f32 %v1517, 0.0
        %v1601 = vmax.f32 %v1521, 0.0
        %v1602 = vmax.f32 %v1523, 0.0
        %v1603 = vmax.f32 %v1525, 0.0
        %v1604 = vmax.f32 %v1527, 0.0
        %v1605 = vmax.f32 %v1531, 0.0
        %v1606 = vmax.f32 %v1533, 0.0
        %v1607 = vmax.f32 %v1535, 0.0
        %v1608 = vmax.f32 %v1537, 0.0
        %v1609 = vmax.f32 %v1541, 0.0
        %v1610 = vmax.f32 %v1543, 0.0
        %v1611 = vmax.f32 %v1545, 0.0
        %v1612 = vmax.f32 %v1547, 0.0
        %s1613 = scalar_lea.vmem [#allocation3], 512
        %v1614 = vld [vmem:[%s1613] sm:$0xff]
        %v1615 = vld [vmem:[%s1613 + $0x8] sm:$0xff]
        %v1616 = vld [vmem:[%s1613 + $0x10] sm:$0xff]
        %v1617 = vld [vmem:[%s1613 + $0x18] sm:$0xff]
        %v1618 = vld [vmem:[%s1613 + $0x20] sm:$0xff]
        %v1619 = vld [vmem:[%s1613 + $0x28] sm:$0xff]
        %v1620 = vld [vmem:[%s1613 + $0x30] sm:$0xff]
        %v1621 = vld [vmem:[%s1613 + $0x38] sm:$0xff]
        %v1622 = vld [vmem:[%s1613 + $0x40] sm:$0xff]
        %v1623 = vld [vmem:[%s1613 + $0x48] sm:$0xff]
        %v1624 = vld [vmem:[%s1613 + $0x50] sm:$0xff]
        %v1625 = vld [vmem:[%s1613 + $0x58] sm:$0xff]
        %v1626 = vld [vmem:[%s1613 + $0x60] sm:$0xff]
        %v1627 = vld [vmem:[%s1613 + $0x68] sm:$0xff]
        %v1628 = vld [vmem:[%s1613 + $0x70] sm:$0xff]
        %v1629 = vld [vmem:[%s1613 + $0x78] sm:$0xff]
        %v1630 = vld [vmem:[%s1613 + $0x80] sm:$0xff]
        %v1631 = vld [vmem:[%s1613 + $0x88] sm:$0xff]
        %v1632 = vld [vmem:[%s1613 + $0x90] sm:$0xff]
        %v1633 = vld [vmem:[%s1613 + $0x98] sm:$0xff]
        %v1634 = vld [vmem:[%s1613 + $0xa0] sm:$0xff]
        %v1635 = vld [vmem:[%s1613 + $0xa8] sm:$0xff]
        %v1636 = vld [vmem:[%s1613 + $0xb0] sm:$0xff]
        %v1637 = vld [vmem:[%s1613 + $0xb8] sm:$0xff]
        %v1638 = vld [vmem:[%s1613 + $0xc0] sm:$0xff]
        %v1639 = vld [vmem:[%s1613 + $0xc8] sm:$0xff]
        %v1640 = vld [vmem:[%s1613 + $0xd0] sm:$0xff]
        %v1641 = vld [vmem:[%s1613 + $0xd8] sm:$0xff]
        %v1642 = vld [vmem:[%s1613 + $0xe0] sm:$0xff]
        %v1643 = vld [vmem:[%s1613 + $0xe8] sm:$0xff]
        %v1644 = vld [vmem:[%s1613 + $0xf0] sm:$0xff]
        %v1645 = vld [vmem:[%s1613 + $0xf8] sm:$0xff]
        %v1646 = vpack.c.bf16 %v1551, %v1549
        %v1647 = vpack.c.bf16 %v1552, %v1550
        %v1648 = vpack.c.bf16 %v1555, %v1553
        %v1649 = vpack.c.bf16 %v1556, %v1554
        %v1650 = vpack.c.bf16 %v1559, %v1557
        %v1651 = vpack.c.bf16 %v1560, %v1558
        %v1652 = vpack.c.bf16 %v1563, %v1561
        %v1653 = vpack.c.bf16 %v1564, %v1562
        %v1654 = vpack.c.bf16 %v1567, %v1565
        %v1655 = vpack.c.bf16 %v1568, %v1566
        %v1656 = vpack.c.bf16 %v1571, %v1569
        %v1657 = vpack.c.bf16 %v1572, %v1570
        %v1658 = vpack.c.bf16 %v1575, %v1573
        %v1659 = vpack.c.bf16 %v1576, %v1574
        %v1660 = vpack.c.bf16 %v1579, %v1577
        %v1661 = vpack.c.bf16 %v1580, %v1578
        %v1662 = vpack.c.bf16 %v1583, %v1581
        %v1663 = vpack.c.bf16 %v1584, %v1582
        %v1664 = vpack.c.bf16 %v1587, %v1585
        %v1665 = vpack.c.bf16 %v1588, %v1586
        %v1666 = vpack.c.bf16 %v1591, %v1589
        %v1667 = vpack.c.bf16 %v1592, %v1590
        %v1668 = vpack.c.bf16 %v1595, %v1593
        %v1669 = vpack.c.bf16 %v1596, %v1594
        %v1670 = vpack.c.bf16 %v1599, %v1597
        %v1671 = vpack.c.bf16 %v1600, %v1598
        %v1672 = vpack.c.bf16 %v1603, %v1601
        %v1673 = vpack.c.bf16 %v1604, %v1602
        %v1674 = vpack.c.bf16 %v1607, %v1605
        %v1675 = vpack.c.bf16 %v1608, %v1606
        %v1676 = vpack.c.bf16 %v1611, %v1609
        %v1677 = vpack.c.bf16 %v1612, %v1610
        %s1678 = scalar_lea.vmem %s3, 3
        %v1679 = vld [vmem:[%s1678] ss:$8 sm:$0x3]
        %v1681 = vlaneseq
        %v1682 = vshrl.u32 %v1681, 7
        %v1683 = vsub.s32 0, %v1682
        %v1684 = vrot.slane %v1679, %v1683
        %v1685 = vlaneseq
        %v1686 = vshrl.u32 %v1685, 7
        %v1687 = vsub.s32 1, %v1686
        %v1688 = vrot.slane %v1679, %v1687
        %v1723 = vunpack.c.l.b16 %v1614
        %v1724 = vunpack.c.h.b16 %v1614
        %v1725 = vunpack.c.l.b16 %v1615
        %v1726 = vunpack.c.h.b16 %v1615
        %v1727 = vunpack.c.l.b16 %v1616
        %v1728 = vunpack.c.h.b16 %v1616
        %v1729 = vunpack.c.l.b16 %v1617
        %v1730 = vunpack.c.h.b16 %v1617
        %v1731 = vunpack.c.l.b16 %v1618
        %v1732 = vunpack.c.h.b16 %v1618
        %v1733 = vunpack.c.l.b16 %v1619
        %v1734 = vunpack.c.h.b16 %v1619
        %v1735 = vunpack.c.l.b16 %v1620
        %v1736 = vunpack.c.h.b16 %v1620
        %v1737 = vunpack.c.l.b16 %v1621
        %v1738 = vunpack.c.h.b16 %v1621
        %v1739 = vunpack.c.l.b16 %v1622
        %v1740 = vunpack.c.h.b16 %v1622
        %v1741 = vunpack.c.l.b16 %v1623
        %v1742 = vunpack.c.h.b16 %v1623
        %v1743 = vunpack.c.l.b16 %v1624
        %v1744 = vunpack.c.h.b16 %v1624
        %v1745 = vunpack.c.l.b16 %v1625
        %v1746 = vunpack.c.h.b16 %v1625
        %v1747 = vunpack.c.l.b16 %v1626
        %v1748 = vunpack.c.h.b16 %v1626
        %v1749 = vunpack.c.l.b16 %v1627
        %v1750 = vunpack.c.h.b16 %v1627
        %v1751 = vunpack.c.l.b16 %v1628
        %v1752 = vunpack.c.h.b16 %v1628
        %v1753 = vunpack.c.l.b16 %v1629
        %v1754 = vunpack.c.h.b16 %v1629
        %v1755 = vunpack.c.l.b16 %v1630
        %v1756 = vunpack.c.h.b16 %v1630
        %v1757 = vunpack.c.l.b16 %v1631
        %v1758 = vunpack.c.h.b16 %v1631
        %v1759 = vunpack.c.l.b16 %v1632
        %v1760 = vunpack.c.h.b16 %v1632
        %v1761 = vunpack.c.l.b16 %v1633
        %v1762 = vunpack.c.h.b16 %v1633
        %v1763 = vunpack.c.l.b16 %v1634
        %v1764 = vunpack.c.h.b16 %v1634
        %v1765 = vunpack.c.l.b16 %v1635
        %v1766 = vunpack.c.h.b16 %v1635
        %v1767 = vunpack.c.l.b16 %v1636
        %v1768 = vunpack.c.h.b16 %v1636
        %v1769 = vunpack.c.l.b16 %v1637
        %v1770 = vunpack.c.h.b16 %v1637
        %v1771 = vunpack.c.l.b16 %v1638
        %v1772 = vunpack.c.h.b16 %v1638
        %v1773 = vunpack.c.l.b16 %v1639
        %v1774 = vunpack.c.h.b16 %v1639
        %v1775 = vunpack.c.l.b16 %v1640
        %v1776 = vunpack.c.h.b16 %v1640
        %v1777 = vunpack.c.l.b16 %v1641
        %v1778 = vunpack.c.h.b16 %v1641
        %v1779 = vunpack.c.l.b16 %v1642
        %v1780 = vunpack.c.h.b16 %v1642
        %v1781 = vunpack.c.l.b16 %v1643
        %v1782 = vunpack.c.h.b16 %v1643
        %v1783 = vunpack.c.l.b16 %v1644
        %v1784 = vunpack.c.h.b16 %v1644
        %v1785 = vunpack.c.l.b16 %v1645
        %v1786 = vunpack.c.h.b16 %v1645
        %v1787 = vpack.c.b16 %v1725, %v1723
        %v1788 = vpack.c.b16 %v1726, %v1724
        %v1789 = vpack.c.b16 %v1729, %v1727
        %v1790 = vpack.c.b16 %v1730, %v1728
        %v1791 = vpack.c.b16 %v1733, %v1731
        %v1792 = vpack.c.b16 %v1734, %v1732
        %v1793 = vpack.c.b16 %v1737, %v1735
        %v1794 = vpack.c.b16 %v1738, %v1736
        %v1795 = vpack.c.b16 %v1741, %v1739
        %v1796 = vpack.c.b16 %v1742, %v1740
        %v1797 = vpack.c.b16 %v1745, %v1743
        %v1798 = vpack.c.b16 %v1746, %v1744
        %v1799 = vpack.c.b16 %v1749, %v1747
        %v1800 = vpack.c.b16 %v1750, %v1748
        %v1801 = vpack.c.b16 %v1753, %v1751
        %v1802 = vpack.c.b16 %v1754, %v1752
        %v1803 = vpack.c.b16 %v1757, %v1755
        %v1804 = vpack.c.b16 %v1758, %v1756
        %v1805 = vpack.c.b16 %v1761, %v1759
        %v1806 = vpack.c.b16 %v1762, %v1760
        %v1807 = vpack.c.b16 %v1765, %v1763
        %v1808 = vpack.c.b16 %v1766, %v1764
        %v1809 = vpack.c.b16 %v1769, %v1767
        %v1810 = vpack.c.b16 %v1770, %v1768
        %v1811 = vpack.c.b16 %v1773, %v1771
        %v1812 = vpack.c.b16 %v1774, %v1772
        %v1813 = vpack.c.b16 %v1777, %v1775
        %v1814 = vpack.c.b16 %v1778, %v1776
        %v1815 = vpack.c.b16 %v1781, %v1779
        %v1816 = vpack.c.b16 %v1782, %v1780
        %v1817 = vpack.c.b16 %v1785, %v1783
        %v1818 = vpack.c.b16 %v1786, %v1784
        %1851 = vmatprep.subr.bf16.mxu0 %v1788
        %1852 = vmatpush1.bf16.msra.mxu0 %v1787
        %1853 = vmatprep.subr.bf16.mxu0 %v1790
        %1854 = vmatpush1.bf16.msra.mxu0 %v1789
        %1855 = vmatprep.subr.bf16.mxu0 %v1792
        %1856 = vmatpush1.bf16.msra.mxu0 %v1791
        %1857 = vmatprep.subr.bf16.mxu0 %v1794
        %1858 = vmatpush1.bf16.msra.mxu0 %v1793
        %1859 = vmatprep.subr.bf16.mxu0 %v1796
        %1860 = vmatpush1.bf16.msra.mxu0 %v1795
        %1861 = vmatprep.subr.bf16.mxu0 %v1798
        %1862 = vmatpush1.bf16.msra.mxu0 %v1797
        %1863 = vmatprep.subr.bf16.mxu0 %v1800
        %1864 = vmatpush1.bf16.msra.mxu0 %v1799
        %1865 = vmatprep.subr.bf16.mxu0 %v1802
        %1866 = vmatpush1.bf16.msra.mxu0 %v1801
        %1867 = vmatprep.subr.bf16.mxu0 %v1804
        %1868 = vmatpush1.bf16.msra.mxu0 %v1803
        %1869 = vmatprep.subr.bf16.mxu0 %v1806
        %1870 = vmatpush1.bf16.msra.mxu0 %v1805
        %1871 = vmatprep.subr.bf16.mxu0 %v1808
        %1872 = vmatpush1.bf16.msra.mxu0 %v1807
        %1873 = vmatprep.subr.bf16.mxu0 %v1810
        %1874 = vmatpush1.bf16.msra.mxu0 %v1809
        %1875 = vmatprep.subr.bf16.mxu0 %v1812
        %1876 = vmatpush1.bf16.msra.mxu0 %v1811
        %1877 = vmatprep.subr.bf16.mxu0 %v1814
        %1878 = vmatpush1.bf16.msra.mxu0 %v1813
        %1879 = vmatprep.subr.bf16.mxu0 %v1816
        %1880 = vmatpush1.bf16.msra.mxu0 %v1815
        %1881 = vmatprep.subr.bf16.mxu0 %v1818
        %1882 = vmatpush1.bf16.msra.mxu0 %v1817
        %1883 = vmatprep.mubr.bf16.mxu0 %v1647
        %1884 = vmatmul.mubr.bf16.gmra.mrb[0].mxu0 %v1646
        %v1885 = vpop.f32.mrb[0].mxu0
        %v1886 = vadd.f32 %v1684, %v1885
        %v1887 = vpop.f32.mrb[0].mxu0
        %v1888 = vadd.f32 %v1688, %v1887
        %v1889 = vpop.f32.mrb[0].mxu0
        %v1890 = vadd.f32 %v1684, %v1889
        %v1891 = vpop.f32.mrb[0].mxu0
        %v1892 = vadd.f32 %v1688, %v1891
        %1893 = vmatprep.mubr.bf16.mxu0 %v1649
        %1894 = vmatmul.mubr.bf16.gmra.mrb[0].mxu0 %v1648
        %v1895 = vpop.f32.mrb[0].mxu0
        %v1896 = vadd.f32 %v1684, %v1895
        %v1897 = vpop.f32.mrb[0].mxu0
        %v1898 = vadd.f32 %v1688, %v1897
        %v1899 = vpop.f32.mrb[0].mxu0
        %v1900 = vadd.f32 %v1684, %v1899
        %v1901 = vpop.f32.mrb[0].mxu0
        %v1902 = vadd.f32 %v1688, %v1901
        %1903 = vmatprep.mubr.bf16.mxu0 %v1651
        %1904 = vmatmul.mubr.bf16.gmra.mrb[0].mxu0 %v1650
        %v1905 = vpop.f32.mrb[0].mxu0
        %v1906 = vadd.f32 %v1684, %v1905
        %v1907 = vpop.f32.mrb[0].mxu0
        %v1908 = vadd.f32 %v1688, %v1907
        %v1909 = vpop.f32.mrb[0].mxu0
        %v1910 = vadd.f32 %v1684, %v1909
        %v1911 = vpop.f32.mrb[0].mxu0
        %v1912 = vadd.f32 %v1688, %v1911
        %1913 = vmatprep.mubr.bf16.mxu0 %v1653
        %1914 = vmatmul.mubr.bf16.gmra.mrb[0].mxu0 %v1652
        %v1915 = vpop.f32.mrb[0].mxu0
        %v1916 = vadd.f32 %v1684, %v1915
        %v1917 = vpop.f32.mrb[0].mxu0
        %v1918 = vadd.f32 %v1688, %v1917
        %v1919 = vpop.f32.mrb[0].mxu0
        %v1920 = vadd.f32 %v1684, %v1919
        %v1921 = vpop.f32.mrb[0].mxu0
        %v1922 = vadd.f32 %v1688, %v1921
        %1923 = vmatprep.mubr.bf16.mxu0 %v1655
        %1924 = vmatmul.mubr.bf16.gmra.mrb[0].mxu0 %v1654
        %v1925 = vpop.f32.mrb[0].mxu0
        %v1926 = vadd.f32 %v1684, %v1925
        %v1927 = vpop.f32.mrb[0].mxu0
        %v1928 = vadd.f32 %v1688, %v1927
        %v1929 = vpop.f32.mrb[0].mxu0
        %v1930 = vadd.f32 %v1684, %v1929
        %v1931 = vpop.f32.mrb[0].mxu0
        %v1932 = vadd.f32 %v1688, %v1931
        %1933 = vmatprep.mubr.bf16.mxu0 %v1657
        %1934 = vmatmul.mubr.bf16.gmra.mrb[0].mxu0 %v1656
        %v1935 = vpop.f32.mrb[0].mxu0
        %v1936 = vadd.f32 %v1684, %v1935
        %v1937 = vpop.f32.mrb[0].mxu0
        %v1938 = vadd.f32 %v1688, %v1937
        %v1939 = vpop.f32.mrb[0].mxu0
        %v1940 = vadd.f32 %v1684, %v1939
        %v1941 = vpop.f32.mrb[0].mxu0
        %v1942 = vadd.f32 %v1688, %v1941
        %1943 = vmatprep.mubr.bf16.mxu0 %v1659
        %1944 = vmatmul.mubr.bf16.gmra.mrb[0].mxu0 %v1658
        %v1945 = vpop.f32.mrb[0].mxu0
        %v1946 = vadd.f32 %v1684, %v1945
        %v1947 = vpop.f32.mrb[0].mxu0
        %v1948 = vadd.f32 %v1688, %v1947
        %v1949 = vpop.f32.mrb[0].mxu0
        %v1950 = vadd.f32 %v1684, %v1949
        %v1951 = vpop.f32.mrb[0].mxu0
        %v1952 = vadd.f32 %v1688, %v1951
        %1953 = vmatprep.mubr.bf16.mxu0 %v1661
        %1954 = vmatmul.mubr.bf16.gmra.mrb[0].mxu0 %v1660
        %v1955 = vpop.f32.mrb[0].mxu0
        %v1956 = vadd.f32 %v1684, %v1955
        %v1957 = vpop.f32.mrb[0].mxu0
        %v1958 = vadd.f32 %v1688, %v1957
        %v1959 = vpop.f32.mrb[0].mxu0
        %v1960 = vadd.f32 %v1684, %v1959
        %v1961 = vpop.f32.mrb[0].mxu0
        %v1962 = vadd.f32 %v1688, %v1961
        %1963 = vmatprep.mubr.bf16.mxu0 %v1663
        %1964 = vmatmul.mubr.bf16.gmra.mrb[0].mxu0 %v1662
        %v1965 = vpop.f32.mrb[0].mxu0
        %v1966 = vadd.f32 %v1684, %v1965
        %v1967 = vpop.f32.mrb[0].mxu0
        %v1968 = vadd.f32 %v1688, %v1967
        %v1969 = vpop.f32.mrb[0].mxu0
        %v1970 = vadd.f32 %v1684, %v1969
        %v1971 = vpop.f32.mrb[0].mxu0
        %v1972 = vadd.f32 %v1688, %v1971
        %1973 = vmatprep.mubr.bf16.mxu0 %v1665
        %1974 = vmatmul.mubr.bf16.gmra.mrb[0].mxu0 %v1664
        %v1975 = vpop.f32.mrb[0].mxu0
        %v1976 = vadd.f32 %v1684, %v1975
        %v1977 = vpop.f32.mrb[0].mxu0
        %v1978 = vadd.f32 %v1688, %v1977
        %v1979 = vpop.f32.mrb[0].mxu0
        %v1980 = vadd.f32 %v1684, %v1979
        %v1981 = vpop.f32.mrb[0].mxu0
        %v1982 = vadd.f32 %v1688, %v1981
        %1983 = vmatprep.mubr.bf16.mxu0 %v1667
        %1984 = vmatmul.mubr.bf16.gmra.mrb[0].mxu0 %v1666
        %v1985 = vpop.f32.mrb[0].mxu0
        %v1986 = vadd.f32 %v1684, %v1985
        %v1987 = vpop.f32.mrb[0].mxu0
        %v1988 = vadd.f32 %v1688, %v1987
        %v1989 = vpop.f32.mrb[0].mxu0
        %v1990 = vadd.f32 %v1684, %v1989
        %v1991 = vpop.f32.mrb[0].mxu0
        %v1992 = vadd.f32 %v1688, %v1991
        %1993 = vmatprep.mubr.bf16.mxu0 %v1669
        %1994 = vmatmul.mubr.bf16.gmra.mrb[0].mxu0 %v1668
        %v1995 = vpop.f32.mrb[0].mxu0
        %v1996 = vadd.f32 %v1684, %v1995
        %v1997 = vpop.f32.mrb[0].mxu0
        %v1998 = vadd.f32 %v1688, %v1997
        %v1999 = vpop.f32.mrb[0].mxu0
        %v2000 = vadd.f32 %v1684, %v1999
        %v2001 = vpop.f32.mrb[0].mxu0
        %v2002 = vadd.f32 %v1688, %v2001
        %2003 = vmatprep.mubr.bf16.mxu0 %v1671
        %2004 = vmatmul.mubr.bf16.gmra.mrb[0].mxu0 %v1670
        %v2005 = vpop.f32.mrb[0].mxu0
        %v2006 = vadd.f32 %v1684, %v2005
        %v2007 = vpop.f32.mrb[0].mxu0
        %v2008 = vadd.f32 %v1688, %v2007
        %v2009 = vpop.f32.mrb[0].mxu0
        %v2010 = vadd.f32 %v1684, %v2009
        %v2011 = vpop.f32.mrb[0].mxu0
        %v2012 = vadd.f32 %v1688, %v2011
        %2013 = vmatprep.mubr.bf16.mxu0 %v1673
        %2014 = vmatmul.mubr.bf16.gmra.mrb[0].mxu0 %v1672
        %v2015 = vpop.f32.mrb[0].mxu0
        %v2016 = vadd.f32 %v1684, %v2015
        %v2017 = vpop.f32.mrb[0].mxu0
        %v2018 = vadd.f32 %v1688, %v2017
        %v2019 = vpop.f32.mrb[0].mxu0
        %v2020 = vadd.f32 %v1684, %v2019
        %v2021 = vpop.f32.mrb[0].mxu0
        %v2022 = vadd.f32 %v1688, %v2021
        %2023 = vmatprep.mubr.bf16.mxu0 %v1675
        %2024 = vmatmul.mubr.bf16.gmra.mrb[0].mxu0 %v1674
        %v2025 = vpop.f32.mrb[0].mxu0
        %v2026 = vadd.f32 %v1684, %v2025
        %v2027 = vpop.f32.mrb[0].mxu0
        %v2028 = vadd.f32 %v1688, %v2027
        %v2029 = vpop.f32.mrb[0].mxu0
        %v2030 = vadd.f32 %v1684, %v2029
        %v2031 = vpop.f32.mrb[0].mxu0
        %v2032 = vadd.f32 %v1688, %v2031
        %2033 = vmatprep.mubr.bf16.mxu0 %v1677
        %2034 = vmatmul.mubr.bf16.gmra.mrb[0].mxu0 %v1676
        %v2035 = vpop.f32.mrb[0].mxu0
        %v2036 = vadd.f32 %v1684, %v2035
        %v2037 = vpop.f32.mrb[0].mxu0
        %v2038 = vadd.f32 %v1688, %v2037
        %v2039 = vpop.f32.mrb[0].mxu0
        %v2040 = vadd.f32 %v1684, %v2039
        %v2041 = vpop.f32.mrb[0].mxu0
        %v2042 = vadd.f32 %v1688, %v2041
        %2043 = vdwg.mxu0
        %v2044 = vmax.f32 %v1886, 0.0
        %v2045 = vmax.f32 %v1888, 0.0
        %v2046 = vmax.f32 %v1890, 0.0
        %v2047 = vmax.f32 %v1892, 0.0
        %v2048 = vmax.f32 %v1896, 0.0
        %v2049 = vmax.f32 %v1898, 0.0
        %v2050 = vmax.f32 %v1900, 0.0
        %v2051 = vmax.f32 %v1902, 0.0
        %v2052 = vmax.f32 %v1906, 0.0
        %v2053 = vmax.f32 %v1908, 0.0
        %v2054 = vmax.f32 %v1910, 0.0
        %v2055 = vmax.f32 %v1912, 0.0
        %v2056 = vmax.f32 %v1916, 0.0
        %v2057 = vmax.f32 %v1918, 0.0
        %v2058 = vmax.f32 %v1920, 0.0
        %v2059 = vmax.f32 %v1922, 0.0
        %v2060 = vmax.f32 %v1926, 0.0
        %v2061 = vmax.f32 %v1928, 0.0
        %v2062 = vmax.f32 %v1930, 0.0
        %v2063 = vmax.f32 %v1932, 0.0
        %v2064 = vmax.f32 %v1936, 0.0
        %v2065 = vmax.f32 %v1938, 0.0
        %v2066 = vmax.f32 %v1940, 0.0
        %v2067 = vmax.f32 %v1942, 0.0
        %v2068 = vmax.f32 %v1946, 0.0
        %v2069 = vmax.f32 %v1948, 0.0
        %v2070 = vmax.f32 %v1950, 0.0
        %v2071 = vmax.f32 %v1952, 0.0
        %v2072 = vmax.f32 %v1956, 0.0
        %v2073 = vmax.f32 %v1958, 0.0
        %v2074 = vmax.f32 %v1960, 0.0
        %v2075 = vmax.f32 %v1962, 0.0
        %v2076 = vmax.f32 %v1966, 0.0
        %v2077 = vmax.f32 %v1968, 0.0
        %v2078 = vmax.f32 %v1970, 0.0
        %v2079 = vmax.f32 %v1972, 0.0
        %v2080 = vmax.f32 %v1976, 0.0
        %v2081 = vmax.f32 %v1978, 0.0
        %v2082 = vmax.f32 %v1980, 0.0
        %v2083 = vmax.f32 %v1982, 0.0
        %v2084 = vmax.f32 %v1986, 0.0
        %v2085 = vmax.f32 %v1988, 0.0
        %v2086 = vmax.f32 %v1990, 0.0
        %v2087 = vmax.f32 %v1992, 0.0
        %v2088 = vmax.f32 %v1996, 0.0
        %v2089 = vmax.f32 %v1998, 0.0
        %v2090 = vmax.f32 %v2000, 0.0
        %v2091 = vmax.f32 %v2002, 0.0
        %v2092 = vmax.f32 %v2006, 0.0
        %v2093 = vmax.f32 %v2008, 0.0
        %v2094 = vmax.f32 %v2010, 0.0
        %v2095 = vmax.f32 %v2012, 0.0
        %v2096 = vmax.f32 %v2016, 0.0
        %v2097 = vmax.f32 %v2018, 0.0
        %v2098 = vmax.f32 %v2020, 0.0
        %v2099 = vmax.f32 %v2022, 0.0
        %v2100 = vmax.f32 %v2026, 0.0
        %v2101 = vmax.f32 %v2028, 0.0
        %v2102 = vmax.f32 %v2030, 0.0
        %v2103 = vmax.f32 %v2032, 0.0
        %v2104 = vmax.f32 %v2036, 0.0
        %v2105 = vmax.f32 %v2038, 0.0
        %v2106 = vmax.f32 %v2040, 0.0
        %v2107 = vmax.f32 %v2042, 0.0
        %v2108 = vadd.f32 %v1054, %v2044
        %v2109 = vadd.f32 %v1055, %v2045
        %v2110 = vadd.f32 %v1056, %v2046
        %v2111 = vadd.f32 %v1057, %v2047
        %v2112 = vadd.f32 %v1058, %v2048
        %v2113 = vadd.f32 %v1059, %v2049
        %v2114 = vadd.f32 %v1060, %v2050
        %v2115 = vadd.f32 %v1061, %v2051
        %v2116 = vadd.f32 %v1062, %v2052
        %v2117 = vadd.f32 %v1063, %v2053
        %v2118 = vadd.f32 %v1064, %v2054
        %v2119 = vadd.f32 %v1065, %v2055
        %v2120 = vadd.f32 %v1066, %v2056
        %v2121 = vadd.f32 %v1067, %v2057
        %v2122 = vadd.f32 %v1068, %v2058
        %v2123 = vadd.f32 %v1069, %v2059
        %v2124 = vadd.f32 %v1070, %v2060
        %v2125 = vadd.f32 %v1071, %v2061
        %v2126 = vadd.f32 %v1072, %v2062
        %v2127 = vadd.f32 %v1073, %v2063
        %v2128 = vadd.f32 %v1074, %v2064
        %v2129 = vadd.f32 %v1075, %v2065
        %v2130 = vadd.f32 %v1076, %v2066
        %v2131 = vadd.f32 %v1077, %v2067
        %v2132 = vadd.f32 %v1078, %v2068
        %v2133 = vadd.f32 %v1079, %v2069
        %v2134 = vadd.f32 %v1080, %v2070
        %v2135 = vadd.f32 %v1081, %v2071
        %v2136 = vadd.f32 %v1082, %v2072
        %v2137 = vadd.f32 %v1083, %v2073
        %v2138 = vadd.f32 %v1084, %v2074
        %v2139 = vadd.f32 %v1085, %v2075
        %v2140 = vadd.f32 %v1086, %v2076
        %v2141 = vadd.f32 %v1087, %v2077
        %v2142 = vadd.f32 %v1088, %v2078
        %v2143 = vadd.f32 %v1089, %v2079
        %v2144 = vadd.f32 %v1090, %v2080
        %v2145 = vadd.f32 %v1091, %v2081
        %v2146 = vadd.f32 %v1092, %v2082
        %v2147 = vadd.f32 %v1093, %v2083
        %v2148 = vadd.f32 %v1094, %v2084
        %v2149 = vadd.f32 %v1095, %v2085
        %v2150 = vadd.f32 %v1096, %v2086
        %v2151 = vadd.f32 %v1097, %v2087
        %v2152 = vadd.f32 %v1098, %v2088
        %v2153 = vadd.f32 %v1099, %v2089
        %v2154 = vadd.f32 %v1100, %v2090
        %v2155 = vadd.f32 %v1101, %v2091
        %v2156 = vadd.f32 %v1102, %v2092
        %v2157 = vadd.f32 %v1103, %v2093
        %v2158 = vadd.f32 %v1104, %v2094
        %v2159 = vadd.f32 %v1105, %v2095
        %v2160 = vadd.f32 %v1106, %v2096
        %v2161 = vadd.f32 %v1107, %v2097
        %v2162 = vadd.f32 %v1108, %v2098
        %v2163 = vadd.f32 %v1109, %v2099
        %v2164 = vadd.f32 %v1110, %v2100
        %v2165 = vadd.f32 %v1111, %v2101
        %v2166 = vadd.f32 %v1112, %v2102
        %v2167 = vadd.f32 %v1113, %v2103
        %v2168 = vadd.f32 %v1114, %v2104
        %v2169 = vadd.f32 %v1115, %v2105
        %v2170 = vadd.f32 %v1116, %v2106
        %v2171 = vadd.f32 %v1117, %v2107
        %s2172 = scalar_lea.vmem [#allocation3], 768
        %v2173 = vld [vmem:[%s2172] sm:$0xff]
        %v2174 = vld [vmem:[%s2172 + $0x8] sm:$0xff]
        %v2175 = vld [vmem:[%s2172 + $0x10] sm:$0xff]
        %v2176 = vld [vmem:[%s2172 + $0x18] sm:$0xff]
        %v2177 = vld [vmem:[%s2172 + $0x20] sm:$0xff]
        %v2178 = vld [vmem:[%s2172 + $0x28] sm:$0xff]
        %v2179 = vld [vmem:[%s2172 + $0x30] sm:$0xff]
        %v2180 = vld [vmem:[%s2172 + $0x38] sm:$0xff]
        %v2181 = vld [vmem:[%s2172 + $0x40] sm:$0xff]
        %v2182 = vld [vmem:[%s2172 + $0x48] sm:$0xff]
        %v2183 = vld [vmem:[%s2172 + $0x50] sm:$0xff]
        %v2184 = vld [vmem:[%s2172 + $0x58] sm:$0xff]
        %v2185 = vld [vmem:[%s2172 + $0x60] sm:$0xff]
        %v2186 = vld [vmem:[%s2172 + $0x68] sm:$0xff]
        %v2187 = vld [vmem:[%s2172 + $0x70] sm:$0xff]
        %v2188 = vld [vmem:[%s2172 + $0x78] sm:$0xff]
        %v2189 = vld [vmem:[%s2172 + $0x80] sm:$0xff]
        %v2190 = vld [vmem:[%s2172 + $0x88] sm:$0xff]
        %v2191 = vld [vmem:[%s2172 + $0x90] sm:$0xff]
        %v2192 = vld [vmem:[%s2172 + $0x98] sm:$0xff]
        %v2193 = vld [vmem:[%s2172 + $0xa0] sm:$0xff]
        %v2194 = vld [vmem:[%s2172 + $0xa8] sm:$0xff]
        %v2195 = vld [vmem:[%s2172 + $0xb0] sm:$0xff]
        %v2196 = vld [vmem:[%s2172 + $0xb8] sm:$0xff]
        %v2197 = vld [vmem:[%s2172 + $0xc0] sm:$0xff]
        %v2198 = vld [vmem:[%s2172 + $0xc8] sm:$0xff]
        %v2199 = vld [vmem:[%s2172 + $0xd0] sm:$0xff]
        %v2200 = vld [vmem:[%s2172 + $0xd8] sm:$0xff]
        %v2201 = vld [vmem:[%s2172 + $0xe0] sm:$0xff]
        %v2202 = vld [vmem:[%s2172 + $0xe8] sm:$0xff]
        %v2203 = vld [vmem:[%s2172 + $0xf0] sm:$0xff]
        %v2204 = vld [vmem:[%s2172 + $0xf8] sm:$0xff]
        %v2205 = vpack.c.bf16 %v2110, %v2108
        %v2206 = vpack.c.bf16 %v2111, %v2109
        %v2207 = vpack.c.bf16 %v2114, %v2112
        %v2208 = vpack.c.bf16 %v2115, %v2113
        %v2209 = vpack.c.bf16 %v2118, %v2116
        %v2210 = vpack.c.bf16 %v2119, %v2117
        %v2211 = vpack.c.bf16 %v2122, %v2120
        %v2212 = vpack.c.bf16 %v2123, %v2121
        %v2213 = vpack.c.bf16 %v2126, %v2124
        %v2214 = vpack.c.bf16 %v2127, %v2125
        %v2215 = vpack.c.bf16 %v2130, %v2128
        %v2216 = vpack.c.bf16 %v2131, %v2129
        %v2217 = vpack.c.bf16 %v2134, %v2132
        %v2218 = vpack.c.bf16 %v2135, %v2133
        %v2219 = vpack.c.bf16 %v2138, %v2136
        %v2220 = vpack.c.bf16 %v2139, %v2137
        %v2221 = vpack.c.bf16 %v2142, %v2140
        %v2222 = vpack.c.bf16 %v2143, %v2141
        %v2223 = vpack.c.bf16 %v2146, %v2144
        %v2224 = vpack.c.bf16 %v2147, %v2145
        %v2225 = vpack.c.bf16 %v2150, %v2148
        %v2226 = vpack.c.bf16 %v2151, %v2149
        %v2227 = vpack.c.bf16 %v2154, %v2152
        %v2228 = vpack.c.bf16 %v2155, %v2153
        %v2229 = vpack.c.bf16 %v2158, %v2156
        %v2230 = vpack.c.bf16 %v2159, %v2157
        %v2231 = vpack.c.bf16 %v2162, %v2160
        %v2232 = vpack.c.bf16 %v2163, %v2161
        %v2233 = vpack.c.bf16 %v2166, %v2164
        %v2234 = vpack.c.bf16 %v2167, %v2165
        %v2235 = vpack.c.bf16 %v2170, %v2168
        %v2236 = vpack.c.bf16 %v2171, %v2169
        %s2237 = scalar_lea.vmem %s3, 4
        %v2238 = vld [vmem:[%s2237] ss:$8 sm:$0x3]
        %v2240 = vlaneseq
        %v2241 = vshrl.u32 %v2240, 7
        %v2242 = vsub.s32 0, %v2241
        %v2243 = vrot.slane %v2238, %v2242
        %v2244 = vlaneseq
        %v2245 = vshrl.u32 %v2244, 7
        %v2246 = vsub.s32 1, %v2245
        %v2247 = vrot.slane %v2238, %v2246
        %v2282 = vunpack.c.l.b16 %v2173
        %v2283 = vunpack.c.h.b16 %v2173
        %v2284 = vunpack.c.l.b16 %v2174
        %v2285 = vunpack.c.h.b16 %v2174
        %v2286 = vunpack.c.l.b16 %v2175
        %v2287 = vunpack.c.h.b16 %v2175
        %v2288 = vunpack.c.l.b16 %v2176
        %v2289 = vunpack.c.h.b16 %v2176
        %v2290 = vunpack.c.l.b16 %v2177
        %v2291 = vunpack.c.h.b16 %v2177
        %v2292 = vunpack.c.l.b16 %v2178
        %v2293 = vunpack.c.h.b16 %v2178
        %v2294 = vunpack.c.l.b16 %v2179
        %v2295 = vunpack.c.h.b16 %v2179
        %v2296 = vunpack.c.l.b16 %v2180
        %v2297 = vunpack.c.h.b16 %v2180
        %v2298 = vunpack.c.l.b16 %v2181
        %v2299 = vunpack.c.h.b16 %v2181
        %v2300 = vunpack.c.l.b16 %v2182
        %v2301 = vunpack.c.h.b16 %v2182
        %v2302 = vunpack.c.l.b16 %v2183
        %v2303 = vunpack.c.h.b16 %v2183
        %v2304 = vunpack.c.l.b16 %v2184
        %v2305 = vunpack.c.h.b16 %v2184
        %v2306 = vunpack.c.l.b16 %v2185
        %v2307 = vunpack.c.h.b16 %v2185
        %v2308 = vunpack.c.l.b16 %v2186
        %v2309 = vunpack.c.h.b16 %v2186
        %v2310 = vunpack.c.l.b16 %v2187
        %v2311 = vunpack.c.h.b16 %v2187
        %v2312 = vunpack.c.l.b16 %v2188
        %v2313 = vunpack.c.h.b16 %v2188
        %v2314 = vunpack.c.l.b16 %v2189
        %v2315 = vunpack.c.h.b16 %v2189
        %v2316 = vunpack.c.l.b16 %v2190
        %v2317 = vunpack.c.h.b16 %v2190
        %v2318 = vunpack.c.l.b16 %v2191
        %v2319 = vunpack.c.h.b16 %v2191
        %v2320 = vunpack.c.l.b16 %v2192
        %v2321 = vunpack.c.h.b16 %v2192
        %v2322 = vunpack.c.l.b16 %v2193
        %v2323 = vunpack.c.h.b16 %v2193
        %v2324 = vunpack.c.l.b16 %v2194
        %v2325 = vunpack.c.h.b16 %v2194
        %v2326 = vunpack.c.l.b16 %v2195
        %v2327 = vunpack.c.h.b16 %v2195
        %v2328 = vunpack.c.l.b16 %v2196
        %v2329 = vunpack.c.h.b16 %v2196
        %v2330 = vunpack.c.l.b16 %v2197
        %v2331 = vunpack.c.h.b16 %v2197
        %v2332 = vunpack.c.l.b16 %v2198
        %v2333 = vunpack.c.h.b16 %v2198
        %v2334 = vunpack.c.l.b16 %v2199
        %v2335 = vunpack.c.h.b16 %v2199
        %v2336 = vunpack.c.l.b16 %v2200
        %v2337 = vunpack.c.h.b16 %v2200
        %v2338 = vunpack.c.l.b16 %v2201
        %v2339 = vunpack.c.h.b16 %v2201
        %v2340 = vunpack.c.l.b16 %v2202
        %v2341 = vunpack.c.h.b16 %v2202
        %v2342 = vunpack.c.l.b16 %v2203
        %v2343 = vunpack.c.h.b16 %v2203
        %v2344 = vunpack.c.l.b16 %v2204
        %v2345 = vunpack.c.h.b16 %v2204
        %v2346 = vpack.c.b16 %v2284, %v2282
        %v2347 = vpack.c.b16 %v2285, %v2283
        %v2348 = vpack.c.b16 %v2288, %v2286
        %v2349 = vpack.c.b16 %v2289, %v2287
        %v2350 = vpack.c.b16 %v2292, %v2290
        %v2351 = vpack.c.b16 %v2293, %v2291
        %v2352 = vpack.c.b16 %v2296, %v2294
        %v2353 = vpack.c.b16 %v2297, %v2295
        %v2354 = vpack.c.b16 %v2300, %v2298
        %v2355 = vpack.c.b16 %v2301, %v2299
        %v2356 = vpack.c.b16 %v2304, %v2302
        %v2357 = vpack.c.b16 %v2305, %v2303
        %v2358 = vpack.c.b16 %v2308, %v2306
        %v2359 = vpack.c.b16 %v2309, %v2307
        %v2360 = vpack.c.b16 %v2312, %v2310
        %v2361 = vpack.c.b16 %v2313, %v2311
        %v2362 = vpack.c.b16 %v2316, %v2314
        %v2363 = vpack.c.b16 %v2317, %v2315
        %v2364 = vpack.c.b16 %v2320, %v2318
        %v2365 = vpack.c.b16 %v2321, %v2319
        %v2366 = vpack.c.b16 %v2324, %v2322
        %v2367 = vpack.c.b16 %v2325, %v2323
        %v2368 = vpack.c.b16 %v2328, %v2326
        %v2369 = vpack.c.b16 %v2329, %v2327
        %v2370 = vpack.c.b16 %v2332, %v2330
        %v2371 = vpack.c.b16 %v2333, %v2331
        %v2372 = vpack.c.b16 %v2336, %v2334
        %v2373 = vpack.c.b16 %v2337, %v2335
        %v2374 = vpack.c.b16 %v2340, %v2338
        %v2375 = vpack.c.b16 %v2341, %v2339
        %v2376 = vpack.c.b16 %v2344, %v2342
        %v2377 = vpack.c.b16 %v2345, %v2343
        %2410 = vmatprep.subr.bf16.mxu0 %v2347
        %2411 = vmatpush1.bf16.msra.mxu0 %v2346
        %2412 = vmatprep.subr.bf16.mxu0 %v2349
        %2413 = vmatpush1.bf16.msra.mxu0 %v2348
        %2414 = vmatprep.subr.bf16.mxu0 %v2351
        %2415 = vmatpush1.bf16.msra.mxu0 %v2350
        %2416 = vmatprep.subr.bf16.mxu0 %v2353
        %2417 = vmatpush1.bf16.msra.mxu0 %v2352
        %2418 = vmatprep.subr.bf16.mxu0 %v2355
        %2419 = vmatpush1.bf16.msra.mxu0 %v2354
        %2420 = vmatprep.subr.bf16.mxu0 %v2357
        %2421 = vmatpush1.bf16.msra.mxu0 %v2356
        %2422 = vmatprep.subr.bf16.mxu0 %v2359
        %2423 = vmatpush1.bf16.msra.mxu0 %v2358
        %2424 = vmatprep.subr.bf16.mxu0 %v2361
        %2425 = vmatpush1.bf16.msra.mxu0 %v2360
        %2426 = vmatprep.subr.bf16.mxu0 %v2363
        %2427 = vmatpush1.bf16.msra.mxu0 %v2362
        %2428 = vmatprep.subr.bf16.mxu0 %v2365
        %2429 = vmatpush1.bf16.msra.mxu0 %v2364
        %2430 = vmatprep.subr.bf16.mxu0 %v2367
        %2431 = vmatpush1.bf16.msra.mxu0 %v2366
        %2432 = vmatprep.subr.bf16.mxu0 %v2369
        %2433 = vmatpush1.bf16.msra.mxu0 %v2368
        %2434 = vmatprep.subr.bf16.mxu0 %v2371
        %2435 = vmatpush1.bf16.msra.mxu0 %v2370
        %2436 = vmatprep.subr.bf16.mxu0 %v2373
        %2437 = vmatpush1.bf16.msra.mxu0 %v2372
        %2438 = vmatprep.subr.bf16.mxu0 %v2375
        %2439 = vmatpush1.bf16.msra.mxu0 %v2374
        %2440 = vmatprep.subr.bf16.mxu0 %v2377
        %2441 = vmatpush1.bf16.msra.mxu0 %v2376
        %2442 = vmatprep.mubr.bf16.mxu0 %v2206
        %2443 = vmatmul.mubr.bf16.gmra.mrb[0].mxu0 %v2205
        %v2444 = vpop.f32.mrb[0].mxu0
        %v2445 = vadd.f32 %v2243, %v2444
        %v2446 = vpop.f32.mrb[0].mxu0
        %v2447 = vadd.f32 %v2247, %v2446
        %v2448 = vpop.f32.mrb[0].mxu0
        %v2449 = vadd.f32 %v2243, %v2448
        %v2450 = vpop.f32.mrb[0].mxu0
        %v2451 = vadd.f32 %v2247, %v2450
        %2452 = vmatprep.mubr.bf16.mxu0 %v2208
        %2453 = vmatmul.mubr.bf16.gmra.mrb[0].mxu0 %v2207
        %v2454 = vpop.f32.mrb[0].mxu0
        %v2455 = vadd.f32 %v2243, %v2454
        %v2456 = vpop.f32.mrb[0].mxu0
        %v2457 = vadd.f32 %v2247, %v2456
        %v2458 = vpop.f32.mrb[0].mxu0
        %v2459 = vadd.f32 %v2243, %v2458
        %v2460 = vpop.f32.mrb[0].mxu0
        %v2461 = vadd.f32 %v2247, %v2460
        %2462 = vmatprep.mubr.bf16.mxu0 %v2210
        %2463 = vmatmul.mubr.bf16.gmra.mrb[0].mxu0 %v2209
        %v2464 = vpop.f32.mrb[0].mxu0
        %v2465 = vadd.f32 %v2243, %v2464
        %v2466 = vpop.f32.mrb[0].mxu0
        %v2467 = vadd.f32 %v2247, %v2466
        %v2468 = vpop.f32.mrb[0].mxu0
        %v2469 = vadd.f32 %v2243, %v2468
        %v2470 = vpop.f32.mrb[0].mxu0
        %v2471 = vadd.f32 %v2247, %v2470
        %2472 = vmatprep.mubr.bf16.mxu0 %v2212
        %2473 = vmatmul.mubr.bf16.gmra.mrb[0].mxu0 %v2211
        %v2474 = vpop.f32.mrb[0].mxu0
        %v2475 = vadd.f32 %v2243, %v2474
        %v2476 = vpop.f32.mrb[0].mxu0
        %v2477 = vadd.f32 %v2247, %v2476
        %v2478 = vpop.f32.mrb[0].mxu0
        %v2479 = vadd.f32 %v2243, %v2478
        %v2480 = vpop.f32.mrb[0].mxu0
        %v2481 = vadd.f32 %v2247, %v2480
        %2482 = vmatprep.mubr.bf16.mxu0 %v2214
        %2483 = vmatmul.mubr.bf16.gmra.mrb[0].mxu0 %v2213
        %v2484 = vpop.f32.mrb[0].mxu0
        %v2485 = vadd.f32 %v2243, %v2484
        %v2486 = vpop.f32.mrb[0].mxu0
        %v2487 = vadd.f32 %v2247, %v2486
        %v2488 = vpop.f32.mrb[0].mxu0
        %v2489 = vadd.f32 %v2243, %v2488
        %v2490 = vpop.f32.mrb[0].mxu0
        %v2491 = vadd.f32 %v2247, %v2490
        %2492 = vmatprep.mubr.bf16.mxu0 %v2216
        %2493 = vmatmul.mubr.bf16.gmra.mrb[0].mxu0 %v2215
        %v2494 = vpop.f32.mrb[0].mxu0
        %v2495 = vadd.f32 %v2243, %v2494
        %v2496 = vpop.f32.mrb[0].mxu0
        %v2497 = vadd.f32 %v2247, %v2496
        %v2498 = vpop.f32.mrb[0].mxu0
        %v2499 = vadd.f32 %v2243, %v2498
        %v2500 = vpop.f32.mrb[0].mxu0
        %v2501 = vadd.f32 %v2247, %v2500
        %2502 = vmatprep.mubr.bf16.mxu0 %v2218
        %2503 = vmatmul.mubr.bf16.gmra.mrb[0].mxu0 %v2217
        %v2504 = vpop.f32.mrb[0].mxu0
        %v2505 = vadd.f32 %v2243, %v2504
        %v2506 = vpop.f32.mrb[0].mxu0
        %v2507 = vadd.f32 %v2247, %v2506
        %v2508 = vpop.f32.mrb[0].mxu0
        %v2509 = vadd.f32 %v2243, %v2508
        %v2510 = vpop.f32.mrb[0].mxu0
        %v2511 = vadd.f32 %v2247, %v2510
        %2512 = vmatprep.mubr.bf16.mxu0 %v2220
        %2513 = vmatmul.mubr.bf16.gmra.mrb[0].mxu0 %v2219
        %v2514 = vpop.f32.mrb[0].mxu0
        %v2515 = vadd.f32 %v2243, %v2514
        %v2516 = vpop.f32.mrb[0].mxu0
        %v2517 = vadd.f32 %v2247, %v2516
        %v2518 = vpop.f32.mrb[0].mxu0
        %v2519 = vadd.f32 %v2243, %v2518
        %v2520 = vpop.f32.mrb[0].mxu0
        %v2521 = vadd.f32 %v2247, %v2520
        %2522 = vmatprep.mubr.bf16.mxu0 %v2222
        %2523 = vmatmul.mubr.bf16.gmra.mrb[0].mxu0 %v2221
        %v2524 = vpop.f32.mrb[0].mxu0
        %v2525 = vadd.f32 %v2243, %v2524
        %v2526 = vpop.f32.mrb[0].mxu0
        %v2527 = vadd.f32 %v2247, %v2526
        %v2528 = vpop.f32.mrb[0].mxu0
        %v2529 = vadd.f32 %v2243, %v2528
        %v2530 = vpop.f32.mrb[0].mxu0
        %v2531 = vadd.f32 %v2247, %v2530
        %2532 = vmatprep.mubr.bf16.mxu0 %v2224
        %2533 = vmatmul.mubr.bf16.gmra.mrb[0].mxu0 %v2223
        %v2534 = vpop.f32.mrb[0].mxu0
        %v2535 = vadd.f32 %v2243, %v2534
        %v2536 = vpop.f32.mrb[0].mxu0
        %v2537 = vadd.f32 %v2247, %v2536
        %v2538 = vpop.f32.mrb[0].mxu0
        %v2539 = vadd.f32 %v2243, %v2538
        %v2540 = vpop.f32.mrb[0].mxu0
        %v2541 = vadd.f32 %v2247, %v2540
        %2542 = vmatprep.mubr.bf16.mxu0 %v2226
        %2543 = vmatmul.mubr.bf16.gmra.mrb[0].mxu0 %v2225
        %v2544 = vpop.f32.mrb[0].mxu0
        %v2545 = vadd.f32 %v2243, %v2544
        %v2546 = vpop.f32.mrb[0].mxu0
        %v2547 = vadd.f32 %v2247, %v2546
        %v2548 = vpop.f32.mrb[0].mxu0
        %v2549 = vadd.f32 %v2243, %v2548
        %v2550 = vpop.f32.mrb[0].mxu0
        %v2551 = vadd.f32 %v2247, %v2550
        %2552 = vmatprep.mubr.bf16.mxu0 %v2228
        %2553 = vmatmul.mubr.bf16.gmra.mrb[0].mxu0 %v2227
        %v2554 = vpop.f32.mrb[0].mxu0
        %v2555 = vadd.f32 %v2243, %v2554
        %v2556 = vpop.f32.mrb[0].mxu0
        %v2557 = vadd.f32 %v2247, %v2556
        %v2558 = vpop.f32.mrb[0].mxu0
        %v2559 = vadd.f32 %v2243, %v2558
        %v2560 = vpop.f32.mrb[0].mxu0
        %v2561 = vadd.f32 %v2247, %v2560
        %2562 = vmatprep.mubr.bf16.mxu0 %v2230
        %2563 = vmatmul.mubr.bf16.gmra.mrb[0].mxu0 %v2229
        %v2564 = vpop.f32.mrb[0].mxu0
        %v2565 = vadd.f32 %v2243, %v2564
        %v2566 = vpop.f32.mrb[0].mxu0
        %v2567 = vadd.f32 %v2247, %v2566
        %v2568 = vpop.f32.mrb[0].mxu0
        %v2569 = vadd.f32 %v2243, %v2568
        %v2570 = vpop.f32.mrb[0].mxu0
        %v2571 = vadd.f32 %v2247, %v2570
        %2572 = vmatprep.mubr.bf16.mxu0 %v2232
        %2573 = vmatmul.mubr.bf16.gmra.mrb[0].mxu0 %v2231
        %v2574 = vpop.f32.mrb[0].mxu0
        %v2575 = vadd.f32 %v2243, %v2574
        %v2576 = vpop.f32.mrb[0].mxu0
        %v2577 = vadd.f32 %v2247, %v2576
        %v2578 = vpop.f32.mrb[0].mxu0
        %v2579 = vadd.f32 %v2243, %v2578
        %v2580 = vpop.f32.mrb[0].mxu0
        %v2581 = vadd.f32 %v2247, %v2580
        %2582 = vmatprep.mubr.bf16.mxu0 %v2234
        %2583 = vmatmul.mubr.bf16.gmra.mrb[0].mxu0 %v2233
        %v2584 = vpop.f32.mrb[0].mxu0
        %v2585 = vadd.f32 %v2243, %v2584
        %v2586 = vpop.f32.mrb[0].mxu0
        %v2587 = vadd.f32 %v2247, %v2586
        %v2588 = vpop.f32.mrb[0].mxu0
        %v2589 = vadd.f32 %v2243, %v2588
        %v2590 = vpop.f32.mrb[0].mxu0
        %v2591 = vadd.f32 %v2247, %v2590
        %2592 = vmatprep.mubr.bf16.mxu0 %v2236
        %2593 = vmatmul.mubr.bf16.gmra.mrb[0].mxu0 %v2235
        %v2594 = vpop.f32.mrb[0].mxu0
        %v2595 = vadd.f32 %v2243, %v2594
        %v2596 = vpop.f32.mrb[0].mxu0
        %v2597 = vadd.f32 %v2247, %v2596
        %v2598 = vpop.f32.mrb[0].mxu0
        %v2599 = vadd.f32 %v2243, %v2598
        %v2600 = vpop.f32.mrb[0].mxu0
        %v2601 = vadd.f32 %v2247, %v2600
        %2602 = vdwg.mxu0
        %v2603 = vmax.f32 %v2445, 0.0
        %v2604 = vmax.f32 %v2447, 0.0
        %v2605 = vmax.f32 %v2449, 0.0
        %v2606 = vmax.f32 %v2451, 0.0
        %v2607 = vmax.f32 %v2455, 0.0
        %v2608 = vmax.f32 %v2457, 0.0
        %v2609 = vmax.f32 %v2459, 0.0
        %v2610 = vmax.f32 %v2461, 0.0
        %v2611 = vmax.f32 %v2465, 0.0
        %v2612 = vmax.f32 %v2467, 0.0
        %v2613 = vmax.f32 %v2469, 0.0
        %v2614 = vmax.f32 %v2471, 0.0
        %v2615 = vmax.f32 %v2475, 0.0
        %v2616 = vmax.f32 %v2477, 0.0
        %v2617 = vmax.f32 %v2479, 0.0
        %v2618 = vmax.f32 %v2481, 0.0
        %v2619 = vmax.f32 %v2485, 0.0
        %v2620 = vmax.f32 %v2487, 0.0
        %v2621 = vmax.f32 %v2489, 0.0
        %v2622 = vmax.f32 %v2491, 0.0
        %v2623 = vmax.f32 %v2495, 0.0
        %v2624 = vmax.f32 %v2497, 0.0
        %v2625 = vmax.f32 %v2499, 0.0
        %v2626 = vmax.f32 %v2501, 0.0
        %v2627 = vmax.f32 %v2505, 0.0
        %v2628 = vmax.f32 %v2507, 0.0
        %v2629 = vmax.f32 %v2509, 0.0
        %v2630 = vmax.f32 %v2511, 0.0
        %v2631 = vmax.f32 %v2515, 0.0
        %v2632 = vmax.f32 %v2517, 0.0
        %v2633 = vmax.f32 %v2519, 0.0
        %v2634 = vmax.f32 %v2521, 0.0
        %v2635 = vmax.f32 %v2525, 0.0
        %v2636 = vmax.f32 %v2527, 0.0
        %v2637 = vmax.f32 %v2529, 0.0
        %v2638 = vmax.f32 %v2531, 0.0
        %v2639 = vmax.f32 %v2535, 0.0
        %v2640 = vmax.f32 %v2537, 0.0
        %v2641 = vmax.f32 %v2539, 0.0
        %v2642 = vmax.f32 %v2541, 0.0
        %v2643 = vmax.f32 %v2545, 0.0
        %v2644 = vmax.f32 %v2547, 0.0
        %v2645 = vmax.f32 %v2549, 0.0
        %v2646 = vmax.f32 %v2551, 0.0
        %v2647 = vmax.f32 %v2555, 0.0
        %v2648 = vmax.f32 %v2557, 0.0
        %v2649 = vmax.f32 %v2559, 0.0
        %v2650 = vmax.f32 %v2561, 0.0
        %v2651 = vmax.f32 %v2565, 0.0
        %v2652 = vmax.f32 %v2567, 0.0
        %v2653 = vmax.f32 %v2569, 0.0
        %v2654 = vmax.f32 %v2571, 0.0
        %v2655 = vmax.f32 %v2575, 0.0
        %v2656 = vmax.f32 %v2577, 0.0
        %v2657 = vmax.f32 %v2579, 0.0
        %v2658 = vmax.f32 %v2581, 0.0
        %v2659 = vmax.f32 %v2585, 0.0
        %v2660 = vmax.f32 %v2587, 0.0
        %v2661 = vmax.f32 %v2589, 0.0
        %v2662 = vmax.f32 %v2591, 0.0
        %v2663 = vmax.f32 %v2595, 0.0
        %v2664 = vmax.f32 %v2597, 0.0
        %v2665 = vmax.f32 %v2599, 0.0
        %v2666 = vmax.f32 %v2601, 0.0
        %s2667 = scalar_lea.vmem [#allocation3], 1024
        %v2668 = vld [vmem:[%s2667] sm:$0xff]
        %v2669 = vld [vmem:[%s2667 + $0x8] sm:$0xff]
        %v2670 = vld [vmem:[%s2667 + $0x10] sm:$0xff]
        %v2671 = vld [vmem:[%s2667 + $0x18] sm:$0xff]
        %v2672 = vld [vmem:[%s2667 + $0x20] sm:$0xff]
        %v2673 = vld [vmem:[%s2667 + $0x28] sm:$0xff]
        %v2674 = vld [vmem:[%s2667 + $0x30] sm:$0xff]
        %v2675 = vld [vmem:[%s2667 + $0x38] sm:$0xff]
        %v2676 = vld [vmem:[%s2667 + $0x40] sm:$0xff]
        %v2677 = vld [vmem:[%s2667 + $0x48] sm:$0xff]
        %v2678 = vld [vmem:[%s2667 + $0x50] sm:$0xff]
        %v2679 = vld [vmem:[%s2667 + $0x58] sm:$0xff]
        %v2680 = vld [vmem:[%s2667 + $0x60] sm:$0xff]
        %v2681 = vld [vmem:[%s2667 + $0x68] sm:$0xff]
        %v2682 = vld [vmem:[%s2667 + $0x70] sm:$0xff]
        %v2683 = vld [vmem:[%s2667 + $0x78] sm:$0xff]
        %v2684 = vld [vmem:[%s2667 + $0x80] sm:$0xff]
        %v2685 = vld [vmem:[%s2667 + $0x88] sm:$0xff]
        %v2686 = vld [vmem:[%s2667 + $0x90] sm:$0xff]
        %v2687 = vld [vmem:[%s2667 + $0x98] sm:$0xff]
        %v2688 = vld [vmem:[%s2667 + $0xa0] sm:$0xff]
        %v2689 = vld [vmem:[%s2667 + $0xa8] sm:$0xff]
        %v2690 = vld [vmem:[%s2667 + $0xb0] sm:$0xff]
        %v2691 = vld [vmem:[%s2667 + $0xb8] sm:$0xff]
        %v2692 = vld [vmem:[%s2667 + $0xc0] sm:$0xff]
        %v2693 = vld [vmem:[%s2667 + $0xc8] sm:$0xff]
        %v2694 = vld [vmem:[%s2667 + $0xd0] sm:$0xff]
        %v2695 = vld [vmem:[%s2667 + $0xd8] sm:$0xff]
        %v2696 = vld [vmem:[%s2667 + $0xe0] sm:$0xff]
        %v2697 = vld [vmem:[%s2667 + $0xe8] sm:$0xff]
        %v2698 = vld [vmem:[%s2667 + $0xf0] sm:$0xff]
        %v2699 = vld [vmem:[%s2667 + $0xf8] sm:$0xff]
        %v2700 = vpack.c.bf16 %v2605, %v2603
        %v2701 = vpack.c.bf16 %v2606, %v2604
        %v2702 = vpack.c.bf16 %v2609, %v2607
        %v2703 = vpack.c.bf16 %v2610, %v2608
        %v2704 = vpack.c.bf16 %v2613, %v2611
        %v2705 = vpack.c.bf16 %v2614, %v2612
        %v2706 = vpack.c.bf16 %v2617, %v2615
        %v2707 = vpack.c.bf16 %v2618, %v2616
        %v2708 = vpack.c.bf16 %v2621, %v2619
        %v2709 = vpack.c.bf16 %v2622, %v2620
        %v2710 = vpack.c.bf16 %v2625, %v2623
        %v2711 = vpack.c.bf16 %v2626, %v2624
        %v2712 = vpack.c.bf16 %v2629, %v2627
        %v2713 = vpack.c.bf16 %v2630, %v2628
        %v2714 = vpack.c.bf16 %v2633, %v2631
        %v2715 = vpack.c.bf16 %v2634, %v2632
        %v2716 = vpack.c.bf16 %v2637, %v2635
        %v2717 = vpack.c.bf16 %v2638, %v2636
        %v2718 = vpack.c.bf16 %v2641, %v2639
        %v2719 = vpack.c.bf16 %v2642, %v2640
        %v2720 = vpack.c.bf16 %v2645, %v2643
        %v2721 = vpack.c.bf16 %v2646, %v2644
        %v2722 = vpack.c.bf16 %v2649, %v2647
        %v2723 = vpack.c.bf16 %v2650, %v2648
        %v2724 = vpack.c.bf16 %v2653, %v2651
        %v2725 = vpack.c.bf16 %v2654, %v2652
        %v2726 = vpack.c.bf16 %v2657, %v2655
        %v2727 = vpack.c.bf16 %v2658, %v2656
        %v2728 = vpack.c.bf16 %v2661, %v2659
        %v2729 = vpack.c.bf16 %v2662, %v2660
        %v2730 = vpack.c.bf16 %v2665, %v2663
        %v2731 = vpack.c.bf16 %v2666, %v2664
        %s2732 = scalar_lea.vmem %s3, 5
        %v2733 = vld [vmem:[%s2732] ss:$8 sm:$0x3]
        %v2735 = vlaneseq
        %v2736 = vshrl.u32 %v2735, 7
        %v2737 = vsub.s32 0, %v2736
        %v2738 = vrot.slane %v2733, %v2737
        %v2739 = vlaneseq
        %v2740 = vshrl.u32 %v2739, 7
        %v2741 = vsub.s32 1, %v2740
        %v2742 = vrot.slane %v2733, %v2741
        %v2777 = vunpack.c.l.b16 %v2668
        %v2778 = vunpack.c.h.b16 %v2668
        %v2779 = vunpack.c.l.b16 %v2669
        %v2780 = vunpack.c.h.b16 %v2669
        %v2781 = vunpack.c.l.b16 %v2670
        %v2782 = vunpack.c.h.b16 %v2670
        %v2783 = vunpack.c.l.b16 %v2671
        %v2784 = vunpack.c.h.b16 %v2671
        %v2785 = vunpack.c.l.b16 %v2672
        %v2786 = vunpack.c.h.b16 %v2672
        %v2787 = vunpack.c.l.b16 %v2673
        %v2788 = vunpack.c.h.b16 %v2673
        %v2789 = vunpack.c.l.b16 %v2674
        %v2790 = vunpack.c.h.b16 %v2674
        %v2791 = vunpack.c.l.b16 %v2675
        %v2792 = vunpack.c.h.b16 %v2675
        %v2793 = vunpack.c.l.b16 %v2676
        %v2794 = vunpack.c.h.b16 %v2676
        %v2795 = vunpack.c.l.b16 %v2677
        %v2796 = vunpack.c.h.b16 %v2677
        %v2797 = vunpack.c.l.b16 %v2678
        %v2798 = vunpack.c.h.b16 %v2678
        %v2799 = vunpack.c.l.b16 %v2679
        %v2800 = vunpack.c.h.b16 %v2679
        %v2801 = vunpack.c.l.b16 %v2680
        %v2802 = vunpack.c.h.b16 %v2680
        %v2803 = vunpack.c.l.b16 %v2681
        %v2804 = vunpack.c.h.b16 %v2681
        %v2805 = vunpack.c.l.b16 %v2682
        %v2806 = vunpack.c.h.b16 %v2682
        %v2807 = vunpack.c.l.b16 %v2683
        %v2808 = vunpack.c.h.b16 %v2683
        %v2809 = vunpack.c.l.b16 %v2684
        %v2810 = vunpack.c.h.b16 %v2684
        %v2811 = vunpack.c.l.b16 %v2685
        %v2812 = vunpack.c.h.b16 %v2685
        %v2813 = vunpack.c.l.b16 %v2686
        %v2814 = vunpack.c.h.b16 %v2686
        %v2815 = vunpack.c.l.b16 %v2687
        %v2816 = vunpack.c.h.b16 %v2687
        %v2817 = vunpack.c.l.b16 %v2688
        %v2818 = vunpack.c.h.b16 %v2688
        %v2819 = vunpack.c.l.b16 %v2689
        %v2820 = vunpack.c.h.b16 %v2689
        %v2821 = vunpack.c.l.b16 %v2690
        %v2822 = vunpack.c.h.b16 %v2690
        %v2823 = vunpack.c.l.b16 %v2691
        %v2824 = vunpack.c.h.b16 %v2691
        %v2825 = vunpack.c.l.b16 %v2692
        %v2826 = vunpack.c.h.b16 %v2692
        %v2827 = vunpack.c.l.b16 %v2693
        %v2828 = vunpack.c.h.b16 %v2693
        %v2829 = vunpack.c.l.b16 %v2694
        %v2830 = vunpack.c.h.b16 %v2694
        %v2831 = vunpack.c.l.b16 %v2695
        %v2832 = vunpack.c.h.b16 %v2695
        %v2833 = vunpack.c.l.b16 %v2696
        %v2834 = vunpack.c.h.b16 %v2696
        %v2835 = vunpack.c.l.b16 %v2697
        %v2836 = vunpack.c.h.b16 %v2697
        %v2837 = vunpack.c.l.b16 %v2698
        %v2838 = vunpack.c.h.b16 %v2698
        %v2839 = vunpack.c.l.b16 %v2699
        %v2840 = vunpack.c.h.b16 %v2699
        %v2841 = vpack.c.b16 %v2779, %v2777
        %v2842 = vpack.c.b16 %v2780, %v2778
        %v2843 = vpack.c.b16 %v2783, %v2781
        %v2844 = vpack.c.b16 %v2784, %v2782
        %v2845 = vpack.c.b16 %v2787, %v2785
        %v2846 = vpack.c.b16 %v2788, %v2786
        %v2847 = vpack.c.b16 %v2791, %v2789
        %v2848 = vpack.c.b16 %v2792, %v2790
        %v2849 = vpack.c.b16 %v2795, %v2793
        %v2850 = vpack.c.b16 %v2796, %v2794
        %v2851 = vpack.c.b16 %v2799, %v2797
        %v2852 = vpack.c.b16 %v2800, %v2798
        %v2853 = vpack.c.b16 %v2803, %v2801
        %v2854 = vpack.c.b16 %v2804, %v2802
        %v2855 = vpack.c.b16 %v2807, %v2805
        %v2856 = vpack.c.b16 %v2808, %v2806
        %v2857 = vpack.c.b16 %v2811, %v2809
        %v2858 = vpack.c.b16 %v2812, %v2810
        %v2859 = vpack.c.b16 %v2815, %v2813
        %v2860 = vpack.c.b16 %v2816, %v2814
        %v2861 = vpack.c.b16 %v2819, %v2817
        %v2862 = vpack.c.b16 %v2820, %v2818
        %v2863 = vpack.c.b16 %v2823, %v2821
        %v2864 = vpack.c.b16 %v2824, %v2822
        %v2865 = vpack.c.b16 %v2827, %v2825
        %v2866 = vpack.c.b16 %v2828, %v2826
        %v2867 = vpack.c.b16 %v2831, %v2829
        %v2868 = vpack.c.b16 %v2832, %v2830
        %v2869 = vpack.c.b16 %v2835, %v2833
        %v2870 = vpack.c.b16 %v2836, %v2834
        %v2871 = vpack.c.b16 %v2839, %v2837
        %v2872 = vpack.c.b16 %v2840, %v2838
        %2905 = vmatprep.subr.bf16.mxu0 %v2842
        %2906 = vmatpush1.bf16.msra.mxu0 %v2841
        %2907 = vmatprep.subr.bf16.mxu0 %v2844
        %2908 = vmatpush1.bf16.msra.mxu0 %v2843
        %2909 = vmatprep.subr.bf16.mxu0 %v2846
        %2910 = vmatpush1.bf16.msra.mxu0 %v2845
        %2911 = vmatprep.subr.bf16.mxu0 %v2848
        %2912 = vmatpush1.bf16.msra.mxu0 %v2847
        %2913 = vmatprep.subr.bf16.mxu0 %v2850
        %2914 = vmatpush1.bf16.msra.mxu0 %v2849
        %2915 = vmatprep.subr.bf16.mxu0 %v2852
        %2916 = vmatpush1.bf16.msra.mxu0 %v2851
        %2917 = vmatprep.subr.bf16.mxu0 %v2854
        %2918 = vmatpush1.bf16.msra.mxu0 %v2853
        %2919 = vmatprep.subr.bf16.mxu0 %v2856
        %2920 = vmatpush1.bf16.msra.mxu0 %v2855
        %2921 = vmatprep.subr.bf16.mxu0 %v2858
        %2922 = vmatpush1.bf16.msra.mxu0 %v2857
        %2923 = vmatprep.subr.bf16.mxu0 %v2860
        %2924 = vmatpush1.bf16.msra.mxu0 %v2859
        %2925 = vmatprep.subr.bf16.mxu0 %v2862
        %2926 = vmatpush1.bf16.msra.mxu0 %v2861
        %2927 = vmatprep.subr.bf16.mxu0 %v2864
        %2928 = vmatpush1.bf16.msra.mxu0 %v2863
        %2929 = vmatprep.subr.bf16.mxu0 %v2866
        %2930 = vmatpush1.bf16.msra.mxu0 %v2865
        %2931 = vmatprep.subr.bf16.mxu0 %v2868
        %2932 = vmatpush1.bf16.msra.mxu0 %v2867
        %2933 = vmatprep.subr.bf16.mxu0 %v2870
        %2934 = vmatpush1.bf16.msra.mxu0 %v2869
        %2935 = vmatprep.subr.bf16.mxu0 %v2872
        %2936 = vmatpush1.bf16.msra.mxu0 %v2871
        %2937 = vmatprep.mubr.bf16.mxu0 %v2701
        %2938 = vmatmul.mubr.bf16.gmra.mrb[0].mxu0 %v2700
        %v2939 = vpop.f32.mrb[0].mxu0
        %v2940 = vadd.f32 %v2738, %v2939
        %v2941 = vpop.f32.mrb[0].mxu0
        %v2942 = vadd.f32 %v2742, %v2941
        %v2943 = vpop.f32.mrb[0].mxu0
        %v2944 = vadd.f32 %v2738, %v2943
        %v2945 = vpop.f32.mrb[0].mxu0
        %v2946 = vadd.f32 %v2742, %v2945
        %2947 = vmatprep.mubr.bf16.mxu0 %v2703
        %2948 = vmatmul.mubr.bf16.gmra.mrb[0].mxu0 %v2702
        %v2949 = vpop.f32.mrb[0].mxu0
        %v2950 = vadd.f32 %v2738, %v2949
        %v2951 = vpop.f32.mrb[0].mxu0
        %v2952 = vadd.f32 %v2742, %v2951
        %v2953 = vpop.f32.mrb[0].mxu0
        %v2954 = vadd.f32 %v2738, %v2953
        %v2955 = vpop.f32.mrb[0].mxu0
        %v2956 = vadd.f32 %v2742, %v2955
        %2957 = vmatprep.mubr.bf16.mxu0 %v2705
        %2958 = vmatmul.mubr.bf16.gmra.mrb[0].mxu0 %v2704
        %v2959 = vpop.f32.mrb[0].mxu0
        %v2960 = vadd.f32 %v2738, %v2959
        %v2961 = vpop.f32.mrb[0].mxu0
        %v2962 = vadd.f32 %v2742, %v2961
        %v2963 = vpop.f32.mrb[0].mxu0
        %v2964 = vadd.f32 %v2738, %v2963
        %v2965 = vpop.f32.mrb[0].mxu0
        %v2966 = vadd.f32 %v2742, %v2965
        %2967 = vmatprep.mubr.bf16.mxu0 %v2707
        %2968 = vmatmul.mubr.bf16.gmra.mrb[0].mxu0 %v2706
        %v2969 = vpop.f32.mrb[0].mxu0
        %v2970 = vadd.f32 %v2738, %v2969
        %v2971 = vpop.f32.mrb[0].mxu0
        %v2972 = vadd.f32 %v2742, %v2971
        %v2973 = vpop.f32.mrb[0].mxu0
        %v2974 = vadd.f32 %v2738, %v2973
        %v2975 = vpop.f32.mrb[0].mxu0
        %v2976 = vadd.f32 %v2742, %v2975
        %2977 = vmatprep.mubr.bf16.mxu0 %v2709
        %2978 = vmatmul.mubr.bf16.gmra.mrb[0].mxu0 %v2708
        %v2979 = vpop.f32.mrb[0].mxu0
        %v2980 = vadd.f32 %v2738, %v2979
        %v2981 = vpop.f32.mrb[0].mxu0
        %v2982 = vadd.f32 %v2742, %v2981
        %v2983 = vpop.f32.mrb[0].mxu0
        %v2984 = vadd.f32 %v2738, %v2983
        %v2985 = vpop.f32.mrb[0].mxu0
        %v2986 = vadd.f32 %v2742, %v2985
        %2987 = vmatprep.mubr.bf16.mxu0 %v2711
        %2988 = vmatmul.mubr.bf16.gmra.mrb[0].mxu0 %v2710
        %v2989 = vpop.f32.mrb[0].mxu0
        %v2990 = vadd.f32 %v2738, %v2989
        %v2991 = vpop.f32.mrb[0].mxu0
        %v2992 = vadd.f32 %v2742, %v2991
        %v2993 = vpop.f32.mrb[0].mxu0
        %v2994 = vadd.f32 %v2738, %v2993
        %v2995 = vpop.f32.mrb[0].mxu0
        %v2996 = vadd.f32 %v2742, %v2995
        %2997 = vmatprep.mubr.bf16.mxu0 %v2713
        %2998 = vmatmul.mubr.bf16.gmra.mrb[0].mxu0 %v2712
        %v2999 = vpop.f32.mrb[0].mxu0
        %v3000 = vadd.f32 %v2738, %v2999
        %v3001 = vpop.f32.mrb[0].mxu0
        %v3002 = vadd.f32 %v2742, %v3001
        %v3003 = vpop.f32.mrb[0].mxu0
        %v3004 = vadd.f32 %v2738, %v3003
        %v3005 = vpop.f32.mrb[0].mxu0
        %v3006 = vadd.f32 %v2742, %v3005
        %3007 = vmatprep.mubr.bf16.mxu0 %v2715
        %3008 = vmatmul.mubr.bf16.gmra.mrb[0].mxu0 %v2714
        %v3009 = vpop.f32.mrb[0].mxu0
        %v3010 = vadd.f32 %v2738, %v3009
        %v3011 = vpop.f32.mrb[0].mxu0
        %v3012 = vadd.f32 %v2742, %v3011
        %v3013 = vpop.f32.mrb[0].mxu0
        %v3014 = vadd.f32 %v2738, %v3013
        %v3015 = vpop.f32.mrb[0].mxu0
        %v3016 = vadd.f32 %v2742, %v3015
        %3017 = vmatprep.mubr.bf16.mxu0 %v2717
        %3018 = vmatmul.mubr.bf16.gmra.mrb[0].mxu0 %v2716
        %v3019 = vpop.f32.mrb[0].mxu0
        %v3020 = vadd.f32 %v2738, %v3019
        %v3021 = vpop.f32.mrb[0].mxu0
        %v3022 = vadd.f32 %v2742, %v3021
        %v3023 = vpop.f32.mrb[0].mxu0
        %v3024 = vadd.f32 %v2738, %v3023
        %v3025 = vpop.f32.mrb[0].mxu0
        %v3026 = vadd.f32 %v2742, %v3025
        %3027 = vmatprep.mubr.bf16.mxu0 %v2719
        %3028 = vmatmul.mubr.bf16.gmra.mrb[0].mxu0 %v2718
        %v3029 = vpop.f32.mrb[0].mxu0
        %v3030 = vadd.f32 %v2738, %v3029
        %v3031 = vpop.f32.mrb[0].mxu0
        %v3032 = vadd.f32 %v2742, %v3031
        %v3033 = vpop.f32.mrb[0].mxu0
        %v3034 = vadd.f32 %v2738, %v3033
        %v3035 = vpop.f32.mrb[0].mxu0
        %v3036 = vadd.f32 %v2742, %v3035
        %3037 = vmatprep.mubr.bf16.mxu0 %v2721
        %3038 = vmatmul.mubr.bf16.gmra.mrb[0].mxu0 %v2720
        %v3039 = vpop.f32.mrb[0].mxu0
        %v3040 = vadd.f32 %v2738, %v3039
        %v3041 = vpop.f32.mrb[0].mxu0
        %v3042 = vadd.f32 %v2742, %v3041
        %v3043 = vpop.f32.mrb[0].mxu0
        %v3044 = vadd.f32 %v2738, %v3043
        %v3045 = vpop.f32.mrb[0].mxu0
        %v3046 = vadd.f32 %v2742, %v3045
        %3047 = vmatprep.mubr.bf16.mxu0 %v2723
        %3048 = vmatmul.mubr.bf16.gmra.mrb[0].mxu0 %v2722
        %v3049 = vpop.f32.mrb[0].mxu0
        %v3050 = vadd.f32 %v2738, %v3049
        %v3051 = vpop.f32.mrb[0].mxu0
        %v3052 = vadd.f32 %v2742, %v3051
        %v3053 = vpop.f32.mrb[0].mxu0
        %v3054 = vadd.f32 %v2738, %v3053
        %v3055 = vpop.f32.mrb[0].mxu0
        %v3056 = vadd.f32 %v2742, %v3055
        %3057 = vmatprep.mubr.bf16.mxu0 %v2725
        %3058 = vmatmul.mubr.bf16.gmra.mrb[0].mxu0 %v2724
        %v3059 = vpop.f32.mrb[0].mxu0
        %v3060 = vadd.f32 %v2738, %v3059
        %v3061 = vpop.f32.mrb[0].mxu0
        %v3062 = vadd.f32 %v2742, %v3061
        %v3063 = vpop.f32.mrb[0].mxu0
        %v3064 = vadd.f32 %v2738, %v3063
        %v3065 = vpop.f32.mrb[0].mxu0
        %v3066 = vadd.f32 %v2742, %v3065
        %3067 = vmatprep.mubr.bf16.mxu0 %v2727
        %3068 = vmatmul.mubr.bf16.gmra.mrb[0].mxu0 %v2726
        %v3069 = vpop.f32.mrb[0].mxu0
        %v3070 = vadd.f32 %v2738, %v3069
        %v3071 = vpop.f32.mrb[0].mxu0
        %v3072 = vadd.f32 %v2742, %v3071
        %v3073 = vpop.f32.mrb[0].mxu0
        %v3074 = vadd.f32 %v2738, %v3073
        %v3075 = vpop.f32.mrb[0].mxu0
        %v3076 = vadd.f32 %v2742, %v3075
        %3077 = vmatprep.mubr.bf16.mxu0 %v2729
        %3078 = vmatmul.mubr.bf16.gmra.mrb[0].mxu0 %v2728
        %v3079 = vpop.f32.mrb[0].mxu0
        %v3080 = vadd.f32 %v2738, %v3079
        %v3081 = vpop.f32.mrb[0].mxu0
        %v3082 = vadd.f32 %v2742, %v3081
        %v3083 = vpop.f32.mrb[0].mxu0
        %v3084 = vadd.f32 %v2738, %v3083
        %v3085 = vpop.f32.mrb[0].mxu0
        %v3086 = vadd.f32 %v2742, %v3085
        %3087 = vmatprep.mubr.bf16.mxu0 %v2731
        %3088 = vmatmul.mubr.bf16.gmra.mrb[0].mxu0 %v2730
        %v3089 = vpop.f32.mrb[0].mxu0
        %v3090 = vadd.f32 %v2738, %v3089
        %v3091 = vpop.f32.mrb[0].mxu0
        %v3092 = vadd.f32 %v2742, %v3091
        %v3093 = vpop.f32.mrb[0].mxu0
        %v3094 = vadd.f32 %v2738, %v3093
        %v3095 = vpop.f32.mrb[0].mxu0
        %v3096 = vadd.f32 %v2742, %v3095
        %3097 = vdwg.mxu0
        %v3098 = vmax.f32 %v2940, 0.0
        %v3099 = vmax.f32 %v2942, 0.0
        %v3100 = vmax.f32 %v2944, 0.0
        %v3101 = vmax.f32 %v2946, 0.0
        %v3102 = vmax.f32 %v2950, 0.0
        %v3103 = vmax.f32 %v2952, 0.0
        %v3104 = vmax.f32 %v2954, 0.0
        %v3105 = vmax.f32 %v2956, 0.0
        %v3106 = vmax.f32 %v2960, 0.0
        %v3107 = vmax.f32 %v2962, 0.0
        %v3108 = vmax.f32 %v2964, 0.0
        %v3109 = vmax.f32 %v2966, 0.0
        %v3110 = vmax.f32 %v2970, 0.0
        %v3111 = vmax.f32 %v2972, 0.0
        %v3112 = vmax.f32 %v2974, 0.0
        %v3113 = vmax.f32 %v2976, 0.0
        %v3114 = vmax.f32 %v2980, 0.0
        %v3115 = vmax.f32 %v2982, 0.0
        %v3116 = vmax.f32 %v2984, 0.0
        %v3117 = vmax.f32 %v2986, 0.0
        %v3118 = vmax.f32 %v2990, 0.0
        %v3119 = vmax.f32 %v2992, 0.0
        %v3120 = vmax.f32 %v2994, 0.0
        %v3121 = vmax.f32 %v2996, 0.0
        %v3122 = vmax.f32 %v3000, 0.0
        %v3123 = vmax.f32 %v3002, 0.0
        %v3124 = vmax.f32 %v3004, 0.0
        %v3125 = vmax.f32 %v3006, 0.0
        %v3126 = vmax.f32 %v3010, 0.0
        %v3127 = vmax.f32 %v3012, 0.0
        %v3128 = vmax.f32 %v3014, 0.0
        %v3129 = vmax.f32 %v3016, 0.0
        %v3130 = vmax.f32 %v3020, 0.0
        %v3131 = vmax.f32 %v3022, 0.0
        %v3132 = vmax.f32 %v3024, 0.0
        %v3133 = vmax.f32 %v3026, 0.0
        %v3134 = vmax.f32 %v3030, 0.0
        %v3135 = vmax.f32 %v3032, 0.0
        %v3136 = vmax.f32 %v3034, 0.0
        %v3137 = vmax.f32 %v3036, 0.0
        %v3138 = vmax.f32 %v3040, 0.0
        %v3139 = vmax.f32 %v3042, 0.0
        %v3140 = vmax.f32 %v3044, 0.0
        %v3141 = vmax.f32 %v3046, 0.0
        %v3142 = vmax.f32 %v3050, 0.0
        %v3143 = vmax.f32 %v3052, 0.0
        %v3144 = vmax.f32 %v3054, 0.0
        %v3145 = vmax.f32 %v3056, 0.0
        %v3146 = vmax.f32 %v3060, 0.0
        %v3147 = vmax.f32 %v3062, 0.0
        %v3148 = vmax.f32 %v3064, 0.0
        %v3149 = vmax.f32 %v3066, 0.0
        %v3150 = vmax.f32 %v3070, 0.0
        %v3151 = vmax.f32 %v3072, 0.0
        %v3152 = vmax.f32 %v3074, 0.0
        %v3153 = vmax.f32 %v3076, 0.0
        %v3154 = vmax.f32 %v3080, 0.0
        %v3155 = vmax.f32 %v3082, 0.0
        %v3156 = vmax.f32 %v3084, 0.0
        %v3157 = vmax.f32 %v3086, 0.0
        %v3158 = vmax.f32 %v3090, 0.0
        %v3159 = vmax.f32 %v3092, 0.0
        %v3160 = vmax.f32 %v3094, 0.0
        %v3161 = vmax.f32 %v3096, 0.0
        %s3162 = scalar_lea.vmem [#allocation3], 1280
        %v3163 = vld [vmem:[%s3162] sm:$0xff]
        %v3164 = vld [vmem:[%s3162 + $0x8] sm:$0xff]
        %v3165 = vld [vmem:[%s3162 + $0x10] sm:$0xff]
        %v3166 = vld [vmem:[%s3162 + $0x18] sm:$0xff]
        %v3167 = vld [vmem:[%s3162 + $0x20] sm:$0xff]
        %v3168 = vld [vmem:[%s3162 + $0x28] sm:$0xff]
        %v3169 = vld [vmem:[%s3162 + $0x30] sm:$0xff]
        %v3170 = vld [vmem:[%s3162 + $0x38] sm:$0xff]
        %v3171 = vld [vmem:[%s3162 + $0x40] sm:$0xff]
        %v3172 = vld [vmem:[%s3162 + $0x48] sm:$0xff]
        %v3173 = vld [vmem:[%s3162 + $0x50] sm:$0xff]
        %v3174 = vld [vmem:[%s3162 + $0x58] sm:$0xff]
        %v3175 = vld [vmem:[%s3162 + $0x60] sm:$0xff]
        %v3176 = vld [vmem:[%s3162 + $0x68] sm:$0xff]
        %v3177 = vld [vmem:[%s3162 + $0x70] sm:$0xff]
        %v3178 = vld [vmem:[%s3162 + $0x78] sm:$0xff]
        %v3179 = vld [vmem:[%s3162 + $0x80] sm:$0xff]
        %v3180 = vld [vmem:[%s3162 + $0x88] sm:$0xff]
        %v3181 = vld [vmem:[%s3162 + $0x90] sm:$0xff]
        %v3182 = vld [vmem:[%s3162 + $0x98] sm:$0xff]
        %v3183 = vld [vmem:[%s3162 + $0xa0] sm:$0xff]
        %v3184 = vld [vmem:[%s3162 + $0xa8] sm:$0xff]
        %v3185 = vld [vmem:[%s3162 + $0xb0] sm:$0xff]
        %v3186 = vld [vmem:[%s3162 + $0xb8] sm:$0xff]
        %v3187 = vld [vmem:[%s3162 + $0xc0] sm:$0xff]
        %v3188 = vld [vmem:[%s3162 + $0xc8] sm:$0xff]
        %v3189 = vld [vmem:[%s3162 + $0xd0] sm:$0xff]
        %v3190 = vld [vmem:[%s3162 + $0xd8] sm:$0xff]
        %v3191 = vld [vmem:[%s3162 + $0xe0] sm:$0xff]
        %v3192 = vld [vmem:[%s3162 + $0xe8] sm:$0xff]
        %v3193 = vld [vmem:[%s3162 + $0xf0] sm:$0xff]
        %v3194 = vld [vmem:[%s3162 + $0xf8] sm:$0xff]
        %v3195 = vpack.c.bf16 %v3100, %v3098
        %v3196 = vpack.c.bf16 %v3101, %v3099
        %v3197 = vpack.c.bf16 %v3104, %v3102
        %v3198 = vpack.c.bf16 %v3105, %v3103
        %v3199 = vpack.c.bf16 %v3108, %v3106
        %v3200 = vpack.c.bf16 %v3109, %v3107
        %v3201 = vpack.c.bf16 %v3112, %v3110
        %v3202 = vpack.c.bf16 %v3113, %v3111
        %v3203 = vpack.c.bf16 %v3116, %v3114
        %v3204 = vpack.c.bf16 %v3117, %v3115
        %v3205 = vpack.c.bf16 %v3120, %v3118
        %v3206 = vpack.c.bf16 %v3121, %v3119
        %v3207 = vpack.c.bf16 %v3124, %v3122
        %v3208 = vpack.c.bf16 %v3125, %v3123
        %v3209 = vpack.c.bf16 %v3128, %v3126
        %v3210 = vpack.c.bf16 %v3129, %v3127
        %v3211 = vpack.c.bf16 %v3132, %v3130
        %v3212 = vpack.c.bf16 %v3133, %v3131
        %v3213 = vpack.c.bf16 %v3136, %v3134
        %v3214 = vpack.c.bf16 %v3137, %v3135
        %v3215 = vpack.c.bf16 %v3140, %v3138
        %v3216 = vpack.c.bf16 %v3141, %v3139
        %v3217 = vpack.c.bf16 %v3144, %v3142
        %v3218 = vpack.c.bf16 %v3145, %v3143
        %v3219 = vpack.c.bf16 %v3148, %v3146
        %v3220 = vpack.c.bf16 %v3149, %v3147
        %v3221 = vpack.c.bf16 %v3152, %v3150
        %v3222 = vpack.c.bf16 %v3153, %v3151
        %v3223 = vpack.c.bf16 %v3156, %v3154
        %v3224 = vpack.c.bf16 %v3157, %v3155
        %v3225 = vpack.c.bf16 %v3160, %v3158
        %v3226 = vpack.c.bf16 %v3161, %v3159
        %s3227 = scalar_lea.vmem %s3, 6
        %v3228 = vld [vmem:[%s3227] ss:$8 sm:$0x3]
        %v3230 = vlaneseq
        %v3231 = vshrl.u32 %v3230, 7
        %v3232 = vsub.s32 0, %v3231
        %v3233 = vrot.slane %v3228, %v3232
        %v3234 = vlaneseq
        %v3235 = vshrl.u32 %v3234, 7
        %v3236 = vsub.s32 1, %v3235
        %v3237 = vrot.slane %v3228, %v3236
        %v3272 = vunpack.c.l.b16 %v3163
        %v3273 = vunpack.c.h.b16 %v3163
        %v3274 = vunpack.c.l.b16 %v3164
        %v3275 = vunpack.c.h.b16 %v3164
        %v3276 = vunpack.c.l.b16 %v3165
        %v3277 = vunpack.c.h.b16 %v3165
        %v3278 = vunpack.c.l.b16 %v3166
        %v3279 = vunpack.c.h.b16 %v3166
        %v3280 = vunpack.c.l.b16 %v3167
        %v3281 = vunpack.c.h.b16 %v3167
        %v3282 = vunpack.c.l.b16 %v3168
        %v3283 = vunpack.c.h.b16 %v3168
        %v3284 = vunpack.c.l.b16 %v3169
        %v3285 = vunpack.c.h.b16 %v3169
        %v3286 = vunpack.c.l.b16 %v3170
        %v3287 = vunpack.c.h.b16 %v3170
        %v3288 = vunpack.c.l.b16 %v3171
        %v3289 = vunpack.c.h.b16 %v3171
        %v3290 = vunpack.c.l.b16 %v3172
        %v3291 = vunpack.c.h.b16 %v3172
        %v3292 = vunpack.c.l.b16 %v3173
        %v3293 = vunpack.c.h.b16 %v3173
        %v3294 = vunpack.c.l.b16 %v3174
        %v3295 = vunpack.c.h.b16 %v3174
        %v3296 = vunpack.c.l.b16 %v3175
        %v3297 = vunpack.c.h.b16 %v3175
        %v3298 = vunpack.c.l.b16 %v3176
        %v3299 = vunpack.c.h.b16 %v3176
        %v3300 = vunpack.c.l.b16 %v3177
        %v3301 = vunpack.c.h.b16 %v3177
        %v3302 = vunpack.c.l.b16 %v3178
        %v3303 = vunpack.c.h.b16 %v3178
        %v3304 = vunpack.c.l.b16 %v3179
        %v3305 = vunpack.c.h.b16 %v3179
        %v3306 = vunpack.c.l.b16 %v3180
        %v3307 = vunpack.c.h.b16 %v3180
        %v3308 = vunpack.c.l.b16 %v3181
        %v3309 = vunpack.c.h.b16 %v3181
        %v3310 = vunpack.c.l.b16 %v3182
        %v3311 = vunpack.c.h.b16 %v3182
        %v3312 = vunpack.c.l.b16 %v3183
        %v3313 = vunpack.c.h.b16 %v3183
        %v3314 = vunpack.c.l.b16 %v3184
        %v3315 = vunpack.c.h.b16 %v3184
        %v3316 = vunpack.c.l.b16 %v3185
        %v3317 = vunpack.c.h.b16 %v3185
        %v3318 = vunpack.c.l.b16 %v3186
        %v3319 = vunpack.c.h.b16 %v3186
        %v3320 = vunpack.c.l.b16 %v3187
        %v3321 = vunpack.c.h.b16 %v3187
        %v3322 = vunpack.c.l.b16 %v3188
        %v3323 = vunpack.c.h.b16 %v3188
        %v3324 = vunpack.c.l.b16 %v3189
        %v3325 = vunpack.c.h.b16 %v3189
        %v3326 = vunpack.c.l.b16 %v3190
        %v3327 = vunpack.c.h.b16 %v3190
        %v3328 = vunpack.c.l.b16 %v3191
        %v3329 = vunpack.c.h.b16 %v3191
        %v3330 = vunpack.c.l.b16 %v3192
        %v3331 = vunpack.c.h.b16 %v3192
        %v3332 = vunpack.c.l.b16 %v3193
        %v3333 = vunpack.c.h.b16 %v3193
        %v3334 = vunpack.c.l.b16 %v3194
        %v3335 = vunpack.c.h.b16 %v3194
        %v3336 = vpack.c.b16 %v3274, %v3272
        %v3337 = vpack.c.b16 %v3275, %v3273
        %v3338 = vpack.c.b16 %v3278, %v3276
        %v3339 = vpack.c.b16 %v3279, %v3277
        %v3340 = vpack.c.b16 %v3282, %v3280
        %v3341 = vpack.c.b16 %v3283, %v3281
        %v3342 = vpack.c.b16 %v3286, %v3284
        %v3343 = vpack.c.b16 %v3287, %v3285
        %v3344 = vpack.c.b16 %v3290, %v3288
        %v3345 = vpack.c.b16 %v3291, %v3289
        %v3346 = vpack.c.b16 %v3294, %v3292
        %v3347 = vpack.c.b16 %v3295, %v3293
        %v3348 = vpack.c.b16 %v3298, %v3296
        %v3349 = vpack.c.b16 %v3299, %v3297
        %v3350 = vpack.c.b16 %v3302, %v3300
        %v3351 = vpack.c.b16 %v3303, %v3301
        %v3352 = vpack.c.b16 %v3306, %v3304
        %v3353 = vpack.c.b16 %v3307, %v3305
        %v3354 = vpack.c.b16 %v3310, %v3308
        %v3355 = vpack.c.b16 %v3311, %v3309
        %v3356 = vpack.c.b16 %v3314, %v3312
        %v3357 = vpack.c.b16 %v3315, %v3313
        %v3358 = vpack.c.b16 %v3318, %v3316
        %v3359 = vpack.c.b16 %v3319, %v3317
        %v3360 = vpack.c.b16 %v3322, %v3320
        %v3361 = vpack.c.b16 %v3323, %v3321
        %v3362 = vpack.c.b16 %v3326, %v3324
        %v3363 = vpack.c.b16 %v3327, %v3325
        %v3364 = vpack.c.b16 %v3330, %v3328
        %v3365 = vpack.c.b16 %v3331, %v3329
        %v3366 = vpack.c.b16 %v3334, %v3332
        %v3367 = vpack.c.b16 %v3335, %v3333
        %3400 = vmatprep.subr.bf16.mxu0 %v3337
        %3401 = vmatpush1.bf16.msra.mxu0 %v3336
        %3402 = vmatprep.subr.bf16.mxu0 %v3339
        %3403 = vmatpush1.bf16.msra.mxu0 %v3338
        %3404 = vmatprep.subr.bf16.mxu0 %v3341
        %3405 = vmatpush1.bf16.msra.mxu0 %v3340
        %3406 = vmatprep.subr.bf16.mxu0 %v3343
        %3407 = vmatpush1.bf16.msra.mxu0 %v3342
        %3408 = vmatprep.subr.bf16.mxu0 %v3345
        %3409 = vmatpush1.bf16.msra.mxu0 %v3344
        %3410 = vmatprep.subr.bf16.mxu0 %v3347
        %3411 = vmatpush1.bf16.msra.mxu0 %v3346
        %3412 = vmatprep.subr.bf16.mxu0 %v3349
        %3413 = vmatpush1.bf16.msra.mxu0 %v3348
        %3414 = vmatprep.subr.bf16.mxu0 %v3351
        %3415 = vmatpush1.bf16.msra.mxu0 %v3350
        %3416 = vmatprep.subr.bf16.mxu0 %v3353
        %3417 = vmatpush1.bf16.msra.mxu0 %v3352
        %3418 = vmatprep.subr.bf16.mxu0 %v3355
        %3419 = vmatpush1.bf16.msra.mxu0 %v3354
        %3420 = vmatprep.subr.bf16.mxu0 %v3357
        %3421 = vmatpush1.bf16.msra.mxu0 %v3356
        %3422 = vmatprep.subr.bf16.mxu0 %v3359
        %3423 = vmatpush1.bf16.msra.mxu0 %v3358
        %3424 = vmatprep.subr.bf16.mxu0 %v3361
        %3425 = vmatpush1.bf16.msra.mxu0 %v3360
        %3426 = vmatprep.subr.bf16.mxu0 %v3363
        %3427 = vmatpush1.bf16.msra.mxu0 %v3362
        %3428 = vmatprep.subr.bf16.mxu0 %v3365
        %3429 = vmatpush1.bf16.msra.mxu0 %v3364
        %3430 = vmatprep.subr.bf16.mxu0 %v3367
        %3431 = vmatpush1.bf16.msra.mxu0 %v3366
        %3432 = vmatprep.mubr.bf16.mxu0 %v3196
        %3433 = vmatmul.mubr.bf16.gmra.mrb[0].mxu0 %v3195
        %v3434 = vpop.f32.mrb[0].mxu0
        %v3435 = vadd.f32 %v3233, %v3434
        %v3436 = vpop.f32.mrb[0].mxu0
        %v3437 = vadd.f32 %v3237, %v3436
        %v3438 = vpop.f32.mrb[0].mxu0
        %v3439 = vadd.f32 %v3233, %v3438
        %v3440 = vpop.f32.mrb[0].mxu0
        %v3441 = vadd.f32 %v3237, %v3440
        %3442 = vmatprep.mubr.bf16.mxu0 %v3198
        %3443 = vmatmul.mubr.bf16.gmra.mrb[0].mxu0 %v3197
        %v3444 = vpop.f32.mrb[0].mxu0
        %v3445 = vadd.f32 %v3233, %v3444
        %v3446 = vpop.f32.mrb[0].mxu0
        %v3447 = vadd.f32 %v3237, %v3446
        %v3448 = vpop.f32.mrb[0].mxu0
        %v3449 = vadd.f32 %v3233, %v3448
        %v3450 = vpop.f32.mrb[0].mxu0
        %v3451 = vadd.f32 %v3237, %v3450
        %3452 = vmatprep.mubr.bf16.mxu0 %v3200
        %3453 = vmatmul.mubr.bf16.gmra.mrb[0].mxu0 %v3199
        %v3454 = vpop.f32.mrb[0].mxu0
        %v3455 = vadd.f32 %v3233, %v3454
        %v3456 = vpop.f32.mrb[0].mxu0
        %v3457 = vadd.f32 %v3237, %v3456
        %v3458 = vpop.f32.mrb[0].mxu0
        %v3459 = vadd.f32 %v3233, %v3458
        %v3460 = vpop.f32.mrb[0].mxu0
        %v3461 = vadd.f32 %v3237, %v3460
        %3462 = vmatprep.mubr.bf16.mxu0 %v3202
        %3463 = vmatmul.mubr.bf16.gmra.mrb[0].mxu0 %v3201
        %v3464 = vpop.f32.mrb[0].mxu0
        %v3465 = vadd.f32 %v3233, %v3464
        %v3466 = vpop.f32.mrb[0].mxu0
        %v3467 = vadd.f32 %v3237, %v3466
        %v3468 = vpop.f32.mrb[0].mxu0
        %v3469 = vadd.f32 %v3233, %v3468
        %v3470 = vpop.f32.mrb[0].mxu0
        %v3471 = vadd.f32 %v3237, %v3470
        %3472 = vmatprep.mubr.bf16.mxu0 %v3204
        %3473 = vmatmul.mubr.bf16.gmra.mrb[0].mxu0 %v3203
        %v3474 = vpop.f32.mrb[0].mxu0
        %v3475 = vadd.f32 %v3233, %v3474
        %v3476 = vpop.f32.mrb[0].mxu0
        %v3477 = vadd.f32 %v3237, %v3476
        %v3478 = vpop.f32.mrb[0].mxu0
        %v3479 = vadd.f32 %v3233, %v3478
        %v3480 = vpop.f32.mrb[0].mxu0
        %v3481 = vadd.f32 %v3237, %v3480
        %3482 = vmatprep.mubr.bf16.mxu0 %v3206
        %3483 = vmatmul.mubr.bf16.gmra.mrb[0].mxu0 %v3205
        %v3484 = vpop.f32.mrb[0].mxu0
        %v3485 = vadd.f32 %v3233, %v3484
        %v3486 = vpop.f32.mrb[0].mxu0
        %v3487 = vadd.f32 %v3237, %v3486
        %v3488 = vpop.f32.mrb[0].mxu0
        %v3489 = vadd.f32 %v3233, %v3488
        %v3490 = vpop.f32.mrb[0].mxu0
        %v3491 = vadd.f32 %v3237, %v3490
        %3492 = vmatprep.mubr.bf16.mxu0 %v3208
        %3493 = vmatmul.mubr.bf16.gmra.mrb[0].mxu0 %v3207
        %v3494 = vpop.f32.mrb[0].mxu0
        %v3495 = vadd.f32 %v3233, %v3494
        %v3496 = vpop.f32.mrb[0].mxu0
        %v3497 = vadd.f32 %v3237, %v3496
        %v3498 = vpop.f32.mrb[0].mxu0
        %v3499 = vadd.f32 %v3233, %v3498
        %v3500 = vpop.f32.mrb[0].mxu0
        %v3501 = vadd.f32 %v3237, %v3500
        %3502 = vmatprep.mubr.bf16.mxu0 %v3210
        %3503 = vmatmul.mubr.bf16.gmra.mrb[0].mxu0 %v3209
        %v3504 = vpop.f32.mrb[0].mxu0
        %v3505 = vadd.f32 %v3233, %v3504
        %v3506 = vpop.f32.mrb[0].mxu0
        %v3507 = vadd.f32 %v3237, %v3506
        %v3508 = vpop.f32.mrb[0].mxu0
        %v3509 = vadd.f32 %v3233, %v3508
        %v3510 = vpop.f32.mrb[0].mxu0
        %v3511 = vadd.f32 %v3237, %v3510
        %3512 = vmatprep.mubr.bf16.mxu0 %v3212
        %3513 = vmatmul.mubr.bf16.gmra.mrb[0].mxu0 %v3211
        %v3514 = vpop.f32.mrb[0].mxu0
        %v3515 = vadd.f32 %v3233, %v3514
        %v3516 = vpop.f32.mrb[0].mxu0
        %v3517 = vadd.f32 %v3237, %v3516
        %v3518 = vpop.f32.mrb[0].mxu0
        %v3519 = vadd.f32 %v3233, %v3518
        %v3520 = vpop.f32.mrb[0].mxu0
        %v3521 = vadd.f32 %v3237, %v3520
        %3522 = vmatprep.mubr.bf16.mxu0 %v3214
        %3523 = vmatmul.mubr.bf16.gmra.mrb[0].mxu0 %v3213
        %v3524 = vpop.f32.mrb[0].mxu0
        %v3525 = vadd.f32 %v3233, %v3524
        %v3526 = vpop.f32.mrb[0].mxu0
        %v3527 = vadd.f32 %v3237, %v3526
        %v3528 = vpop.f32.mrb[0].mxu0
        %v3529 = vadd.f32 %v3233, %v3528
        %v3530 = vpop.f32.mrb[0].mxu0
        %v3531 = vadd.f32 %v3237, %v3530
        %3532 = vmatprep.mubr.bf16.mxu0 %v3216
        %3533 = vmatmul.mubr.bf16.gmra.mrb[0].mxu0 %v3215
        %v3534 = vpop.f32.mrb[0].mxu0
        %v3535 = vadd.f32 %v3233, %v3534
        %v3536 = vpop.f32.mrb[0].mxu0
        %v3537 = vadd.f32 %v3237, %v3536
        %v3538 = vpop.f32.mrb[0].mxu0
        %v3539 = vadd.f32 %v3233, %v3538
        %v3540 = vpop.f32.mrb[0].mxu0
        %v3541 = vadd.f32 %v3237, %v3540
        %3542 = vmatprep.mubr.bf16.mxu0 %v3218
        %3543 = vmatmul.mubr.bf16.gmra.mrb[0].mxu0 %v3217
        %v3544 = vpop.f32.mrb[0].mxu0
        %v3545 = vadd.f32 %v3233, %v3544
        %v3546 = vpop.f32.mrb[0].mxu0
        %v3547 = vadd.f32 %v3237, %v3546
        %v3548 = vpop.f32.mrb[0].mxu0
        %v3549 = vadd.f32 %v3233, %v3548
        %v3550 = vpop.f32.mrb[0].mxu0
        %v3551 = vadd.f32 %v3237, %v3550
        %3552 = vmatprep.mubr.bf16.mxu0 %v3220
        %3553 = vmatmul.mubr.bf16.gmra.mrb[0].mxu0 %v3219
        %v3554 = vpop.f32.mrb[0].mxu0
        %v3555 = vadd.f32 %v3233, %v3554
        %v3556 = vpop.f32.mrb[0].mxu0
        %v3557 = vadd.f32 %v3237, %v3556
        %v3558 = vpop.f32.mrb[0].mxu0
        %v3559 = vadd.f32 %v3233, %v3558
        %v3560 = vpop.f32.mrb[0].mxu0
        %v3561 = vadd.f32 %v3237, %v3560
        %3562 = vmatprep.mubr.bf16.mxu0 %v3222
        %3563 = vmatmul.mubr.bf16.gmra.mrb[0].mxu0 %v3221
        %v3564 = vpop.f32.mrb[0].mxu0
        %v3565 = vadd.f32 %v3233, %v3564
        %v3566 = vpop.f32.mrb[0].mxu0
        %v3567 = vadd.f32 %v3237, %v3566
        %v3568 = vpop.f32.mrb[0].mxu0
        %v3569 = vadd.f32 %v3233, %v3568
        %v3570 = vpop.f32.mrb[0].mxu0
        %v3571 = vadd.f32 %v3237, %v3570
        %3572 = vmatprep.mubr.bf16.mxu0 %v3224
        %3573 = vmatmul.mubr.bf16.gmra.mrb[0].mxu0 %v3223
        %v3574 = vpop.f32.mrb[0].mxu0
        %v3575 = vadd.f32 %v3233, %v3574
        %v3576 = vpop.f32.mrb[0].mxu0
        %v3577 = vadd.f32 %v3237, %v3576
        %v3578 = vpop.f32.mrb[0].mxu0
        %v3579 = vadd.f32 %v3233, %v3578
        %v3580 = vpop.f32.mrb[0].mxu0
        %v3581 = vadd.f32 %v3237, %v3580
        %3582 = vmatprep.mubr.bf16.mxu0 %v3226
        %3583 = vmatmul.mubr.bf16.gmra.mrb[0].mxu0 %v3225
        %v3584 = vpop.f32.mrb[0].mxu0
        %v3585 = vadd.f32 %v3233, %v3584
        %v3586 = vpop.f32.mrb[0].mxu0
        %v3587 = vadd.f32 %v3237, %v3586
        %v3588 = vpop.f32.mrb[0].mxu0
        %v3589 = vadd.f32 %v3233, %v3588
        %v3590 = vpop.f32.mrb[0].mxu0
        %v3591 = vadd.f32 %v3237, %v3590
        %3592 = vdwg.mxu0
        %v3593 = vmax.f32 %v3435, 0.0
        %v3594 = vmax.f32 %v3437, 0.0
        %v3595 = vmax.f32 %v3439, 0.0
        %v3596 = vmax.f32 %v3441, 0.0
        %v3597 = vmax.f32 %v3445, 0.0
        %v3598 = vmax.f32 %v3447, 0.0
        %v3599 = vmax.f32 %v3449, 0.0
        %v3600 = vmax.f32 %v3451, 0.0
        %v3601 = vmax.f32 %v3455, 0.0
        %v3602 = vmax.f32 %v3457, 0.0
        %v3603 = vmax.f32 %v3459, 0.0
        %v3604 = vmax.f32 %v3461, 0.0
        %v3605 = vmax.f32 %v3465, 0.0
        %v3606 = vmax.f32 %v3467, 0.0
        %v3607 = vmax.f32 %v3469, 0.0
        %v3608 = vmax.f32 %v3471, 0.0
        %v3609 = vmax.f32 %v3475, 0.0
        %v3610 = vmax.f32 %v3477, 0.0
        %v3611 = vmax.f32 %v3479, 0.0
        %v3612 = vmax.f32 %v3481, 0.0
        %v3613 = vmax.f32 %v3485, 0.0
        %v3614 = vmax.f32 %v3487, 0.0
        %v3615 = vmax.f32 %v3489, 0.0
        %v3616 = vmax.f32 %v3491, 0.0
        %v3617 = vmax.f32 %v3495, 0.0
        %v3618 = vmax.f32 %v3497, 0.0
        %v3619 = vmax.f32 %v3499, 0.0
        %v3620 = vmax.f32 %v3501, 0.0
        %v3621 = vmax.f32 %v3505, 0.0
        %v3622 = vmax.f32 %v3507, 0.0
        %v3623 = vmax.f32 %v3509, 0.0
        %v3624 = vmax.f32 %v3511, 0.0
        %v3625 = vmax.f32 %v3515, 0.0
        %v3626 = vmax.f32 %v3517, 0.0
        %v3627 = vmax.f32 %v3519, 0.0
        %v3628 = vmax.f32 %v3521, 0.0
        %v3629 = vmax.f32 %v3525, 0.0
        %v3630 = vmax.f32 %v3527, 0.0
        %v3631 = vmax.f32 %v3529, 0.0
        %v3632 = vmax.f32 %v3531, 0.0
        %v3633 = vmax.f32 %v3535, 0.0
        %v3634 = vmax.f32 %v3537, 0.0
        %v3635 = vmax.f32 %v3539, 0.0
        %v3636 = vmax.f32 %v3541, 0.0
        %v3637 = vmax.f32 %v3545, 0.0
        %v3638 = vmax.f32 %v3547, 0.0
        %v3639 = vmax.f32 %v3549, 0.0
        %v3640 = vmax.f32 %v3551, 0.0
        %v3641 = vmax.f32 %v3555, 0.0
        %v3642 = vmax.f32 %v3557, 0.0
        %v3643 = vmax.f32 %v3559, 0.0
        %v3644 = vmax.f32 %v3561, 0.0
        %v3645 = vmax.f32 %v3565, 0.0
        %v3646 = vmax.f32 %v3567, 0.0
        %v3647 = vmax.f32 %v3569, 0.0
        %v3648 = vmax.f32 %v3571, 0.0
        %v3649 = vmax.f32 %v3575, 0.0
        %v3650 = vmax.f32 %v3577, 0.0
        %v3651 = vmax.f32 %v3579, 0.0
        %v3652 = vmax.f32 %v3581, 0.0
        %v3653 = vmax.f32 %v3585, 0.0
        %v3654 = vmax.f32 %v3587, 0.0
        %v3655 = vmax.f32 %v3589, 0.0
        %v3656 = vmax.f32 %v3591, 0.0
        %v3657 = vadd.f32 %v2603, %v3593
        %v3658 = vadd.f32 %v2604, %v3594
        %v3659 = vadd.f32 %v2605, %v3595
        %v3660 = vadd.f32 %v2606, %v3596
        %v3661 = vadd.f32 %v2607, %v3597
        %v3662 = vadd.f32 %v2608, %v3598
        %v3663 = vadd.f32 %v2609, %v3599
        %v3664 = vadd.f32 %v2610, %v3600
        %v3665 = vadd.f32 %v2611, %v3601
        %v3666 = vadd.f32 %v2612, %v3602
        %v3667 = vadd.f32 %v2613, %v3603
        %v3668 = vadd.f32 %v2614, %v3604
        %v3669 = vadd.f32 %v2615, %v3605
        %v3670 = vadd.f32 %v2616, %v3606
        %v3671 = vadd.f32 %v2617, %v3607
        %v3672 = vadd.f32 %v2618, %v3608
        %v3673 = vadd.f32 %v2619, %v3609
        %v3674 = vadd.f32 %v2620, %v3610
        %v3675 = vadd.f32 %v2621, %v3611
        %v3676 = vadd.f32 %v2622, %v3612
        %v3677 = vadd.f32 %v2623, %v3613
        %v3678 = vadd.f32 %v2624, %v3614
        %v3679 = vadd.f32 %v2625, %v3615
        %v3680 = vadd.f32 %v2626, %v3616
        %v3681 = vadd.f32 %v2627, %v3617
        %v3682 = vadd.f32 %v2628, %v3618
        %v3683 = vadd.f32 %v2629, %v3619
        %v3684 = vadd.f32 %v2630, %v3620
        %v3685 = vadd.f32 %v2631, %v3621
        %v3686 = vadd.f32 %v2632, %v3622
        %v3687 = vadd.f32 %v2633, %v3623
        %v3688 = vadd.f32 %v2634, %v3624
        %v3689 = vadd.f32 %v2635, %v3625
        %v3690 = vadd.f32 %v2636, %v3626
        %v3691 = vadd.f32 %v2637, %v3627
        %v3692 = vadd.f32 %v2638, %v3628
        %v3693 = vadd.f32 %v2639, %v3629
        %v3694 = vadd.f32 %v2640, %v3630
        %v3695 = vadd.f32 %v2641, %v3631
        %v3696 = vadd.f32 %v2642, %v3632
        %v3697 = vadd.f32 %v2643, %v3633
        %v3698 = vadd.f32 %v2644, %v3634
        %v3699 = vadd.f32 %v2645, %v3635
        %v3700 = vadd.f32 %v2646, %v3636
        %v3701 = vadd.f32 %v2647, %v3637
        %v3702 = vadd.f32 %v2648, %v3638
        %v3703 = vadd.f32 %v2649, %v3639
        %v3704 = vadd.f32 %v2650, %v3640
        %v3705 = vadd.f32 %v2651, %v3641
        %v3706 = vadd.f32 %v2652, %v3642
        %v3707 = vadd.f32 %v2653, %v3643
        %v3708 = vadd.f32 %v2654, %v3644
        %v3709 = vadd.f32 %v2655, %v3645
        %v3710 = vadd.f32 %v2656, %v3646
        %v3711 = vadd.f32 %v2657, %v3647
        %v3712 = vadd.f32 %v2658, %v3648
        %v3713 = vadd.f32 %v2659, %v3649
        %v3714 = vadd.f32 %v2660, %v3650
        %v3715 = vadd.f32 %v2661, %v3651
        %v3716 = vadd.f32 %v2662, %v3652
        %v3717 = vadd.f32 %v2663, %v3653
        %v3718 = vadd.f32 %v2664, %v3654
        %v3719 = vadd.f32 %v2665, %v3655
        %v3720 = vadd.f32 %v2666, %v3656
        %s3721 = scalar_lea.vmem %s3, 7
        %v3722 = vld [vmem:[%s3721] ss:$8 sm:$0x3]
        %v3724 = vlaneseq
        %v3725 = vshrl.u32 %v3724, 7
        %v3726 = vsub.s32 0, %v3725
        %v3727 = vrot.slane %v3722, %v3726
        %v3728 = vlaneseq
        %v3729 = vshrl.u32 %v3728, 7
        %v3730 = vsub.s32 1, %v3729
        %v3731 = vrot.slane %v3722, %v3730
        %v3734 = vmul.f32 %v3657, %v3727
        %v3735 = vmul.f32 %v3658, %v3731
        %v3736 = vmul.f32 %v3659, %v3727
        %v3737 = vmul.f32 %v3660, %v3731
        %v3738 = vmul.f32 %v3661, %v3727
        %v3739 = vmul.f32 %v3662, %v3731
        %v3740 = vmul.f32 %v3663, %v3727
        %v3741 = vmul.f32 %v3664, %v3731
        %v3742 = vmul.f32 %v3665, %v3727
        %v3743 = vmul.f32 %v3666, %v3731
        %v3744 = vmul.f32 %v3667, %v3727
        %v3745 = vmul.f32 %v3668, %v3731
        %v3746 = vmul.f32 %v3669, %v3727
        %v3747 = vmul.f32 %v3670, %v3731
        %v3748 = vmul.f32 %v3671, %v3727
        %v3749 = vmul.f32 %v3672, %v3731
        %v3750 = vmul.f32 %v3673, %v3727
        %v3751 = vmul.f32 %v3674, %v3731
        %v3752 = vmul.f32 %v3675, %v3727
        %v3753 = vmul.f32 %v3676, %v3731
        %v3754 = vmul.f32 %v3677, %v3727
        %v3755 = vmul.f32 %v3678, %v3731
        %v3756 = vmul.f32 %v3679, %v3727
        %v3757 = vmul.f32 %v3680, %v3731
        %v3758 = vmul.f32 %v3681, %v3727
        %v3759 = vmul.f32 %v3682, %v3731
        %v3760 = vmul.f32 %v3683, %v3727
        %v3761 = vmul.f32 %v3684, %v3731
        %v3762 = vmul.f32 %v3685, %v3727
        %v3763 = vmul.f32 %v3686, %v3731
        %v3764 = vmul.f32 %v3687, %v3727
        %v3765 = vmul.f32 %v3688, %v3731
        %v3766 = vmul.f32 %v3689, %v3727
        %v3767 = vmul.f32 %v3690, %v3731
        %v3768 = vmul.f32 %v3691, %v3727
        %v3769 = vmul.f32 %v3692, %v3731
        %v3770 = vmul.f32 %v3693, %v3727
        %v3771 = vmul.f32 %v3694, %v3731
        %v3772 = vmul.f32 %v3695, %v3727
        %v3773 = vmul.f32 %v3696, %v3731
        %v3774 = vmul.f32 %v3697, %v3727
        %v3775 = vmul.f32 %v3698, %v3731
        %v3776 = vmul.f32 %v3699, %v3727
        %v3777 = vmul.f32 %v3700, %v3731
        %v3778 = vmul.f32 %v3701, %v3727
        %v3779 = vmul.f32 %v3702, %v3731
        %v3780 = vmul.f32 %v3703, %v3727
        %v3781 = vmul.f32 %v3704, %v3731
        %v3782 = vmul.f32 %v3705, %v3727
        %v3783 = vmul.f32 %v3706, %v3731
        %v3784 = vmul.f32 %v3707, %v3727
        %v3785 = vmul.f32 %v3708, %v3731
        %v3786 = vmul.f32 %v3709, %v3727
        %v3787 = vmul.f32 %v3710, %v3731
        %v3788 = vmul.f32 %v3711, %v3727
        %v3789 = vmul.f32 %v3712, %v3731
        %v3790 = vmul.f32 %v3713, %v3727
        %v3791 = vmul.f32 %v3714, %v3731
        %v3792 = vmul.f32 %v3715, %v3727
        %v3793 = vmul.f32 %v3716, %v3731
        %v3794 = vmul.f32 %v3717, %v3727
        %v3795 = vmul.f32 %v3718, %v3731
        %v3796 = vmul.f32 %v3719, %v3727
        %v3797 = vmul.f32 %v3720, %v3731
        %v3798 = vadd.f32 %v3734, %v3735
        %3799 = vadd.xlane.f32.xlu0 %v3798
        %v3800 = vpop.xlane.xlu0 %3799
        %v3801 = vadd.f32 %v3736, %v3737
        %3802 = vadd.xlane.f32.xlu0 %v3801
        %v3803 = vpop.xlane.xlu0 %3802
        %v3804 = vadd.f32 %v3738, %v3739
        %3805 = vadd.xlane.f32.xlu0 %v3804
        %v3806 = vpop.xlane.xlu0 %3805
        %v3807 = vadd.f32 %v3740, %v3741
        %3808 = vadd.xlane.f32.xlu0 %v3807
        %v3809 = vpop.xlane.xlu0 %3808
        %v3810 = vadd.f32 %v3742, %v3743
        %3811 = vadd.xlane.f32.xlu0 %v3810
        %v3812 = vpop.xlane.xlu0 %3811
        %v3813 = vadd.f32 %v3744, %v3745
        %3814 = vadd.xlane.f32.xlu0 %v3813
        %v3815 = vpop.xlane.xlu0 %3814
        %v3816 = vadd.f32 %v3746, %v3747
        %3817 = vadd.xlane.f32.xlu0 %v3816
        %v3818 = vpop.xlane.xlu0 %3817
        %v3819 = vadd.f32 %v3748, %v3749
        %3820 = vadd.xlane.f32.xlu0 %v3819
        %v3821 = vpop.xlane.xlu0 %3820
        %v3822 = vadd.f32 %v3750, %v3751
        %3823 = vadd.xlane.f32.xlu0 %v3822
        %v3824 = vpop.xlane.xlu0 %3823
        %v3825 = vadd.f32 %v3752, %v3753
        %3826 = vadd.xlane.f32.xlu0 %v3825
        %v3827 = vpop.xlane.xlu0 %3826
        %v3828 = vadd.f32 %v3754, %v3755
        %3829 = vadd.xlane.f32.xlu0 %v3828
        %v3830 = vpop.xlane.xlu0 %3829
        %v3831 = vadd.f32 %v3756, %v3757
        %3832 = vadd.xlane.f32.xlu0 %v3831
        %v3833 = vpop.xlane.xlu0 %3832
        %v3834 = vadd.f32 %v3758, %v3759
        %3835 = vadd.xlane.f32.xlu0 %v3834
        %v3836 = vpop.xlane.xlu0 %3835
        %v3837 = vadd.f32 %v3760, %v3761
        %3838 = vadd.xlane.f32.xlu0 %v3837
        %v3839 = vpop.xlane.xlu0 %3838
        %v3840 = vadd.f32 %v3762, %v3763
        %3841 = vadd.xlane.f32.xlu0 %v3840
        %v3842 = vpop.xlane.xlu0 %3841
        %v3843 = vadd.f32 %v3764, %v3765
        %3844 = vadd.xlane.f32.xlu0 %v3843
        %v3845 = vpop.xlane.xlu0 %3844
        %v3846 = vadd.f32 %v3766, %v3767
        %3847 = vadd.xlane.f32.xlu0 %v3846
        %v3848 = vpop.xlane.xlu0 %3847
        %v3849 = vadd.f32 %v3768, %v3769
        %3850 = vadd.xlane.f32.xlu0 %v3849
        %v3851 = vpop.xlane.xlu0 %3850
        %v3852 = vadd.f32 %v3770, %v3771
        %3853 = vadd.xlane.f32.xlu0 %v3852
        %v3854 = vpop.xlane.xlu0 %3853
        %v3855 = vadd.f32 %v3772, %v3773
        %3856 = vadd.xlane.f32.xlu0 %v3855
        %v3857 = vpop.xlane.xlu0 %3856
        %v3858 = vadd.f32 %v3774, %v3775
        %3859 = vadd.xlane.f32.xlu0 %v3858
        %v3860 = vpop.xlane.xlu0 %3859
        %v3861 = vadd.f32 %v3776, %v3777
        %3862 = vadd.xlane.f32.xlu0 %v3861
        %v3863 = vpop.xlane.xlu0 %3862
        %v3864 = vadd.f32 %v3778, %v3779
        %3865 = vadd.xlane.f32.xlu0 %v3864
        %v3866 = vpop.xlane.xlu0 %3865
        %v3867 = vadd.f32 %v3780, %v3781
        %3868 = vadd.xlane.f32.xlu0 %v3867
        %v3869 = vpop.xlane.xlu0 %3868
        %v3870 = vadd.f32 %v3782, %v3783
        %3871 = vadd.xlane.f32.xlu0 %v3870
        %v3872 = vpop.xlane.xlu0 %3871
        %v3873 = vadd.f32 %v3784, %v3785
        %3874 = vadd.xlane.f32.xlu0 %v3873
        %v3875 = vpop.xlane.xlu0 %3874
        %v3876 = vadd.f32 %v3786, %v3787
        %3877 = vadd.xlane.f32.xlu0 %v3876
        %v3878 = vpop.xlane.xlu0 %3877
        %v3879 = vadd.f32 %v3788, %v3789
        %3880 = vadd.xlane.f32.xlu0 %v3879
        %v3881 = vpop.xlane.xlu0 %3880
        %v3882 = vadd.f32 %v3790, %v3791
        %3883 = vadd.xlane.f32.xlu0 %v3882
        %v3884 = vpop.xlane.xlu0 %3883
        %v3885 = vadd.f32 %v3792, %v3793
        %3886 = vadd.xlane.f32.xlu0 %v3885
        %v3887 = vpop.xlane.xlu0 %3886
        %v3888 = vadd.f32 %v3794, %v3795
        %3889 = vadd.xlane.f32.xlu0 %v3888
        %v3890 = vpop.xlane.xlu0 %3889
        %v3891 = vadd.f32 %v3796, %v3797
        %3892 = vadd.xlane.f32.xlu0 %v3891
        %v3893 = vpop.xlane.xlu0 %3892
        %v3894 = vld [vmem:[#allocation2] sm:$0x1]
        %v3896 = vlaneseq
        %v3897 = vshrl.u32 %v3896, 7
        %v3898 = vsub.s32 0, %v3897
        %v3899 = vrot.slane %v3894, %v3898
        %v3901 = vadd.f32 %v3800, %v3899
        %v3902 = vadd.f32 %v3803, %v3899
        %v3903 = vadd.f32 %v3806, %v3899
        %v3904 = vadd.f32 %v3809, %v3899
        %v3905 = vadd.f32 %v3812, %v3899
        %v3906 = vadd.f32 %v3815, %v3899
        %v3907 = vadd.f32 %v3818, %v3899
        %v3908 = vadd.f32 %v3821, %v3899
        %v3909 = vadd.f32 %v3824, %v3899
        %v3910 = vadd.f32 %v3827, %v3899
        %v3911 = vadd.f32 %v3830, %v3899
        %v3912 = vadd.f32 %v3833, %v3899
        %v3913 = vadd.f32 %v3836, %v3899
        %v3914 = vadd.f32 %v3839, %v3899
        %v3915 = vadd.f32 %v3842, %v3899
        %v3916 = vadd.f32 %v3845, %v3899
        %v3917 = vadd.f32 %v3848, %v3899
        %v3918 = vadd.f32 %v3851, %v3899
        %v3919 = vadd.f32 %v3854, %v3899
        %v3920 = vadd.f32 %v3857, %v3899
        %v3921 = vadd.f32 %v3860, %v3899
        %v3922 = vadd.f32 %v3863, %v3899
        %v3923 = vadd.f32 %v3866, %v3899
        %v3924 = vadd.f32 %v3869, %v3899
        %v3925 = vadd.f32 %v3872, %v3899
        %v3926 = vadd.f32 %v3875, %v3899
        %v3927 = vadd.f32 %v3878, %v3899
        %v3928 = vadd.f32 %v3881, %v3899
        %v3929 = vadd.f32 %v3884, %v3899
        %v3930 = vadd.f32 %v3887, %v3899
        %v3931 = vadd.f32 %v3890, %v3899
        %v3932 = vadd.f32 %v3893, %v3899
        %v3933 = vsub.f32 0.0, %v3901
        %v3934 = vsub.f32 0.0, %v3902
        %v3935 = vsub.f32 0.0, %v3903
        %v3936 = vsub.f32 0.0, %v3904
        %v3937 = vsub.f32 0.0, %v3905
        %v3938 = vsub.f32 0.0, %v3906
        %v3939 = vsub.f32 0.0, %v3907
        %v3940 = vsub.f32 0.0, %v3908
        %v3941 = vsub.f32 0.0, %v3909
        %v3942 = vsub.f32 0.0, %v3910
        %v3943 = vsub.f32 0.0, %v3911
        %v3944 = vsub.f32 0.0, %v3912
        %v3945 = vsub.f32 0.0, %v3913
        %v3946 = vsub.f32 0.0, %v3914
        %v3947 = vsub.f32 0.0, %v3915
        %v3948 = vsub.f32 0.0, %v3916
        %v3949 = vsub.f32 0.0, %v3917
        %v3950 = vsub.f32 0.0, %v3918
        %v3951 = vsub.f32 0.0, %v3919
        %v3952 = vsub.f32 0.0, %v3920
        %v3953 = vsub.f32 0.0, %v3921
        %v3954 = vsub.f32 0.0, %v3922
        %v3955 = vsub.f32 0.0, %v3923
        %v3956 = vsub.f32 0.0, %v3924
        %v3957 = vsub.f32 0.0, %v3925
        %v3958 = vsub.f32 0.0, %v3926
        %v3959 = vsub.f32 0.0, %v3927
        %v3960 = vsub.f32 0.0, %v3928
        %v3961 = vsub.f32 0.0, %v3929
        %v3962 = vsub.f32 0.0, %v3930
        %v3963 = vsub.f32 0.0, %v3931
        %v3964 = vsub.f32 0.0, %v3932
        %v3965 = vmul.f32 %v3933, 1.442695
        %v3966 = vpow.pop %v3965
        %v3967 = vmul.f32 %v3934, 1.442695
        %v3968 = vpow.pop %v3967
        %v3969 = vmul.f32 %v3935, 1.442695
        %v3970 = vpow.pop %v3969
        %v3971 = vmul.f32 %v3936, 1.442695
        %v3972 = vpow.pop %v3971
        %v3973 = vmul.f32 %v3937, 1.442695
        %v3974 = vpow.pop %v3973
        %v3975 = vmul.f32 %v3938, 1.442695
        %v3976 = vpow.pop %v3975
        %v3977 = vmul.f32 %v3939, 1.442695
        %v3978 = vpow.pop %v3977
        %v3979 = vmul.f32 %v3940, 1.442695
        %v3980 = vpow.pop %v3979
        %v3981 = vmul.f32 %v3941, 1.442695
        %v3982 = vpow.pop %v3981
        %v3983 = vmul.f32 %v3942, 1.442695
        %v3984 = vpow.pop %v3983
        %v3985 = vmul.f32 %v3943, 1.442695
        %v3986 = vpow.pop %v3985
        %v3987 = vmul.f32 %v3944, 1.442695
        %v3988 = vpow.pop %v3987
        %v3989 = vmul.f32 %v3945, 1.442695
        %v3990 = vpow.pop %v3989
        %v3991 = vmul.f32 %v3946, 1.442695
        %v3992 = vpow.pop %v3991
        %v3993 = vmul.f32 %v3947, 1.442695
        %v3994 = vpow.pop %v3993
        %v3995 = vmul.f32 %v3948, 1.442695
        %v3996 = vpow.pop %v3995
        %v3997 = vmul.f32 %v3949, 1.442695
        %v3998 = vpow.pop %v3997
        %v3999 = vmul.f32 %v3950, 1.442695
        %v4000 = vpow.pop %v3999
        %v4001 = vmul.f32 %v3951, 1.442695
        %v4002 = vpow.pop %v4001
        %v4003 = vmul.f32 %v3952, 1.442695
        %v4004 = vpow.pop %v4003
        %v4005 = vmul.f32 %v3953, 1.442695
        %v4006 = vpow.pop %v4005
        %v4007 = vmul.f32 %v3954, 1.442695
        %v4008 = vpow.pop %v4007
        %v4009 = vmul.f32 %v3955, 1.442695
        %v4010 = vpow.pop %v4009
        %v4011 = vmul.f32 %v3956, 1.442695
        %v4012 = vpow.pop %v4011
        %v4013 = vmul.f32 %v3957, 1.442695
        %v4014 = vpow.pop %v4013
        %v4015 = vmul.f32 %v3958, 1.442695
        %v4016 = vpow.pop %v4015
        %v4017 = vmul.f32 %v3959, 1.442695
        %v4018 = vpow.pop %v4017
        %v4019 = vmul.f32 %v3960, 1.442695
        %v4020 = vpow.pop %v4019
        %v4021 = vmul.f32 %v3961, 1.442695
        %v4022 = vpow.pop %v4021
        %v4023 = vmul.f32 %v3962, 1.442695
        %v4024 = vpow.pop %v4023
        %v4025 = vmul.f32 %v3963, 1.442695
        %v4026 = vpow.pop %v4025
        %v4027 = vmul.f32 %v3964, 1.442695
        %v4028 = vpow.pop %v4027
        %v4029 = vadd.f32 %v3966, 1.0
        %v4030 = vadd.f32 %v3968, 1.0
        %v4031 = vadd.f32 %v3970, 1.0
        %v4032 = vadd.f32 %v3972, 1.0
        %v4033 = vadd.f32 %v3974, 1.0
        %v4034 = vadd.f32 %v3976, 1.0
        %v4035 = vadd.f32 %v3978, 1.0
        %v4036 = vadd.f32 %v3980, 1.0
        %v4037 = vadd.f32 %v3982, 1.0
        %v4038 = vadd.f32 %v3984, 1.0
        %v4039 = vadd.f32 %v3986, 1.0
        %v4040 = vadd.f32 %v3988, 1.0
        %v4041 = vadd.f32 %v3990, 1.0
        %v4042 = vadd.f32 %v3992, 1.0
        %v4043 = vadd.f32 %v3994, 1.0
        %v4044 = vadd.f32 %v3996, 1.0
        %v4045 = vadd.f32 %v3998, 1.0
        %v4046 = vadd.f32 %v4000, 1.0
        %v4047 = vadd.f32 %v4002, 1.0
        %v4048 = vadd.f32 %v4004, 1.0
        %v4049 = vadd.f32 %v4006, 1.0
        %v4050 = vadd.f32 %v4008, 1.0
        %v4051 = vadd.f32 %v4010, 1.0
        %v4052 = vadd.f32 %v4012, 1.0
        %v4053 = vadd.f32 %v4014, 1.0
        %v4054 = vadd.f32 %v4016, 1.0
        %v4055 = vadd.f32 %v4018, 1.0
        %v4056 = vadd.f32 %v4020, 1.0
        %v4057 = vadd.f32 %v4022, 1.0
        %v4058 = vadd.f32 %v4024, 1.0
        %v4059 = vadd.f32 %v4026, 1.0
        %v4060 = vadd.f32 %v4028, 1.0
        %v4061 = vrcp.pop %v4029
        %v4062 = vmul.f32 1.0, %v4061
        %v4063 = vrcp.pop %v4030
        %v4064 = vmul.f32 1.0, %v4063
        %v4065 = vrcp.pop %v4031
        %v4066 = vmul.f32 1.0, %v4065
        %v4067 = vrcp.pop %v4032
        %v4068 = vmul.f32 1.0, %v4067
        %v4069 = vrcp.pop %v4033
        %v4070 = vmul.f32 1.0, %v4069
        %v4071 = vrcp.pop %v4034
        %v4072 = vmul.f32 1.0, %v4071
        %v4073 = vrcp.pop %v4035
        %v4074 = vmul.f32 1.0, %v4073
        %v4075 = vrcp.pop %v4036
        %v4076 = vmul.f32 1.0, %v4075
        %v4077 = vrcp.pop %v4037
        %v4078 = vmul.f32 1.0, %v4077
        %v4079 = vrcp.pop %v4038
        %v4080 = vmul.f32 1.0, %v4079
        %v4081 = vrcp.pop %v4039
        %v4082 = vmul.f32 1.0, %v4081
        %v4083 = vrcp.pop %v4040
        %v4084 = vmul.f32 1.0, %v4083
        %v4085 = vrcp.pop %v4041
        %v4086 = vmul.f32 1.0, %v4085
        %v4087 = vrcp.pop %v4042
        %v4088 = vmul.f32 1.0, %v4087
        %v4089 = vrcp.pop %v4043
        %v4090 = vmul.f32 1.0, %v4089
        %v4091 = vrcp.pop %v4044
        %v4092 = vmul.f32 1.0, %v4091
        %v4093 = vrcp.pop %v4045
        %v4094 = vmul.f32 1.0, %v4093
        %v4095 = vrcp.pop %v4046
        %v4096 = vmul.f32 1.0, %v4095
        %v4097 = vrcp.pop %v4047
        %v4098 = vmul.f32 1.0, %v4097
        %v4099 = vrcp.pop %v4048
        %v4100 = vmul.f32 1.0, %v4099
        %v4101 = vrcp.pop %v4049
        %v4102 = vmul.f32 1.0, %v4101
        %v4103 = vrcp.pop %v4050
        %v4104 = vmul.f32 1.0, %v4103
        %v4105 = vrcp.pop %v4051
        %v4106 = vmul.f32 1.0, %v4105
        %v4107 = vrcp.pop %v4052
        %v4108 = vmul.f32 1.0, %v4107
        %v4109 = vrcp.pop %v4053
        %v4110 = vmul.f32 1.0, %v4109
        %v4111 = vrcp.pop %v4054
        %v4112 = vmul.f32 1.0, %v4111
        %v4113 = vrcp.pop %v4055
        %v4114 = vmul.f32 1.0, %v4113
        %v4115 = vrcp.pop %v4056
        %v4116 = vmul.f32 1.0, %v4115
        %v4117 = vrcp.pop %v4057
        %v4118 = vmul.f32 1.0, %v4117
        %v4119 = vrcp.pop %v4058
        %v4120 = vmul.f32 1.0, %v4119
        %v4121 = vrcp.pop %v4059
        %v4122 = vmul.f32 1.0, %v4121
        %v4123 = vrcp.pop %v4060
        %v4124 = vmul.f32 1.0, %v4123
        %vm4125 = vcmask 7168
        %4126 = vst.msk [vmem:[%s243] sm:$0xff] %vm4125, %v4062
        %4127 = vst.msk [vmem:[%s243 + $0x8] sm:$0xff] %vm4125, %v4064
        %4128 = vst.msk [vmem:[%s243 + $0x10] sm:$0xff] %vm4125, %v4066
        %4129 = vst.msk [vmem:[%s243 + $0x18] sm:$0xff] %vm4125, %v4068
        %4130 = vst.msk [vmem:[%s243 + $0x20] sm:$0xff] %vm4125, %v4070
        %4131 = vst.msk [vmem:[%s243 + $0x28] sm:$0xff] %vm4125, %v4072
        %4132 = vst.msk [vmem:[%s243 + $0x30] sm:$0xff] %vm4125, %v4074
        %4133 = vst.msk [vmem:[%s243 + $0x38] sm:$0xff] %vm4125, %v4076
        %4134 = vst.msk [vmem:[%s243 + $0x40] sm:$0xff] %vm4125, %v4078
        %4135 = vst.msk [vmem:[%s243 + $0x48] sm:$0xff] %vm4125, %v4080
        %4136 = vst.msk [vmem:[%s243 + $0x50] sm:$0xff] %vm4125, %v4082
        %4137 = vst.msk [vmem:[%s243 + $0x58] sm:$0xff] %vm4125, %v4084
        %4138 = vst.msk [vmem:[%s243 + $0x60] sm:$0xff] %vm4125, %v4086
        %4139 = vst.msk [vmem:[%s243 + $0x68] sm:$0xff] %vm4125, %v4088
        %4140 = vst.msk [vmem:[%s243 + $0x70] sm:$0xff] %vm4125, %v4090
        %4141 = vst.msk [vmem:[%s243 + $0x78] sm:$0xff] %vm4125, %v4092
        %4142 = vst.msk [vmem:[%s243 + $0x80] sm:$0xff] %vm4125, %v4094
        %4143 = vst.msk [vmem:[%s243 + $0x88] sm:$0xff] %vm4125, %v4096
        %4144 = vst.msk [vmem:[%s243 + $0x90] sm:$0xff] %vm4125, %v4098
        %4145 = vst.msk [vmem:[%s243 + $0x98] sm:$0xff] %vm4125, %v4100
        %4146 = vst.msk [vmem:[%s243 + $0xa0] sm:$0xff] %vm4125, %v4102
        %4147 = vst.msk [vmem:[%s243 + $0xa8] sm:$0xff] %vm4125, %v4104
        %4148 = vst.msk [vmem:[%s243 + $0xb0] sm:$0xff] %vm4125, %v4106
        %4149 = vst.msk [vmem:[%s243 + $0xb8] sm:$0xff] %vm4125, %v4108
        %4150 = vst.msk [vmem:[%s243 + $0xc0] sm:$0xff] %vm4125, %v4110
        %4151 = vst.msk [vmem:[%s243 + $0xc8] sm:$0xff] %vm4125, %v4112
        %4152 = vst.msk [vmem:[%s243 + $0xd0] sm:$0xff] %vm4125, %v4114
        %4153 = vst.msk [vmem:[%s243 + $0xd8] sm:$0xff] %vm4125, %v4116
        %4154 = vst.msk [vmem:[%s243 + $0xe0] sm:$0xff] %vm4125, %v4118
        %4155 = vst.msk [vmem:[%s243 + $0xe8] sm:$0xff] %vm4125, %v4120
        %4156 = vst.msk [vmem:[%s243 + $0xf0] sm:$0xff] %vm4125, %v4122
        %4157 = vst.msk [vmem:[%s243 + $0xf8] sm:$0xff] %vm4125, %v4124
        %s4158 = smul.u32 32, %s19
        %p4159 = scmp.lt.s32.totalorder %s4158, 63
        %s4160 = scalar_select %p4159, %s4158, 63
        %s4161 = smul.addr %s4160, 8
        %s4162 = scalar_lea.vmem %s5, %s4161
        // Predicated region
        $region45: #{tpu_custom_call.1} parent=39 // pred_check
          %p4163 = pneg %p147
        $region46: #{tpu_custom_call.1} parent=39 // pred_check_branch
          %4165 = sbr.rel (%p4163) target = $region48
        $region47: #{tpu_custom_call.1} parent=39 // pred_region
          %s4166 = smul.u32 32, %s19
        $region48: #{tpu_custom_call.1} parent=39 // pred_fallthru
          _
      $region40: #{tpu_custom_call.1} parent=5 // pred_fallthru
        _
      %p4167 = scmp.le.s32.totalorder 2, %s14
      // Predicated region
      $region49: #{tpu_custom_call.1} parent=5 // pred_check
        %p4168 = pneg %p4167
      $region50: #{tpu_custom_call.1} parent=5 // pred_check_branch
        %4170 = sbr.rel (%p4168) target = $region52
      $region51: #{tpu_custom_call.1} parent=5 // pred_region
        %s4171 = ssub.s32 %s14, 2
        // Predicated region
        $region53: #{tpu_custom_call.1} parent=51 // pred_check
          %p4172 = pneg %p153
        $region54: #{tpu_custom_call.1} parent=51 // pred_check_branch
          %4174 = sbr.rel (%p4172) target = $region56
        $region55: #{tpu_custom_call.1} parent=51 // pred_region
          %s4175 = smul.u32 32, %s20
          %p4176 = scmp.lt.s32.totalorder %s4175, 63
          %s4177 = scalar_select %p4176, %s4175, 63
          %s4178 = smul.addr %s4177, 8
          %s4179 = scalar_lea.vmem %s5, %s4178
        $region56: #{tpu_custom_call.1} parent=51 // pred_fallthru
          _
      $region52: #{tpu_custom_call.1} parent=5 // pred_fallthru
        _
    $region6: #{tpu_custom_call.1} parent=1 // loop_footer
      %s18 = sadd.s32 1, %s14
    $region7: #{tpu_custom_call.1} parent=1 // loop_footer_branch
      %13 = sbr.rel target = $region3
    $region8: #{tpu_custom_call.1} parent=1 // loop_exit
      _
    %4180 = vsyncpa [#allocation4], 1
    %s4181 = scalar_lea.sflag [#allocation4], 1
    %4182 = vsyncpa %s4181, 1

</llo_original>
